<compile_context>
chip_gen: v7x
topology: tpu7x:2x2x1
jax: 0.10.0
libtpu: 0.0.40
codegen_flags: <defaults>
</compile_context>

<pallas_src>
import functools

import jax
import jax.numpy as jnp
from jax.experimental import pallas as pl
from jax.experimental.pallas import tpu as pltpu

LAMBDA_ = 0.3
ETA_ = 0.4


# ----------------------------------------------------------------------------
# Fused per-iteration Pallas kernel (one grid step == one graph in the batch)
# ----------------------------------------------------------------------------
def fused_iter_kernel(*refs, first_iter):
    f32 = jnp.float32
    bf16 = jnp.bfloat16

    if first_iter:
        (h_ref, x_ref, a_old_ref, glw_ref, wg_ref, ug_ref, bg_ref,
         a_out_ref, a1_out_ref, h_out_ref, pool_ref, stats_ref, y_buf) = refs
        a1_ref = l0_ref = None
    else:
        (h_ref, x_ref, a_old_ref, a1_ref, l0_ref, glw_ref, wg_ref, ug_ref,
         bg_ref, a_out_ref, h_out_ref, pool_ref, stats_ref, y_buf) = refs
        a1_out_ref = None

    h = h_ref[...]                     # (N, D) f32  (batch dim squeezed)
    x = x_ref[...]                     # (N, D) f32  original features X
    N, D = h.shape
    heads = glw_ref.shape[0]

    # --- graph learner --------------------------------------------------------
    # TODO(synk): GraphLearner source unavailable -- IDGL-style multi-head
    # weighted-cosine similarity, head-averaged, ReLU-thresholded.  Heads are
    # written into a VMEM scratch slab -> one K=heads*D MXU contraction, no
    # lane-concat shuffles.
    for hd in range(heads):            # static, tiny
        wh = glw_ref[hd:hd + 1, :]     # (1, D)
        xh = h * wh
        ss = jnp.sum(xh * xh, axis=-1, keepdims=True)
        y_buf[:, hd * D:(hd + 1) * D] = xh * jax.lax.rsqrt(ss + 1e-16)  # EUP rsqrt
    yb = y_buf[...].astype(bf16)                                        # (N, heads*D)
    sim = jax.lax.dot_general(yb, yb, (((1,), (1,)), ((), ())),
                              preferred_element_type=f32) * (1.0 / heads)
    a_sim = jnp.maximum(sim, 0.0)                                       # (N, N)

    # --- per-graph min-max normalization (minmax_normalize_adjacency) --------
    amin = jnp.min(a_sim)
    amax = jnp.max(a_sim)
    a_norm = (a_sim - amin) / (amax - amin + 1e-8)

    if first_iter:
        a_new = a_sim                  # m == 0: GGNN consumes raw learner output
        a1_eff = a_norm                # A_1 = minmax(A_sim)
        a1_out_ref[...] = a_norm       # only written on the first iteration
    else:
        # update_adjacency: lambda*L_0 + (1-eta)*(eta*minmax(A_m) + (1-eta)*A_1)
        a1_eff = a1_ref[...]
        a_new = (LAMBDA_ * l0_ref[...]
                 + (1.0 - ETA_) * (ETA_ * a_norm + (1.0 - ETA_) * a1_eff))
    a_out_ref[...] = a_new

    # --- GGNN: GRU-gated propagation step + mean-pool readout state ----------
    # TODO(synk): GGNN source unavailable -- A@H message + GRU update; the
    # message->Linear(wa,ba)->gate pair is pre-folded into w_gate/b_gate.
    ab = a_new.astype(bf16)
    hb = h.astype(bf16)
    msg = jnp.dot(ab, hb, preferred_element_type=f32)                   # (N, D)
    msgb = msg.astype(bf16)

    wg = wg_ref[...]                   # (3, D, D) bf16  (z, r, candidate)
    ug = ug_ref[...]                   # (3, D, D) bf16
    bg = bg_ref[...]                   # (3, 1, D) f32

    z = jax.nn.sigmoid(jnp.dot(msgb, wg[0], preferred_element_type=f32) + bg[0]
                       + jnp.dot(hb, ug[0], preferred_element_type=f32))
    r = jax.nn.sigmoid(jnp.dot(msgb, wg[1], preferred_element_type=f32) + bg[1]
                       + jnp.dot(hb, ug[1], preferred_element_type=f32))
    hc = jnp.tanh(jnp.dot(msgb, wg[2], preferred_element_type=f32) + bg[2]
                  + jnp.dot((r * h).astype(bf16), ug[2],
                            preferred_element_type=f32))
    h_new = (1.0 - z) * h + z * hc
    h_out_ref[...] = h_new
    pool_ref[...] = jnp.mean(h_new, axis=0, keepdims=True)              # (1, D)

    # --- graph-regularization reductions, fused (per-graph scalars) ----------
    # TODO(synk): graph_regularization_loss source unavailable -- IDGL-style
    # smoothness/degree/sparsity terms + relative-change stopping criterion.
    deg = jnp.sum(a_new, axis=-1, keepdims=True)                        # (N, 1)
    ax = jnp.dot(ab, x.astype(bf16), preferred_element_type=f32)        # A_new @ X
    smooth = (jnp.sum(deg * jnp.sum(x * x, axis=-1, keepdims=True))
              - jnp.sum(ax * x)) / (N * N)                              # tr(X^T L X)/N^2
    degree = -jnp.mean(jnp.log(jnp.maximum(deg, 0.0) + 1e-8))
    sparsity = jnp.sum(a_new * a_new) / (N * N)
    diff = jnp.sum((a_new - a_old_ref[...]) ** 2)
    a1_sq = jnp.sum(a1_eff * a1_eff)

    lane = jax.lax.broadcasted_iota(jnp.int32, (1, 8), 1)
    stats_ref[...] = jnp.where(lane == 0, smooth,
                      jnp.where(lane == 1, degree,
                       jnp.where(lane == 2, sparsity,
                        jnp.where(lane == 3, diff,
                         jnp.where(lane == 4, a1_sq, 0.0)))))


def fused_iteration(H, X, A_old, A_1, L_0, w, *, first_iter):
    B, N, D = H.shape
    heads = w["gl_w"].shape[0]
    f32 = jnp.float32

    node_spec = pl.BlockSpec((None, N, D), lambda b: (b, 0, 0))
    adj_spec = pl.BlockSpec((None, N, N), lambda b: (b, 0, 0))
    row_spec = pl.BlockSpec((None, 1, D), lambda b: (b, 0, 0))
    stat_spec = pl.BlockSpec((None, 1, 8), lambda b: (b, 0, 0))
    glw_spec = pl.BlockSpec((heads, D), lambda b: (0, 0))
    w3_spec = pl.BlockSpec((3, D, D), lambda b: (0, 0, 0))
    b3_spec = pl.BlockSpec((3, 1, D), lambda b: (0, 0, 0))

    inputs = [H, X, A_old]
    in_specs = [node_spec, node_spec, adj_spec]
    if not first_iter:
        inputs += [A_1, L_0]
        in_specs += [adj_spec, adj_spec]
    inputs += [w["gl_w"], w["w_gate"], w["u_gate"], w["b_gate"]]
    in_specs += [glw_spec, w3_spec, w3_spec, b3_spec]

    out_shape = [jax.ShapeDtypeStruct((B, N, N), f32)]                  # new A_m
    out_specs = [adj_spec]
    if first_iter:
        out_shape.append(jax.ShapeDtypeStruct((B, N, N), f32))          # A_1
        out_specs.append(adj_spec)
    out_shape += [jax.ShapeDtypeStruct((B, N, D), f32),                 # H_{m+1}
                  jax.ShapeDtypeStruct((B, 1, D), f32),                 # pooled
                  jax.ShapeDtypeStruct((B, 1, 8), f32)]                 # reg stats
    out_specs += [node_spec, row_spec, stat_spec]

    return pl.pallas_call(
        functools.partial(fused_iter_kernel, first_iter=first_iter),
        grid=(B,),
        in_specs=in_specs,
        out_specs=tuple(out_specs),
        out_shape=tuple(out_shape),
        scratch_shapes=[pltpu.VMEM((N, heads * D), f32)],
        compiler_params=pltpu.CompilerParams(
            dimension_semantics=("parallel",),      # batch graphs -> TCs / pipeline
            vmem_limit_bytes=32 * 1024 * 1024),     # re-derive per generation / N
    )(*inputs)


# ----------------------------------------------------------------------------
# Plain-JAX glue (readout MLP, losses, Laplacian)
# ----------------------------------------------------------------------------
def readout_mlp(pooled, params):
    # tiny (B,D)@(D,H)@(H,1) MLP: not worth a kernel launch
    hid = jax.nn.relu(pooled @ params["w1"] + params["b1"])
    return hid @ params["w2"] + params["b2"]                            # (B, 1)


def compute_normalized_laplacian(A):
    # TODO(synk): source unavailable -- standard L = I - D^-1/2 A D^-1/2.
    N = A.shape[-1]
    deg = jnp.sum(A, axis=-1)
    dinv = 1.0 / jnp.sqrt(deg + 1e-8)
    return jnp.eye(N, dtype=A.dtype) - dinv[..., :, None] * A * dinv[..., None, :]


def focal_loss(logits, targets, alpha=0.25, gamma=2.0):
    # TODO(synk): FocalLoss source unavailable -- standard binary focal loss.
    log_p = jax.nn.log_sigmoid(logits)
    log_not_p = jax.nn.log_sigmoid(-logits)
    ce = -(targets * log_p + (1.0 - targets) * log_not_p)
    p = jnp.exp(log_p)
    p_t = targets * p + (1.0 - targets) * (1.0 - p)
    alpha_t = targets * alpha + (1.0 - targets) * (1.0 - alpha)
    return jnp.mean(alpha_t * (1.0 - p_t) ** gamma * ce)


def reg_loss_from_stats(stats, delta):
    # consumes the per-graph scalars produced inside the fused kernel
    smooth = jnp.mean(stats[:, 0, 0])
    degree = jnp.mean(stats[:, 0, 1])
    sparsity = jnp.mean(stats[:, 0, 2])
    L_G = 0.1 * smooth + 0.1 * degree + 0.1 * sparsity
    diff = jnp.sum(stats[:, 0, 3])
    denom = jnp.sum(stats[:, 0, 4]) + 1e-8
    stop_cond = (diff / denom) < delta
    return L_G, stop_cond


# ----------------------------------------------------------------------------
# IGGCN forward (jitted, masked early-stop instead of host-side break)
# ----------------------------------------------------------------------------
def init_params(key, input_dim, hidden_dim, heads):
    ks = jax.random.split(key, 6)
    s = 0.1
    return dict(
        gl_w=1.0 + s * jax.random.normal(ks[0], (heads, input_dim), jnp.float32),
        wa=s * jax.random.normal(ks[1], (input_dim, input_dim), jnp.float32),
        ba=jnp.zeros((1, input_dim), jnp.float32),
        wg=s * jax.random.normal(ks[2], (3, input_dim, input_dim), jnp.float32),
        ug=s * jax.random.normal(ks[3], (3, input_dim, input_dim), jnp.float32),
        bg=jnp.zeros((3, input_dim), jnp.float32),
        w1=s * jax.random.normal(ks[4], (input_dim, hidden_dim), jnp.float32),
        b1=jnp.zeros((1, hidden_dim), jnp.float32),
        w2=s * jax.random.normal(ks[5], (hidden_dim, 1), jnp.float32),
        b2=jnp.zeros((1, 1), jnp.float32),
    )


@functools.partial(jax.jit, static_argnames=("max_iters", "delta"))
def iggcn_forward(params, X, A_0, y_batch, *, max_iters=3, delta=1e-3):
    B, N, D = X.shape

    # fold the msg->Linear(wa,ba)->gate weight pairs; pre-cast matmul weights
    # to bf16 once per call so the kernel never casts weights per iteration.
    w_gate = jnp.einsum("de,geh->gdh", params["wa"], params["wg"])       # (3, D, D)
    b_gate = (jnp.einsum("xd,gdh->gxh", params["ba"], params["wg"])
              + params["bg"][:, None, :])                               # (3, 1, D)
    wc = dict(gl_w=params["gl_w"],
              w_gate=w_gate.astype(jnp.bfloat16),
              u_gate=params["ug"].astype(jnp.bfloat16),
              b_gate=b_gate.astype(jnp.float32))

    L_0 = compute_normalized_laplacian(A_0)
    H_m, A_m, A_1 = X, A_0, A_0

    loss_sum = jnp.float32(0.0)
    loss_cnt = jnp.float32(0.0)
    logits = jnp.zeros((B, 1), jnp.float32)
    active = jnp.bool_(True)       # mirrors torch `break` without host sync

    for m in range(max_iters):     # static unroll (max_iters is small)
        if m == 0:
            A_new, A_1, H_new, pooled, stats = fused_iteration(
                H_m, X, A_m, None, None, wc, first_iter=True)
        else:
            A_new, H_new, pooled, stats = fused_iteration(
                H_m, X, A_m, A_1, L_0, wc, first_iter=False)

        logits_m = readout_mlp(pooled[:, 0, :], params)
        pred_loss = focal_loss(logits_m[:, 0], y_batch)
        L_G, stop_cond = reg_loss_from_stats(stats, delta)

        w_ = active.astype(jnp.float32)
        loss_sum = loss_sum + w_ * (pred_loss + L_G)
        loss_cnt = loss_cnt + w_
        logits = jnp.where(active, logits_m, logits)

        # masked state updates keep exact early-stop semantics under jit
        H_m = jnp.where(active, H_new, H_m)
        A_m = jnp.where(active, A_new, A_m)
        active = jnp.logical_and(active, jnp.logical_not(stop_cond))

    return logits, loss_sum / loss_cnt


# ----------------------------------------------------------------------------
if __name__ == "__main__":
    B, N, D, HID, HEADS = 2, 16, 32, 32, 4

    key = jax.random.PRNGKey(0)
    kx, ka, ky, kp = jax.random.split(key, 4)

    X = jax.random.normal(kx, (B, N, D), jnp.float32)
    A_raw = jax.random.uniform(ka, (B, N, N), jnp.float32)
    A_0 = 0.5 * (A_raw + jnp.swapaxes(A_raw, 1, 2))         # symmetric adjacency
    y = jax.random.bernoulli(ky, 0.5, (B,)).astype(jnp.float32)

    params = init_params(kp, D, HID, HEADS)

    logits, loss = iggcn_forward(params, X, A_0, y, max_iters=3, delta=1e-3)
    jax.block_until_ready((logits, loss))
    assert logits.shape == (B, 1)
    assert bool(jnp.isfinite(loss))
    print("KERNEL_OK")
</pallas_src>

<mosaic_0001>
module attributes {stable_mosaic.version = 11 : i64} {
  func.func @fused_iter_kernel(%arg0: i32, %arg1: memref<1x16x32xf32, #tpu.memory_space<vmem>>, %arg2: memref<1x16x32xf32, #tpu.memory_space<vmem>>, %arg3: memref<1x16x16xf32, #tpu.memory_space<vmem>>, %arg4: memref<4x32xf32, #tpu.memory_space<vmem>>, %arg5: memref<3x32x32xbf16, #tpu.memory_space<vmem>>, %arg6: memref<3x32x32xbf16, #tpu.memory_space<vmem>>, %arg7: memref<3x1x32xf32, #tpu.memory_space<vmem>>, %arg8: memref<1x16x16xf32, #tpu.memory_space<vmem>>, %arg9: memref<1x16x16xf32, #tpu.memory_space<vmem>>, %arg10: memref<1x16x32xf32, #tpu.memory_space<vmem>>, %arg11: memref<1x1x32xf32, #tpu.memory_space<vmem>>, %arg12: memref<1x1x8xf32, #tpu.memory_space<vmem>>, %arg13: memref<16x128xf32, #tpu.memory_space<vmem>>) attributes {dimension_semantics = [#tpu.dimension_semantics<parallel>], iteration_bounds = array<i64: 2>, scalar_prefetch = 0 : i64, scratch_operands = 1 : i64, tpu.core_type = #tpu.core_type<tc>, window_params = [{transform_indices = @transform_0, window_bounds = array<i64: 1, 16, 32>}, {transform_indices = @transform_1, window_bounds = array<i64: 1, 16, 32>}, {transform_indices = @transform_2, window_bounds = array<i64: 1, 16, 16>}, {pipeline_mode = #tpu.pipeline_mode<synchronous>, transform_indices = @transform_3, window_bounds = array<i64: 4, 32>}, {pipeline_mode = #tpu.pipeline_mode<synchronous>, transform_indices = @transform_4, window_bounds = array<i64: 3, 32, 32>}, {pipeline_mode = #tpu.pipeline_mode<synchronous>, transform_indices = @transform_5, window_bounds = array<i64: 3, 32, 32>}, {pipeline_mode = #tpu.pipeline_mode<synchronous>, transform_indices = @transform_6, window_bounds = array<i64: 3, 1, 32>}, {transform_indices = @transform_7, window_bounds = array<i64: 1, 16, 16>}, {transform_indices = @transform_8, window_bounds = array<i64: 1, 16, 16>}, {transform_indices = @transform_9, window_bounds = array<i64: 1, 16, 32>}, {transform_indices = @transform_10, window_bounds = array<i64: 1, 1, 32>}, {transform_indices = @transform_11, window_bounds = array<i64: 1, 1, 8>}]} {
    %c0 = arith.constant 0 : index
    %c0_0 = arith.constant 0 : index
    %c0_1 = arith.constant 0 : index
    %0 = vector.load %arg1[%c0, %c0_0, %c0_1] : memref<1x16x32xf32, #tpu.memory_space<vmem>>, vector<1x16x32xf32>
    %1 = vector.shape_cast %0 : vector<1x16x32xf32> to vector<16x32xf32>
    %c0_2 = arith.constant 0 : index
    %c0_3 = arith.constant 0 : index
    %c0_4 = arith.constant 0 : index
    %2 = vector.load %arg2[%c0_2, %c0_3, %c0_4] : memref<1x16x32xf32, #tpu.memory_space<vmem>>, vector<1x16x32xf32>
    %3 = vector.shape_cast %2 : vector<1x16x32xf32> to vector<16x32xf32>
    %c0_5 = arith.constant 0 : index
    %c0_6 = arith.constant 0 : index
    %4 = vector.load %arg4[%c0_5, %c0_6] : memref<4x32xf32, #tpu.memory_space<vmem>>, vector<1x32xf32>
    %5 = vector.broadcast %4 : vector<1x32xf32> to vector<16x32xf32>
    %6 = arith.mulf %1, %5 : vector<16x32xf32>
    %7 = arith.mulf %6, %6 : vector<16x32xf32>
    %cst = arith.constant dense<0.000000e+00> : vector<16xf32>
    %8 = vector.multi_reduction <add>, %7, %cst [1] : vector<16x32xf32> to vector<16xf32>
    %9 = vector.shape_cast %8 : vector<16xf32> to vector<16x1xf32>
    %cst_7 = arith.constant 1.000000e-16 : f32
    %10 = vector.broadcast %cst_7 : f32 to vector<16x1xf32>
    %11 = arith.addf %9, %10 : vector<16x1xf32>
    %12 = math.rsqrt %11 : vector<16x1xf32>
    %13 = vector.broadcast %12 : vector<16x1xf32> to vector<16x32xf32>
    %14 = arith.mulf %6, %13 : vector<16x32xf32>
    %c0_8 = arith.constant 0 : index
    %c0_9 = arith.constant 0 : index
    %15 = vector.load %arg13[%c0_8, %c0_9] : memref<16x128xf32, #tpu.memory_space<vmem>>, vector<16x32xf32>
    tpu.vector_store %arg13[%c0_8, %c0_9], %14 {strides = array<i32>} : memref<16x128xf32, #tpu.memory_space<vmem>>, vector<16x32xf32>,
    %c1 = arith.constant 1 : index
    %c0_10 = arith.constant 0 : index
    %16 = vector.load %arg4[%c1, %c0_10] : memref<4x32xf32, #tpu.memory_space<vmem>>, vector<1x32xf32>
    %17 = vector.broadcast %16 : vector<1x32xf32> to vector<16x32xf32>
    %18 = arith.mulf %1, %17 : vector<16x32xf32>
    %19 = arith.mulf %18, %18 : vector<16x32xf32>
    %cst_11 = arith.constant dense<0.000000e+00> : vector<16xf32>
    %20 = vector.multi_reduction <add>, %19, %cst_11 [1] : vector<16x32xf32> to vector<16xf32>
    %21 = vector.shape_cast %20 : vector<16xf32> to vector<16x1xf32>
    %cst_12 = arith.constant 1.000000e-16 : f32
    %22 = vector.broadcast %cst_12 : f32 to vector<16x1xf32>
    %23 = arith.addf %21, %22 : vector<16x1xf32>
    %24 = math.rsqrt %23 : vector<16x1xf32>
    %25 = vector.broadcast %24 : vector<16x1xf32> to vector<16x32xf32>
    %26 = arith.mulf %18, %25 : vector<16x32xf32>
    %c0_13 = arith.constant 0 : index
    %c32 = arith.constant 32 : index
    %27 = vector.load %arg13[%c0_13, %c32] : memref<16x128xf32, #tpu.memory_space<vmem>>, vector<16x32xf32>
    tpu.vector_store %arg13[%c0_13, %c32], %26 {strides = array<i32>} : memref<16x128xf32, #tpu.memory_space<vmem>>, vector<16x32xf32>,
    %c2 = arith.constant 2 : index
    %c0_14 = arith.constant 0 : index
    %28 = vector.load %arg4[%c2, %c0_14] : memref<4x32xf32, #tpu.memory_space<vmem>>, vector<1x32xf32>
    %29 = vector.broadcast %28 : vector<1x32xf32> to vector<16x32xf32>
    %30 = arith.mulf %1, %29 : vector<16x32xf32>
    %31 = arith.mulf %30, %30 : vector<16x32xf32>
    %cst_15 = arith.constant dense<0.000000e+00> : vector<16xf32>
    %32 = vector.multi_reduction <add>, %31, %cst_15 [1] : vector<16x32xf32> to vector<16xf32>
    %33 = vector.shape_cast %32 : vector<16xf32> to vector<16x1xf32>
    %cst_16 = arith.constant 1.000000e-16 : f32
    %34 = vector.broadcast %cst_16 : f32 to vector<16x1xf32>
    %35 = arith.addf %33, %34 : vector<16x1xf32>
    %36 = math.rsqrt %35 : vector<16x1xf32>
    %37 = vector.broadcast %36 : vector<16x1xf32> to vector<16x32xf32>
    %38 = arith.mulf %30, %37 : vector<16x32xf32>
    %c0_17 = arith.constant 0 : index
    %c64 = arith.constant 64 : index
    %39 = vector.load %arg13[%c0_17, %c64] : memref<16x128xf32, #tpu.memory_space<vmem>>, vector<16x32xf32>
    tpu.vector_store %arg13[%c0_17, %c64], %38 {strides = array<i32>} : memref<16x128xf32, #tpu.memory_space<vmem>>, vector<16x32xf32>,
    %c3 = arith.constant 3 : index
    %c0_18 = arith.constant 0 : index
    %40 = vector.load %arg4[%c3, %c0_18] : memref<4x32xf32, #tpu.memory_space<vmem>>, vector<1x32xf32>
    %41 = vector.broadcast %40 : vector<1x32xf32> to vector<16x32xf32>
    %42 = arith.mulf %1, %41 : vector<16x32xf32>
    %43 = arith.mulf %42, %42 : vector<16x32xf32>
    %cst_19 = arith.constant dense<0.000000e+00> : vector<16xf32>
    %44 = vector.multi_reduction <add>, %43, %cst_19 [1] : vector<16x32xf32> to vector<16xf32>
    %45 = vector.shape_cast %44 : vector<16xf32> to vector<16x1xf32>
    %cst_20 = arith.constant 1.000000e-16 : f32
    %46 = vector.broadcast %cst_20 : f32 to vector<16x1xf32>
    %47 = arith.addf %45, %46 : vector<16x1xf32>
    %48 = math.rsqrt %47 : vector<16x1xf32>
    %49 = vector.broadcast %48 : vector<16x1xf32> to vector<16x32xf32>
    %50 = arith.mulf %42, %49 : vector<16x32xf32>
    %c0_21 = arith.constant 0 : index
    %c96 = arith.constant 96 : index
    %51 = vector.load %arg13[%c0_21, %c96] : memref<16x128xf32, #tpu.memory_space<vmem>>, vector<16x32xf32>
    tpu.vector_store %arg13[%c0_21, %c96], %50 {strides = array<i32>} : memref<16x128xf32, #tpu.memory_space<vmem>>, vector<16x32xf32>,
    %c0_22 = arith.constant 0 : index
    %c0_23 = arith.constant 0 : index
    %52 = vector.load %arg13[%c0_22, %c0_23] : memref<16x128xf32, #tpu.memory_space<vmem>>, vector<16x128xf32>
    %53 = arith.truncf %52 : vector<16x128xf32> to vector<16x128xbf16>
    %cst_24 = arith.constant dense<0.000000e+00> : vector<16x16xf32>
    %54 = tpu.matmul %53, %53, %cst_24 {dimension_numbers = #tpu.dot_dimension_numbers<[1], [1], [0], [0], [0, 0, 1, 0], [], []>} : vector<16x128xbf16>, vector<16x128xbf16>, vector<16x16xf32> -> vector<16x16xf32>
    %cst_25 = arith.constant 2.500000e-01 : f32
    %55 = vector.broadcast %cst_25 : f32 to vector<16x16xf32>
    %56 = arith.mulf %54, %55 : vector<16x16xf32>
    %cst_26 = arith.constant 0.000000e+00 : f32
    %57 = vector.broadcast %cst_26 : f32 to vector<16x16xf32>
    %58 = arith.maximumf %56, %57 : vector<16x16xf32>
    %59 = vector.shape_cast %58 : vector<16x16xf32> to vector<1x16x16xf32>
    %cst_27 = arith.constant dense<0x7F800000> : vector<1xf32>
    %60 = vector.multi_reduction <minimumf>, %59, %cst_27 [1, 2] : vector<1x16x16xf32> to vector<1xf32>
    %61 = vector.shape_cast %60 : vector<1xf32> to vector<1x1x1xf32>
    %62 = vector.extract %61[0, 0, 0] : f32 from vector<1x1x1xf32>
    %63 = vector.shape_cast %58 : vector<16x16xf32> to vector<1x16x16xf32>
    %cst_28 = arith.constant dense<0xFF800000> : vector<1xf32>
    %64 = vector.multi_reduction <maximumf>, %63, %cst_28 [1, 2] : vector<1x16x16xf32> to vector<1xf32>
    %65 = vector.shape_cast %64 : vector<1xf32> to vector<1x1x1xf32>
    %66 = vector.extract %65[0, 0, 0] : f32 from vector<1x1x1xf32>
    %67 = vector.broadcast %62 : f32 to vector<16x16xf32>
    %68 = arith.subf %58, %67 : vector<16x16xf32>
    %69 = arith.subf %66, %62 : f32
    %cst_29 = arith.constant 9.99999993E-9 : f32
    %70 = arith.addf %69, %cst_29 : f32
    %71 = vector.broadcast %70 : f32 to vector<16x16xf32>
    %72 = arith.divf %68, %71 : vector<16x16xf32>
    %c0_30 = arith.constant 0 : index
    %c0_31 = arith.constant 0 : index
    %c0_32 = arith.constant 0 : index
    %73 = vector.load %arg9[%c0_30, %c0_31, %c0_32] : memref<1x16x16xf32, #tpu.memory_space<vmem>>, vector<1x16x16xf32>
    %74 = vector.shape_cast %73 : vector<1x16x16xf32> to vector<16x16xf32>
    %75 = vector.shape_cast %72 : vector<16x16xf32> to vector<1x16x16xf32>
    tpu.vector_store %arg9[%c0_30, %c0_31, %c0_32], %75 {strides = array<i32>} : memref<1x16x16xf32, #tpu.memory_space<vmem>>, vector<1x16x16xf32>,
    %c0_33 = arith.constant 0 : index
    %c0_34 = arith.constant 0 : index
    %c0_35 = arith.constant 0 : index
    %76 = vector.load %arg8[%c0_33, %c0_34, %c0_35] : memref<1x16x16xf32, #tpu.memory_space<vmem>>, vector<1x16x16xf32>
    %77 = vector.shape_cast %76 : vector<1x16x16xf32> to vector<16x16xf32>
    %78 = vector.shape_cast %58 : vector<16x16xf32> to vector<1x16x16xf32>
    tpu.vector_store %arg8[%c0_33, %c0_34, %c0_35], %78 {strides = array<i32>} : memref<1x16x16xf32, #tpu.memory_space<vmem>>, vector<1x16x16xf32>,
    %79 = arith.truncf %58 : vector<16x16xf32> to vector<16x16xbf16>
    %80 = arith.truncf %1 : vector<16x32xf32> to vector<16x32xbf16>
    %cst_36 = arith.constant dense<0.000000e+00> : vector<16x32xf32>
    %81 = tpu.matmul %79, %80, %cst_36 {dimension_numbers = #tpu.dot_dimension_numbers<[1], [0], [0], [1], [0, 0, 1, 1], [], []>} : vector<16x16xbf16>, vector<16x32xbf16>, vector<16x32xf32> -> vector<16x32xf32>
    %82 = arith.truncf %81 : vector<16x32xf32> to vector<16x32xbf16>
    %c0_37 = arith.constant 0 : index
    %c0_38 = arith.constant 0 : index
    %c0_39 = arith.constant 0 : index
    %83 = vector.load %arg5[%c0_37, %c0_38, %c0_39] : memref<3x32x32xbf16, #tpu.memory_space<vmem>>, vector<3x32x32xbf16>
    %c0_40 = arith.constant 0 : index
    %c0_41 = arith.constant 0 : index
    %c0_42 = arith.constant 0 : index
    %84 = vector.load %arg6[%c0_40, %c0_41, %c0_42] : memref<3x32x32xbf16, #tpu.memory_space<vmem>>, vector<3x32x32xbf16>
    %c0_43 = arith.constant 0 : index
    %c0_44 = arith.constant 0 : index
    %c0_45 = arith.constant 0 : index
    %85 = vector.load %arg7[%c0_43, %c0_44, %c0_45] : memref<3x1x32xf32, #tpu.memory_space<vmem>>, vector<3x1x32xf32>
    %86 = vector.extract_strided_slice %83 {offsets = [0, 0, 0], sizes = [1, 32, 32], strides = [1, 1, 1]} : vector<3x32x32xbf16> to vector<1x32x32xbf16>
    %87 = vector.shape_cast %86 : vector<1x32x32xbf16> to vector<32x32xbf16>
    %cst_46 = arith.constant dense<0.000000e+00> : vector<16x32xf32>
    %88 = tpu.matmul %82, %87, %cst_46 {dimension_numbers = #tpu.dot_dimension_numbers<[1], [0], [0], [1], [0, 0, 1, 1], [], []>} : vector<16x32xbf16>, vector<32x32xbf16>, vector<16x32xf32> -> vector<16x32xf32>
    %89 = vector.extract_strided_slice %85 {offsets = [0, 0, 0], sizes = [1, 1, 32], strides = [1, 1, 1]} : vector<3x1x32xf32> to vector<1x1x32xf32>
    %90 = vector.shape_cast %89 : vector<1x1x32xf32> to vector<1x32xf32>
    %91 = vector.broadcast %90 : vector<1x32xf32> to vector<16x32xf32>
    %92 = arith.addf %88, %91 : vector<16x32xf32>
    %93 = vector.extract_strided_slice %84 {offsets = [0, 0, 0], sizes = [1, 32, 32], strides = [1, 1, 1]} : vector<3x32x32xbf16> to vector<1x32x32xbf16>
    %94 = vector.shape_cast %93 : vector<1x32x32xbf16> to vector<32x32xbf16>
    %cst_47 = arith.constant dense<0.000000e+00> : vector<16x32xf32>
    %95 = tpu.matmul %80, %94, %cst_47 {dimension_numbers = #tpu.dot_dimension_numbers<[1], [0], [0], [1], [0, 0, 1, 1], [], []>} : vector<16x32xbf16>, vector<32x32xbf16>, vector<16x32xf32> -> vector<16x32xf32>
    %96 = arith.addf %92, %95 : vector<16x32xf32>
    %97 = arith.negf %96 : vector<16x32xf32>
    %98 = math.exp %97 : vector<16x32xf32>
    %cst_48 = arith.constant 1.000000e+00 : f32
    %99 = vector.broadcast %cst_48 : f32 to vector<16x32xf32>
    %100 = arith.addf %99, %98 : vector<16x32xf32>
    %101 = arith.divf %99, %100 : vector<16x32xf32>
    %102 = vector.extract_strided_slice %83 {offsets = [1, 0, 0], sizes = [1, 32, 32], strides = [1, 1, 1]} : vector<3x32x32xbf16> to vector<1x32x32xbf16>
    %103 = vector.shape_cast %102 : vector<1x32x32xbf16> to vector<32x32xbf16>
    %cst_49 = arith.constant dense<0.000000e+00> : vector<16x32xf32>
    %104 = tpu.matmul %82, %103, %cst_49 {dimension_numbers = #tpu.dot_dimension_numbers<[1], [0], [0], [1], [0, 0, 1, 1], [], []>} : vector<16x32xbf16>, vector<32x32xbf16>, vector<16x32xf32> -> vector<16x32xf32>
    %105 = vector.extract_strided_slice %85 {offsets = [1, 0, 0], sizes = [1, 1, 32], strides = [1, 1, 1]} : vector<3x1x32xf32> to vector<1x1x32xf32>
    %106 = vector.shape_cast %105 : vector<1x1x32xf32> to vector<1x32xf32>
    %107 = vector.broadcast %106 : vector<1x32xf32> to vector<16x32xf32>
    %108 = arith.addf %104, %107 : vector<16x32xf32>
    %109 = vector.extract_strided_slice %84 {offsets = [1, 0, 0], sizes = [1, 32, 32], strides = [1, 1, 1]} : vector<3x32x32xbf16> to vector<1x32x32xbf16>
    %110 = vector.shape_cast %109 : vector<1x32x32xbf16> to vector<32x32xbf16>
    %cst_50 = arith.constant dense<0.000000e+00> : vector<16x32xf32>
    %111 = tpu.matmul %80, %110, %cst_50 {dimension_numbers = #tpu.dot_dimension_numbers<[1], [0], [0], [1], [0, 0, 1, 1], [], []>} : vector<16x32xbf16>, vector<32x32xbf16>, vector<16x32xf32> -> vector<16x32xf32>
    %112 = arith.addf %108, %111 : vector<16x32xf32>
    %113 = arith.negf %112 : vector<16x32xf32>
    %114 = math.exp %113 : vector<16x32xf32>
    %cst_51 = arith.constant 1.000000e+00 : f32
    %115 = vector.broadcast %cst_51 : f32 to vector<16x32xf32>
    %116 = arith.addf %115, %114 : vector<16x32xf32>
    %117 = arith.divf %115, %116 : vector<16x32xf32>
    %118 = vector.extract_strided_slice %83 {offsets = [2, 0, 0], sizes = [1, 32, 32], strides = [1, 1, 1]} : vector<3x32x32xbf16> to vector<1x32x32xbf16>
    %119 = vector.shape_cast %118 : vector<1x32x32xbf16> to vector<32x32xbf16>
    %cst_52 = arith.constant dense<0.000000e+00> : vector<16x32xf32>
    %120 = tpu.matmul %82, %119, %cst_52 {dimension_numbers = #tpu.dot_dimension_numbers<[1], [0], [0], [1], [0, 0, 1, 1], [], []>} : vector<16x32xbf16>, vector<32x32xbf16>, vector<16x32xf32> -> vector<16x32xf32>
    %121 = vector.extract_strided_slice %85 {offsets = [2, 0, 0], sizes = [1, 1, 32], strides = [1, 1, 1]} : vector<3x1x32xf32> to vector<1x1x32xf32>
    %122 = vector.shape_cast %121 : vector<1x1x32xf32> to vector<1x32xf32>
    %123 = vector.broadcast %122 : vector<1x32xf32> to vector<16x32xf32>
    %124 = arith.addf %120, %123 : vector<16x32xf32>
    %125 = arith.mulf %117, %1 : vector<16x32xf32>
    %126 = arith.truncf %125 : vector<16x32xf32> to vector<16x32xbf16>
    %127 = vector.extract_strided_slice %84 {offsets = [2, 0, 0], sizes = [1, 32, 32], strides = [1, 1, 1]} : vector<3x32x32xbf16> to vector<1x32x32xbf16>
    %128 = vector.shape_cast %127 : vector<1x32x32xbf16> to vector<32x32xbf16>
    %cst_53 = arith.constant dense<0.000000e+00> : vector<16x32xf32>
    %129 = tpu.matmul %126, %128, %cst_53 {dimension_numbers = #tpu.dot_dimension_numbers<[1], [0], [0], [1], [0, 0, 1, 1], [], []>} : vector<16x32xbf16>, vector<32x32xbf16>, vector<16x32xf32> -> vector<16x32xf32>
    %130 = arith.addf %124, %129 : vector<16x32xf32>
    %131 = math.tanh %130 : vector<16x32xf32>
    %cst_54 = arith.constant 1.000000e+00 : f32
    %132 = vector.broadcast %cst_54 : f32 to vector<16x32xf32>
    %133 = arith.subf %132, %101 : vector<16x32xf32>
    %134 = arith.mulf %133, %1 : vector<16x32xf32>
    %135 = arith.mulf %101, %131 : vector<16x32xf32>
    %136 = arith.addf %134, %135 : vector<16x32xf32>
    %c0_55 = arith.constant 0 : index
    %c0_56 = arith.constant 0 : index
    %c0_57 = arith.constant 0 : index
    %137 = vector.load %arg10[%c0_55, %c0_56, %c0_57] : memref<1x16x32xf32, #tpu.memory_space<vmem>>, vector<1x16x32xf32>
    %138 = vector.shape_cast %137 : vector<1x16x32xf32> to vector<16x32xf32>
    %139 = vector.shape_cast %136 : vector<16x32xf32> to vector<1x16x32xf32>
    tpu.vector_store %arg10[%c0_55, %c0_56, %c0_57], %139 {strides = array<i32>} : memref<1x16x32xf32, #tpu.memory_space<vmem>>, vector<1x16x32xf32>,
    %cst_58 = arith.constant dense<0.000000e+00> : vector<32xf32>
    %140 = vector.multi_reduction <add>, %136, %cst_58 [0] : vector<16x32xf32> to vector<32xf32>
    %141 = vector.shape_cast %140 : vector<32xf32> to vector<1x32xf32>
    %cst_59 = arith.constant 1.600000e+01 : f32
    %142 = vector.broadcast %cst_59 : f32 to vector<1x32xf32>
    %143 = arith.divf %141, %142 : vector<1x32xf32>
    %c0_60 = arith.constant 0 : index
    %c0_61 = arith.constant 0 : index
    %c0_62 = arith.constant 0 : index
    %144 = vector.load %arg11[%c0_60, %c0_61, %c0_62] : memref<1x1x32xf32, #tpu.memory_space<vmem>>, vector<1x1x32xf32>
    %145 = vector.shape_cast %144 : vector<1x1x32xf32> to vector<1x32xf32>
    %146 = vector.shape_cast %143 : vector<1x32xf32> to vector<1x1x32xf32>
    tpu.vector_store %arg11[%c0_60, %c0_61, %c0_62], %146 {strides = array<i32>} : memref<1x1x32xf32, #tpu.memory_space<vmem>>, vector<1x1x32xf32>,
    %cst_63 = arith.constant dense<0.000000e+00> : vector<16xf32>
    %147 = vector.multi_reduction <add>, %58, %cst_63 [1] : vector<16x16xf32> to vector<16xf32>
    %148 = vector.shape_cast %147 : vector<16xf32> to vector<16x1xf32>
    %149 = arith.truncf %3 : vector<16x32xf32> to vector<16x32xbf16>
    %cst_64 = arith.constant dense<0.000000e+00> : vector<16x32xf32>
    %150 = tpu.matmul %79, %149, %cst_64 {dimension_numbers = #tpu.dot_dimension_numbers<[1], [0], [0], [1], [0, 0, 1, 1], [], []>} : vector<16x16xbf16>, vector<16x32xbf16>, vector<16x32xf32> -> vector<16x32xf32>
    %151 = arith.mulf %3, %3 : vector<16x32xf32>
    %cst_65 = arith.constant dense<0.000000e+00> : vector<16xf32>
    %152 = vector.multi_reduction <add>, %151, %cst_65 [1] : vector<16x32xf32> to vector<16xf32>
    %153 = vector.shape_cast %152 : vector<16xf32> to vector<16x1xf32>
    %154 = arith.mulf %148, %153 : vector<16x1xf32>
    %155 = vector.shape_cast %154 : vector<16x1xf32> to vector<1x16x1xf32>
    %cst_66 = arith.constant dense<0.000000e+00> : vector<1xf32>
    %156 = vector.multi_reduction <add>, %155, %cst_66 [1, 2] : vector<1x16x1xf32> to vector<1xf32>
    %157 = vector.shape_cast %156 : vector<1xf32> to vector<1x1x1xf32>
    %158 = vector.extract %157[0, 0, 0] : f32 from vector<1x1x1xf32>
    %159 = arith.mulf %150, %3 : vector<16x32xf32>
    %160 = vector.shape_cast %159 : vector<16x32xf32> to vector<1x16x32xf32>
    %cst_67 = arith.constant dense<0.000000e+00> : vector<1xf32>
    %161 = vector.multi_reduction <add>, %160, %cst_67 [1, 2] : vector<1x16x32xf32> to vector<1xf32>
    %162 = vector.shape_cast %161 : vector<1xf32> to vector<1x1x1xf32>
    %163 = vector.extract %162[0, 0, 0] : f32 from vector<1x1x1xf32>
    %164 = arith.subf %158, %163 : f32
    %cst_68 = arith.constant 2.560000e+02 : f32
    %165 = arith.divf %164, %cst_68 : f32
    %cst_69 = arith.constant 0.000000e+00 : f32
    %166 = vector.broadcast %cst_69 : f32 to vector<16x1xf32>
    %167 = arith.maximumf %148, %166 : vector<16x1xf32>
    %cst_70 = arith.constant 9.99999993E-9 : f32
    %168 = vector.broadcast %cst_70 : f32 to vector<16x1xf32>
    %169 = arith.addf %167, %168 : vector<16x1xf32>
    %170 = math.log %169 : vector<16x1xf32>
    %171 = vector.shape_cast %170 : vector<16x1xf32> to vector<1x16x1xf32>
    %cst_71 = arith.constant dense<0.000000e+00> : vector<1xf32>
    %172 = vector.multi_reduction <add>, %171, %cst_71 [1, 2] : vector<1x16x1xf32> to vector<1xf32>
    %173 = vector.shape_cast %172 : vector<1xf32> to vector<1x1x1xf32>
    %174 = vector.extract %173[0, 0, 0] : f32 from vector<1x1x1xf32>
    %cst_72 = arith.constant 1.600000e+01 : f32
    %175 = arith.divf %174, %cst_72 : f32
    %cst_73 = arith.constant 0.000000e+00 : f32
    %176 = arith.subf %cst_73, %175 : f32
    %177 = arith.mulf %58, %58 : vector<16x16xf32>
    %178 = vector.shape_cast %177 : vector<16x16xf32> to vector<1x16x16xf32>
    %cst_74 = arith.constant dense<0.000000e+00> : vector<1xf32>
    %179 = vector.multi_reduction <add>, %178, %cst_74 [1, 2] : vector<1x16x16xf32> to vector<1xf32>
    %180 = vector.shape_cast %179 : vector<1xf32> to vector<1x1x1xf32>
    %181 = vector.extract %180[0, 0, 0] : f32 from vector<1x1x1xf32>
    %cst_75 = arith.constant 2.560000e+02 : f32
    %182 = arith.divf %181, %cst_75 : f32
    %c0_76 = arith.constant 0 : index
    %c0_77 = arith.constant 0 : index
    %c0_78 = arith.constant 0 : index
    %183 = vector.load %arg3[%c0_76, %c0_77, %c0_78] : memref<1x16x16xf32, #tpu.memory_space<vmem>>, vector<1x16x16xf32>
    %184 = vector.shape_cast %183 : vector<1x16x16xf32> to vector<16x16xf32>
    %185 = arith.subf %58, %184 : vector<16x16xf32>
    %186 = arith.mulf %185, %185 : vector<16x16xf32>
    %187 = vector.shape_cast %186 : vector<16x16xf32> to vector<1x16x16xf32>
    %cst_79 = arith.constant dense<0.000000e+00> : vector<1xf32>
    %188 = vector.multi_reduction <add>, %187, %cst_79 [1, 2] : vector<1x16x16xf32> to vector<1xf32>
    %189 = vector.shape_cast %188 : vector<1xf32> to vector<1x1x1xf32>
    %190 = vector.extract %189[0, 0, 0] : f32 from vector<1x1x1xf32>
    %191 = arith.mulf %72, %72 : vector<16x16xf32>
    %192 = vector.shape_cast %191 : vector<16x16xf32> to vector<1x16x16xf32>
    %cst_80 = arith.constant dense<0.000000e+00> : vector<1xf32>
    %193 = vector.multi_reduction <add>, %192, %cst_80 [1, 2] : vector<1x16x16xf32> to vector<1xf32>
    %194 = vector.shape_cast %193 : vector<1xf32> to vector<1x1x1xf32>
    %195 = vector.extract %194[0, 0, 0] : f32 from vector<1x1x1xf32>
    %196 = tpu.iota {dimensions = array<i32: 1>} : vector<1x8xi32>
    %c0_i32 = arith.constant 0 : i32
    %197 = vector.broadcast %c0_i32 : i32 to vector<1x8xi32>
    %198 = arith.cmpi eq, %196, %197 : vector<1x8xi32>
    %c1_i32 = arith.constant 1 : i32
    %199 = vector.broadcast %c1_i32 : i32 to vector<1x8xi32>
    %200 = arith.cmpi eq, %196, %199 : vector<1x8xi32>
    %c2_i32 = arith.constant 2 : i32
    %201 = vector.broadcast %c2_i32 : i32 to vector<1x8xi32>
    %202 = arith.cmpi eq, %196, %201 : vector<1x8xi32>
    %c3_i32 = arith.constant 3 : i32
    %203 = vector.broadcast %c3_i32 : i32 to vector<1x8xi32>
    %204 = arith.cmpi eq, %196, %203 : vector<1x8xi32>
    %c4_i32 = arith.constant 4 : i32
    %205 = vector.broadcast %c4_i32 : i32 to vector<1x8xi32>
    %206 = arith.cmpi eq, %196, %205 : vector<1x8xi32>
    %cst_81 = arith.constant 0.000000e+00 : f32
    %207 = vector.broadcast %195 : f32 to vector<1x8xf32>
    %208 = vector.broadcast %cst_81 : f32 to vector<1x8xf32>
    %209 = arith.select %206, %207, %208 : vector<1x8xi1>, vector<1x8xf32>
    %210 = vector.broadcast %190 : f32 to vector<1x8xf32>
    %211 = arith.select %204, %210, %209 : vector<1x8xi1>, vector<1x8xf32>
    %212 = vector.broadcast %182 : f32 to vector<1x8xf32>
    %213 = arith.select %202, %212, %211 : vector<1x8xi1>, vector<1x8xf32>
    %214 = vector.broadcast %176 : f32 to vector<1x8xf32>
    %215 = arith.select %200, %214, %213 : vector<1x8xi1>, vector<1x8xf32>
    %216 = vector.broadcast %165 : f32 to vector<1x8xf32>
    %217 = arith.select %198, %216, %215 : vector<1x8xi1>, vector<1x8xf32>
    %c0_82 = arith.constant 0 : index
    %c0_83 = arith.constant 0 : index
    %c0_84 = arith.constant 0 : index
    %218 = vector.load %arg12[%c0_82, %c0_83, %c0_84] : memref<1x1x8xf32, #tpu.memory_space<vmem>>, vector<1x1x8xf32>
    %219 = vector.shape_cast %218 : vector<1x1x8xf32> to vector<1x8xf32>
    %220 = vector.shape_cast %217 : vector<1x8xf32> to vector<1x1x8xf32>
    tpu.vector_store %arg12[%c0_82, %c0_83, %c0_84], %220 {strides = array<i32>} : memref<1x1x8xf32, #tpu.memory_space<vmem>>, vector<1x1x8xf32>,
    return
  }
  func.func @transform_0(%arg0: i32) -> (i32, i32, i32) {
    %c0_i32 = arith.constant 0 : i32
    %c0_i32_0 = arith.constant 0 : i32
    %c0_i32_1 = arith.constant 0 : i32
    return %arg0, %c0_i32, %c0_i32_0 : i32, i32, i32
  }
  func.func @transform_1(%arg0: i32) -> (i32, i32, i32) {
    %c0_i32 = arith.constant 0 : i32
    %c0_i32_0 = arith.constant 0 : i32
    %c0_i32_1 = arith.constant 0 : i32
    return %arg0, %c0_i32, %c0_i32_0 : i32, i32, i32
  }
  func.func @transform_2(%arg0: i32) -> (i32, i32, i32) {
    %c0_i32 = arith.constant 0 : i32
    %c0_i32_0 = arith.constant 0 : i32
    %c0_i32_1 = arith.constant 0 : i32
    return %arg0, %c0_i32, %c0_i32_0 : i32, i32, i32
  }
  func.func @transform_3(%arg0: i32) -> (i32, i32) {
    %c0_i32 = arith.constant 0 : i32
    %c0_i32_0 = arith.constant 0 : i32
    %c0_i32_1 = arith.constant 0 : i32
    return %c0_i32, %c0_i32_0 : i32, i32
  }
  func.func @transform_4(%arg0: i32) -> (i32, i32, i32) {
    %c0_i32 = arith.constant 0 : i32
    %c0_i32_0 = arith.constant 0 : i32
    %c0_i32_1 = arith.constant 0 : i32
    %c0_i32_2 = arith.constant 0 : i32
    return %c0_i32, %c0_i32_0, %c0_i32_1 : i32, i32, i32
  }
  func.func @transform_5(%arg0: i32) -> (i32, i32, i32) {
    %c0_i32 = arith.constant 0 : i32
    %c0_i32_0 = arith.constant 0 : i32
    %c0_i32_1 = arith.constant 0 : i32
    %c0_i32_2 = arith.constant 0 : i32
    return %c0_i32, %c0_i32_0, %c0_i32_1 : i32, i32, i32
  }
  func.func @transform_6(%arg0: i32) -> (i32, i32, i32) {
    %c0_i32 = arith.constant 0 : i32
    %c0_i32_0 = arith.constant 0 : i32
    %c0_i32_1 = arith.constant 0 : i32
    %c0_i32_2 = arith.constant 0 : i32
    return %c0_i32, %c0_i32_0, %c0_i32_1 : i32, i32, i32
  }
  func.func @transform_7(%arg0: i32) -> (i32, i32, i32) {
    %c0_i32 = arith.constant 0 : i32
    %c0_i32_0 = arith.constant 0 : i32
    %c0_i32_1 = arith.constant 0 : i32
    return %arg0, %c0_i32, %c0_i32_0 : i32, i32, i32
  }
  func.func @transform_8(%arg0: i32) -> (i32, i32, i32) {
    %c0_i32 = arith.constant 0 : i32
    %c0_i32_0 = arith.constant 0 : i32
    %c0_i32_1 = arith.constant 0 : i32
    return %arg0, %c0_i32, %c0_i32_0 : i32, i32, i32
  }
  func.func @transform_9(%arg0: i32) -> (i32, i32, i32) {
    %c0_i32 = arith.constant 0 : i32
    %c0_i32_0 = arith.constant 0 : i32
    %c0_i32_1 = arith.constant 0 : i32
    return %arg0, %c0_i32, %c0_i32_0 : i32, i32, i32
  }
  func.func @transform_10(%arg0: i32) -> (i32, i32, i32) {
    %c0_i32 = arith.constant 0 : i32
    %c0_i32_0 = arith.constant 0 : i32
    %c0_i32_1 = arith.constant 0 : i32
    return %arg0, %c0_i32, %c0_i32_0 : i32, i32, i32
  }
  func.func @transform_11(%arg0: i32) -> (i32, i32, i32) {
    %c0_i32 = arith.constant 0 : i32
    %c0_i32_0 = arith.constant 0 : i32
    %c0_i32_1 = arith.constant 0 : i32
    return %arg0, %c0_i32, %c0_i32_0 : i32, i32, i32
  }
}

module attributes {stable_mosaic.version = 11 : i64} {
  func.func @fused_iter_kernel(%arg0: i32, %arg1: memref<1x16x32xf32, #tpu.memory_space<vmem>>, %arg2: memref<1x16x32xf32, #tpu.memory_space<vmem>>, %arg3: memref<1x16x16xf32, #tpu.memory_space<vmem>>, %arg4: memref<1x16x16xf32, #tpu.memory_space<vmem>>, %arg5: memref<1x16x16xf32, #tpu.memory_space<vmem>>, %arg6: memref<4x32xf32, #tpu.memory_space<vmem>>, %arg7: memref<3x32x32xbf16, #tpu.memory_space<vmem>>, %arg8: memref<3x32x32xbf16, #tpu.memory_space<vmem>>, %arg9: memref<3x1x32xf32, #tpu.memory_space<vmem>>, %arg10: memref<1x16x16xf32, #tpu.memory_space<vmem>>, %arg11: memref<1x16x32xf32, #tpu.memory_space<vmem>>, %arg12: memref<1x1x32xf32, #tpu.memory_space<vmem>>, %arg13: memref<1x1x8xf32, #tpu.memory_space<vmem>>, %arg14: memref<16x128xf32, #tpu.memory_space<vmem>>) attributes {dimension_semantics = [#tpu.dimension_semantics<parallel>], iteration_bounds = array<i64: 2>, scalar_prefetch = 0 : i64, scratch_operands = 1 : i64, tpu.core_type = #tpu.core_type<tc>, window_params = [{transform_indices = @transform_0, window_bounds = array<i64: 1, 16, 32>}, {transform_indices = @transform_1, window_bounds = array<i64: 1, 16, 32>}, {transform_indices = @transform_2, window_bounds = array<i64: 1, 16, 16>}, {transform_indices = @transform_3, window_bounds = array<i64: 1, 16, 16>}, {transform_indices = @transform_4, window_bounds = array<i64: 1, 16, 16>}, {pipeline_mode = #tpu.pipeline_mode<synchronous>, transform_indices = @transform_5, window_bounds = array<i64: 4, 32>}, {pipeline_mode = #tpu.pipeline_mode<synchronous>, transform_indices = @transform_6, window_bounds = array<i64: 3, 32, 32>}, {pipeline_mode = #tpu.pipeline_mode<synchronous>, transform_indices = @transform_7, window_bounds = array<i64: 3, 32, 32>}, {pipeline_mode = #tpu.pipeline_mode<synchronous>, transform_indices = @transform_8, window_bounds = array<i64: 3, 1, 32>}, {transform_indices = @transform_9, window_bounds = array<i64: 1, 16, 16>}, {transform_indices = @transform_10, window_bounds = array<i64: 1, 16, 32>}, {transform_indices = @transform_11, window_bounds = array<i64: 1, 1, 32>}, {transform_indices = @transform_12, window_bounds = array<i64: 1, 1, 8>}]} {
    %c0 = arith.constant 0 : index
    %c0_0 = arith.constant 0 : index
    %c0_1 = arith.constant 0 : index
    %0 = vector.load %arg1[%c0, %c0_0, %c0_1] : memref<1x16x32xf32, #tpu.memory_space<vmem>>, vector<1x16x32xf32>
    %1 = vector.shape_cast %0 : vector<1x16x32xf32> to vector<16x32xf32>
    %c0_2 = arith.constant 0 : index
    %c0_3 = arith.constant 0 : index
    %c0_4 = arith.constant 0 : index
    %2 = vector.load %arg2[%c0_2, %c0_3, %c0_4] : memref<1x16x32xf32, #tpu.memory_space<vmem>>, vector<1x16x32xf32>
    %3 = vector.shape_cast %2 : vector<1x16x32xf32> to vector<16x32xf32>
    %c0_5 = arith.constant 0 : index
    %c0_6 = arith.constant 0 : index
    %4 = vector.load %arg6[%c0_5, %c0_6] : memref<4x32xf32, #tpu.memory_space<vmem>>, vector<1x32xf32>
    %5 = vector.broadcast %4 : vector<1x32xf32> to vector<16x32xf32>
    %6 = arith.mulf %1, %5 : vector<16x32xf32>
    %7 = arith.mulf %6, %6 : vector<16x32xf32>
    %cst = arith.constant dense<0.000000e+00> : vector<16xf32>
    %8 = vector.multi_reduction <add>, %7, %cst [1] : vector<16x32xf32> to vector<16xf32>
    %9 = vector.shape_cast %8 : vector<16xf32> to vector<16x1xf32>
    %cst_7 = arith.constant 1.000000e-16 : f32
    %10 = vector.broadcast %cst_7 : f32 to vector<16x1xf32>
    %11 = arith.addf %9, %10 : vector<16x1xf32>
    %12 = math.rsqrt %11 : vector<16x1xf32>
    %13 = vector.broadcast %12 : vector<16x1xf32> to vector<16x32xf32>
    %14 = arith.mulf %6, %13 : vector<16x32xf32>
    %c0_8 = arith.constant 0 : index
    %c0_9 = arith.constant 0 : index
    %15 = vector.load %arg14[%c0_8, %c0_9] : memref<16x128xf32, #tpu.memory_space<vmem>>, vector<16x32xf32>
    tpu.vector_store %arg14[%c0_8, %c0_9], %14 {strides = array<i32>} : memref<16x128xf32, #tpu.memory_space<vmem>>, vector<16x32xf32>,
    %c1 = arith.constant 1 : index
    %c0_10 = arith.constant 0 : index
    %16 = vector.load %arg6[%c1, %c0_10] : memref<4x32xf32, #tpu.memory_space<vmem>>, vector<1x32xf32>
    %17 = vector.broadcast %16 : vector<1x32xf32> to vector<16x32xf32>
    %18 = arith.mulf %1, %17 : vector<16x32xf32>
    %19 = arith.mulf %18, %18 : vector<16x32xf32>
    %cst_11 = arith.constant dense<0.000000e+00> : vector<16xf32>
    %20 = vector.multi_reduction <add>, %19, %cst_11 [1] : vector<16x32xf32> to vector<16xf32>
    %21 = vector.shape_cast %20 : vector<16xf32> to vector<16x1xf32>
    %cst_12 = arith.constant 1.000000e-16 : f32
    %22 = vector.broadcast %cst_12 : f32 to vector<16x1xf32>
    %23 = arith.addf %21, %22 : vector<16x1xf32>
    %24 = math.rsqrt %23 : vector<16x1xf32>
    %25 = vector.broadcast %24 : vector<16x1xf32> to vector<16x32xf32>
    %26 = arith.mulf %18, %25 : vector<16x32xf32>
    %c0_13 = arith.constant 0 : index
    %c32 = arith.constant 32 : index
    %27 = vector.load %arg14[%c0_13, %c32] : memref<16x128xf32, #tpu.memory_space<vmem>>, vector<16x32xf32>
    tpu.vector_store %arg14[%c0_13, %c32], %26 {strides = array<i32>} : memref<16x128xf32, #tpu.memory_space<vmem>>, vector<16x32xf32>,
    %c2 = arith.constant 2 : index
    %c0_14 = arith.constant 0 : index
    %28 = vector.load %arg6[%c2, %c0_14] : memref<4x32xf32, #tpu.memory_space<vmem>>, vector<1x32xf32>
    %29 = vector.broadcast %28 : vector<1x32xf32> to vector<16x32xf32>
    %30 = arith.mulf %1, %29 : vector<16x32xf32>
    %31 = arith.mulf %30, %30 : vector<16x32xf32>
    %cst_15 = arith.constant dense<0.000000e+00> : vector<16xf32>
    %32 = vector.multi_reduction <add>, %31, %cst_15 [1] : vector<16x32xf32> to vector<16xf32>
    %33 = vector.shape_cast %32 : vector<16xf32> to vector<16x1xf32>
    %cst_16 = arith.constant 1.000000e-16 : f32
    %34 = vector.broadcast %cst_16 : f32 to vector<16x1xf32>
    %35 = arith.addf %33, %34 : vector<16x1xf32>
    %36 = math.rsqrt %35 : vector<16x1xf32>
    %37 = vector.broadcast %36 : vector<16x1xf32> to vector<16x32xf32>
    %38 = arith.mulf %30, %37 : vector<16x32xf32>
    %c0_17 = arith.constant 0 : index
    %c64 = arith.constant 64 : index
    %39 = vector.load %arg14[%c0_17, %c64] : memref<16x128xf32, #tpu.memory_space<vmem>>, vector<16x32xf32>
    tpu.vector_store %arg14[%c0_17, %c64], %38 {strides = array<i32>} : memref<16x128xf32, #tpu.memory_space<vmem>>, vector<16x32xf32>,
    %c3 = arith.constant 3 : index
    %c0_18 = arith.constant 0 : index
    %40 = vector.load %arg6[%c3, %c0_18] : memref<4x32xf32, #tpu.memory_space<vmem>>, vector<1x32xf32>
    %41 = vector.broadcast %40 : vector<1x32xf32> to vector<16x32xf32>
    %42 = arith.mulf %1, %41 : vector<16x32xf32>
    %43 = arith.mulf %42, %42 : vector<16x32xf32>
    %cst_19 = arith.constant dense<0.000000e+00> : vector<16xf32>
    %44 = vector.multi_reduction <add>, %43, %cst_19 [1] : vector<16x32xf32> to vector<16xf32>
    %45 = vector.shape_cast %44 : vector<16xf32> to vector<16x1xf32>
    %cst_20 = arith.constant 1.000000e-16 : f32
    %46 = vector.broadcast %cst_20 : f32 to vector<16x1xf32>
    %47 = arith.addf %45, %46 : vector<16x1xf32>
    %48 = math.rsqrt %47 : vector<16x1xf32>
    %49 = vector.broadcast %48 : vector<16x1xf32> to vector<16x32xf32>
    %50 = arith.mulf %42, %49 : vector<16x32xf32>
    %c0_21 = arith.constant 0 : index
    %c96 = arith.constant 96 : index
    %51 = vector.load %arg14[%c0_21, %c96] : memref<16x128xf32, #tpu.memory_space<vmem>>, vector<16x32xf32>
    tpu.vector_store %arg14[%c0_21, %c96], %50 {strides = array<i32>} : memref<16x128xf32, #tpu.memory_space<vmem>>, vector<16x32xf32>,
    %c0_22 = arith.constant 0 : index
    %c0_23 = arith.constant 0 : index
    %52 = vector.load %arg14[%c0_22, %c0_23] : memref<16x128xf32, #tpu.memory_space<vmem>>, vector<16x128xf32>
    %53 = arith.truncf %52 : vector<16x128xf32> to vector<16x128xbf16>
    %cst_24 = arith.constant dense<0.000000e+00> : vector<16x16xf32>
    %54 = tpu.matmul %53, %53, %cst_24 {dimension_numbers = #tpu.dot_dimension_numbers<[1], [1], [0], [0], [0, 0, 1, 0], [], []>} : vector<16x128xbf16>, vector<16x128xbf16>, vector<16x16xf32> -> vector<16x16xf32>
    %cst_25 = arith.constant 2.500000e-01 : f32
    %55 = vector.broadcast %cst_25 : f32 to vector<16x16xf32>
    %56 = arith.mulf %54, %55 : vector<16x16xf32>
    %cst_26 = arith.constant 0.000000e+00 : f32
    %57 = vector.broadcast %cst_26 : f32 to vector<16x16xf32>
    %58 = arith.maximumf %56, %57 : vector<16x16xf32>
    %59 = vector.shape_cast %58 : vector<16x16xf32> to vector<1x16x16xf32>
    %cst_27 = arith.constant dense<0x7F800000> : vector<1xf32>
    %60 = vector.multi_reduction <minimumf>, %59, %cst_27 [1, 2] : vector<1x16x16xf32> to vector<1xf32>
    %61 = vector.shape_cast %60 : vector<1xf32> to vector<1x1x1xf32>
    %62 = vector.extract %61[0, 0, 0] : f32 from vector<1x1x1xf32>
    %63 = vector.shape_cast %58 : vector<16x16xf32> to vector<1x16x16xf32>
    %cst_28 = arith.constant dense<0xFF800000> : vector<1xf32>
    %64 = vector.multi_reduction <maximumf>, %63, %cst_28 [1, 2] : vector<1x16x16xf32> to vector<1xf32>
    %65 = vector.shape_cast %64 : vector<1xf32> to vector<1x1x1xf32>
    %66 = vector.extract %65[0, 0, 0] : f32 from vector<1x1x1xf32>
    %67 = vector.broadcast %62 : f32 to vector<16x16xf32>
    %68 = arith.subf %58, %67 : vector<16x16xf32>
    %69 = arith.subf %66, %62 : f32
    %cst_29 = arith.constant 9.99999993E-9 : f32
    %70 = arith.addf %69, %cst_29 : f32
    %71 = vector.broadcast %70 : f32 to vector<16x16xf32>
    %72 = arith.divf %68, %71 : vector<16x16xf32>
    %c0_30 = arith.constant 0 : index
    %c0_31 = arith.constant 0 : index
    %c0_32 = arith.constant 0 : index
    %73 = vector.load %arg4[%c0_30, %c0_31, %c0_32] : memref<1x16x16xf32, #tpu.memory_space<vmem>>, vector<1x16x16xf32>
    %74 = vector.shape_cast %73 : vector<1x16x16xf32> to vector<16x16xf32>
    %c0_33 = arith.constant 0 : index
    %c0_34 = arith.constant 0 : index
    %c0_35 = arith.constant 0 : index
    %75 = vector.load %arg5[%c0_33, %c0_34, %c0_35] : memref<1x16x16xf32, #tpu.memory_space<vmem>>, vector<1x16x16xf32>
    %76 = vector.shape_cast %75 : vector<1x16x16xf32> to vector<16x16xf32>
    %cst_36 = arith.constant 3.000000e-01 : f32
    %77 = vector.broadcast %cst_36 : f32 to vector<16x16xf32>
    %78 = arith.mulf %77, %76 : vector<16x16xf32>
    %cst_37 = arith.constant 4.000000e-01 : f32
    %79 = vector.broadcast %cst_37 : f32 to vector<16x16xf32>
    %80 = arith.mulf %79, %72 : vector<16x16xf32>
    %cst_38 = arith.constant 6.000000e-01 : f32
    %81 = vector.broadcast %cst_38 : f32 to vector<16x16xf32>
    %82 = arith.mulf %81, %74 : vector<16x16xf32>
    %83 = arith.addf %80, %82 : vector<16x16xf32>
    %cst_39 = arith.constant 6.000000e-01 : f32
    %84 = vector.broadcast %cst_39 : f32 to vector<16x16xf32>
    %85 = arith.mulf %84, %83 : vector<16x16xf32>
    %86 = arith.addf %78, %85 : vector<16x16xf32>
    %c0_40 = arith.constant 0 : index
    %c0_41 = arith.constant 0 : index
    %c0_42 = arith.constant 0 : index
    %87 = vector.load %arg10[%c0_40, %c0_41, %c0_42] : memref<1x16x16xf32, #tpu.memory_space<vmem>>, vector<1x16x16xf32>
    %88 = vector.shape_cast %87 : vector<1x16x16xf32> to vector<16x16xf32>
    %89 = vector.shape_cast %86 : vector<16x16xf32> to vector<1x16x16xf32>
    tpu.vector_store %arg10[%c0_40, %c0_41, %c0_42], %89 {strides = array<i32>} : memref<1x16x16xf32, #tpu.memory_space<vmem>>, vector<1x16x16xf32>,
    %90 = arith.truncf %86 : vector<16x16xf32> to vector<16x16xbf16>
    %91 = arith.truncf %1 : vector<16x32xf32> to vector<16x32xbf16>
    %cst_43 = arith.constant dense<0.000000e+00> : vector<16x32xf32>
    %92 = tpu.matmul %90, %91, %cst_43 {dimension_numbers = #tpu.dot_dimension_numbers<[1], [0], [0], [1], [0, 0, 1, 1], [], []>} : vector<16x16xbf16>, vector<16x32xbf16>, vector<16x32xf32> -> vector<16x32xf32>
    %93 = arith.truncf %92 : vector<16x32xf32> to vector<16x32xbf16>
    %c0_44 = arith.constant 0 : index
    %c0_45 = arith.constant 0 : index
    %c0_46 = arith.constant 0 : index
    %94 = vector.load %arg7[%c0_44, %c0_45, %c0_46] : memref<3x32x32xbf16, #tpu.memory_space<vmem>>, vector<3x32x32xbf16>
    %c0_47 = arith.constant 0 : index
    %c0_48 = arith.constant 0 : index
    %c0_49 = arith.constant 0 : index
    %95 = vector.load %arg8[%c0_47, %c0_48, %c0_49] : memref<3x32x32xbf16, #tpu.memory_space<vmem>>, vector<3x32x32xbf16>
    %c0_50 = arith.constant 0 : index
    %c0_51 = arith.constant 0 : index
    %c0_52 = arith.constant 0 : index
    %96 = vector.load %arg9[%c0_50, %c0_51, %c0_52] : memref<3x1x32xf32, #tpu.memory_space<vmem>>, vector<3x1x32xf32>
    %97 = vector.extract_strided_slice %94 {offsets = [0, 0, 0], sizes = [1, 32, 32], strides = [1, 1, 1]} : vector<3x32x32xbf16> to vector<1x32x32xbf16>
    %98 = vector.shape_cast %97 : vector<1x32x32xbf16> to vector<32x32xbf16>
    %cst_53 = arith.constant dense<0.000000e+00> : vector<16x32xf32>
    %99 = tpu.matmul %93, %98, %cst_53 {dimension_numbers = #tpu.dot_dimension_numbers<[1], [0], [0], [1], [0, 0, 1, 1], [], []>} : vector<16x32xbf16>, vector<32x32xbf16>, vector<16x32xf32> -> vector<16x32xf32>
    %100 = vector.extract_strided_slice %96 {offsets = [0, 0, 0], sizes = [1, 1, 32], strides = [1, 1, 1]} : vector<3x1x32xf32> to vector<1x1x32xf32>
    %101 = vector.shape_cast %100 : vector<1x1x32xf32> to vector<1x32xf32>
    %102 = vector.broadcast %101 : vector<1x32xf32> to vector<16x32xf32>
    %103 = arith.addf %99, %102 : vector<16x32xf32>
    %104 = vector.extract_strided_slice %95 {offsets = [0, 0, 0], sizes = [1, 32, 32], strides = [1, 1, 1]} : vector<3x32x32xbf16> to vector<1x32x32xbf16>
    %105 = vector.shape_cast %104 : vector<1x32x32xbf16> to vector<32x32xbf16>
    %cst_54 = arith.constant dense<0.000000e+00> : vector<16x32xf32>
    %106 = tpu.matmul %91, %105, %cst_54 {dimension_numbers = #tpu.dot_dimension_numbers<[1], [0], [0], [1], [0, 0, 1, 1], [], []>} : vector<16x32xbf16>, vector<32x32xbf16>, vector<16x32xf32> -> vector<16x32xf32>
    %107 = arith.addf %103, %106 : vector<16x32xf32>
    %108 = arith.negf %107 : vector<16x32xf32>
    %109 = math.exp %108 : vector<16x32xf32>
    %cst_55 = arith.constant 1.000000e+00 : f32
    %110 = vector.broadcast %cst_55 : f32 to vector<16x32xf32>
    %111 = arith.addf %110, %109 : vector<16x32xf32>
    %112 = arith.divf %110, %111 : vector<16x32xf32>
    %113 = vector.extract_strided_slice %94 {offsets = [1, 0, 0], sizes = [1, 32, 32], strides = [1, 1, 1]} : vector<3x32x32xbf16> to vector<1x32x32xbf16>
    %114 = vector.shape_cast %113 : vector<1x32x32xbf16> to vector<32x32xbf16>
    %cst_56 = arith.constant dense<0.000000e+00> : vector<16x32xf32>
    %115 = tpu.matmul %93, %114, %cst_56 {dimension_numbers = #tpu.dot_dimension_numbers<[1], [0], [0], [1], [0, 0, 1, 1], [], []>} : vector<16x32xbf16>, vector<32x32xbf16>, vector<16x32xf32> -> vector<16x32xf32>
    %116 = vector.extract_strided_slice %96 {offsets = [1, 0, 0], sizes = [1, 1, 32], strides = [1, 1, 1]} : vector<3x1x32xf32> to vector<1x1x32xf32>
    %117 = vector.shape_cast %116 : vector<1x1x32xf32> to vector<1x32xf32>
    %118 = vector.broadcast %117 : vector<1x32xf32> to vector<16x32xf32>
    %119 = arith.addf %115, %118 : vector<16x32xf32>
    %120 = vector.extract_strided_slice %95 {offsets = [1, 0, 0], sizes = [1, 32, 32], strides = [1, 1, 1]} : vector<3x32x32xbf16> to vector<1x32x32xbf16>
    %121 = vector.shape_cast %120 : vector<1x32x32xbf16> to vector<32x32xbf16>
    %cst_57 = arith.constant dense<0.000000e+00> : vector<16x32xf32>
    %122 = tpu.matmul %91, %121, %cst_57 {dimension_numbers = #tpu.dot_dimension_numbers<[1], [0], [0], [1], [0, 0, 1, 1], [], []>} : vector<16x32xbf16>, vector<32x32xbf16>, vector<16x32xf32> -> vector<16x32xf32>
    %123 = arith.addf %119, %122 : vector<16x32xf32>
    %124 = arith.negf %123 : vector<16x32xf32>
    %125 = math.exp %124 : vector<16x32xf32>
    %cst_58 = arith.constant 1.000000e+00 : f32
    %126 = vector.broadcast %cst_58 : f32 to vector<16x32xf32>
    %127 = arith.addf %126, %125 : vector<16x32xf32>
    %128 = arith.divf %126, %127 : vector<16x32xf32>
    %129 = vector.extract_strided_slice %94 {offsets = [2, 0, 0], sizes = [1, 32, 32], strides = [1, 1, 1]} : vector<3x32x32xbf16> to vector<1x32x32xbf16>
    %130 = vector.shape_cast %129 : vector<1x32x32xbf16> to vector<32x32xbf16>
    %cst_59 = arith.constant dense<0.000000e+00> : vector<16x32xf32>
    %131 = tpu.matmul %93, %130, %cst_59 {dimension_numbers = #tpu.dot_dimension_numbers<[1], [0], [0], [1], [0, 0, 1, 1], [], []>} : vector<16x32xbf16>, vector<32x32xbf16>, vector<16x32xf32> -> vector<16x32xf32>
    %132 = vector.extract_strided_slice %96 {offsets = [2, 0, 0], sizes = [1, 1, 32], strides = [1, 1, 1]} : vector<3x1x32xf32> to vector<1x1x32xf32>
    %133 = vector.shape_cast %132 : vector<1x1x32xf32> to vector<1x32xf32>
    %134 = vector.broadcast %133 : vector<1x32xf32> to vector<16x32xf32>
    %135 = arith.addf %131, %134 : vector<16x32xf32>
    %136 = arith.mulf %128, %1 : vector<16x32xf32>
    %137 = arith.truncf %136 : vector<16x32xf32> to vector<16x32xbf16>
    %138 = vector.extract_strided_slice %95 {offsets = [2, 0, 0], sizes = [1, 32, 32], strides = [1, 1, 1]} : vector<3x32x32xbf16> to vector<1x32x32xbf16>
    %139 = vector.shape_cast %138 : vector<1x32x32xbf16> to vector<32x32xbf16>
    %cst_60 = arith.constant dense<0.000000e+00> : vector<16x32xf32>
    %140 = tpu.matmul %137, %139, %cst_60 {dimension_numbers = #tpu.dot_dimension_numbers<[1], [0], [0], [1], [0, 0, 1, 1], [], []>} : vector<16x32xbf16>, vector<32x32xbf16>, vector<16x32xf32> -> vector<16x32xf32>
    %141 = arith.addf %135, %140 : vector<16x32xf32>
    %142 = math.tanh %141 : vector<16x32xf32>
    %cst_61 = arith.constant 1.000000e+00 : f32
    %143 = vector.broadcast %cst_61 : f32 to vector<16x32xf32>
    %144 = arith.subf %143, %112 : vector<16x32xf32>
    %145 = arith.mulf %144, %1 : vector<16x32xf32>
    %146 = arith.mulf %112, %142 : vector<16x32xf32>
    %147 = arith.addf %145, %146 : vector<16x32xf32>
    %c0_62 = arith.constant 0 : index
    %c0_63 = arith.constant 0 : index
    %c0_64 = arith.constant 0 : index
    %148 = vector.load %arg11[%c0_62, %c0_63, %c0_64] : memref<1x16x32xf32, #tpu.memory_space<vmem>>, vector<1x16x32xf32>
    %149 = vector.shape_cast %148 : vector<1x16x32xf32> to vector<16x32xf32>
    %150 = vector.shape_cast %147 : vector<16x32xf32> to vector<1x16x32xf32>
    tpu.vector_store %arg11[%c0_62, %c0_63, %c0_64], %150 {strides = array<i32>} : memref<1x16x32xf32, #tpu.memory_space<vmem>>, vector<1x16x32xf32>,
    %cst_65 = arith.constant dense<0.000000e+00> : vector<32xf32>
    %151 = vector.multi_reduction <add>, %147, %cst_65 [0] : vector<16x32xf32> to vector<32xf32>
    %152 = vector.shape_cast %151 : vector<32xf32> to vector<1x32xf32>
    %cst_66 = arith.constant 1.600000e+01 : f32
    %153 = vector.broadcast %cst_66 : f32 to vector<1x32xf32>
    %154 = arith.divf %152, %153 : vector<1x32xf32>
    %c0_67 = arith.constant 0 : index
    %c0_68 = arith.constant 0 : index
    %c0_69 = arith.constant 0 : index
    %155 = vector.load %arg12[%c0_67, %c0_68, %c0_69] : memref<1x1x32xf32, #tpu.memory_space<vmem>>, vector<1x1x32xf32>
    %156 = vector.shape_cast %155 : vector<1x1x32xf32> to vector<1x32xf32>
    %157 = vector.shape_cast %154 : vector<1x32xf32> to vector<1x1x32xf32>
    tpu.vector_store %arg12[%c0_67, %c0_68, %c0_69], %157 {strides = array<i32>} : memref<1x1x32xf32, #tpu.memory_space<vmem>>, vector<1x1x32xf32>,
    %cst_70 = arith.constant dense<0.000000e+00> : vector<16xf32>
    %158 = vector.multi_reduction <add>, %86, %cst_70 [1] : vector<16x16xf32> to vector<16xf32>
    %159 = vector.shape_cast %158 : vector<16xf32> to vector<16x1xf32>
    %160 = arith.truncf %3 : vector<16x32xf32> to vector<16x32xbf16>
    %cst_71 = arith.constant dense<0.000000e+00> : vector<16x32xf32>
    %161 = tpu.matmul %90, %160, %cst_71 {dimension_numbers = #tpu.dot_dimension_numbers<[1], [0], [0], [1], [0, 0, 1, 1], [], []>} : vector<16x16xbf16>, vector<16x32xbf16>, vector<16x32xf32> -> vector<16x32xf32>
    %162 = arith.mulf %3, %3 : vector<16x32xf32>
    %cst_72 = arith.constant dense<0.000000e+00> : vector<16xf32>
    %163 = vector.multi_reduction <add>, %162, %cst_72 [1] : vector<16x32xf32> to vector<16xf32>
    %164 = vector.shape_cast %163 : vector<16xf32> to vector<16x1xf32>
    %165 = arith.mulf %159, %164 : vector<16x1xf32>
    %166 = vector.shape_cast %165 : vector<16x1xf32> to vector<1x16x1xf32>
    %cst_73 = arith.constant dense<0.000000e+00> : vector<1xf32>
    %167 = vector.multi_reduction <add>, %166, %cst_73 [1, 2] : vector<1x16x1xf32> to vector<1xf32>
    %168 = vector.shape_cast %167 : vector<1xf32> to vector<1x1x1xf32>
    %169 = vector.extract %168[0, 0, 0] : f32 from vector<1x1x1xf32>
    %170 = arith.mulf %161, %3 : vector<16x32xf32>
    %171 = vector.shape_cast %170 : vector<16x32xf32> to vector<1x16x32xf32>
    %cst_74 = arith.constant dense<0.000000e+00> : vector<1xf32>
    %172 = vector.multi_reduction <add>, %171, %cst_74 [1, 2] : vector<1x16x32xf32> to vector<1xf32>
    %173 = vector.shape_cast %172 : vector<1xf32> to vector<1x1x1xf32>
    %174 = vector.extract %173[0, 0, 0] : f32 from vector<1x1x1xf32>
    %175 = arith.subf %169, %174 : f32
    %cst_75 = arith.constant 2.560000e+02 : f32
    %176 = arith.divf %175, %cst_75 : f32
    %cst_76 = arith.constant 0.000000e+00 : f32
    %177 = vector.broadcast %cst_76 : f32 to vector<16x1xf32>
    %178 = arith.maximumf %159, %177 : vector<16x1xf32>
    %cst_77 = arith.constant 9.99999993E-9 : f32
    %179 = vector.broadcast %cst_77 : f32 to vector<16x1xf32>
    %180 = arith.addf %178, %179 : vector<16x1xf32>
    %181 = math.log %180 : vector<16x1xf32>
    %182 = vector.shape_cast %181 : vector<16x1xf32> to vector<1x16x1xf32>
    %cst_78 = arith.constant dense<0.000000e+00> : vector<1xf32>
    %183 = vector.multi_reduction <add>, %182, %cst_78 [1, 2] : vector<1x16x1xf32> to vector<1xf32>
    %184 = vector.shape_cast %183 : vector<1xf32> to vector<1x1x1xf32>
    %185 = vector.extract %184[0, 0, 0] : f32 from vector<1x1x1xf32>
    %cst_79 = arith.constant 1.600000e+01 : f32
    %186 = arith.divf %185, %cst_79 : f32
    %cst_80 = arith.constant 0.000000e+00 : f32
    %187 = arith.subf %cst_80, %186 : f32
    %188 = arith.mulf %86, %86 : vector<16x16xf32>
    %189 = vector.shape_cast %188 : vector<16x16xf32> to vector<1x16x16xf32>
    %cst_81 = arith.constant dense<0.000000e+00> : vector<1xf32>
    %190 = vector.multi_reduction <add>, %189, %cst_81 [1, 2] : vector<1x16x16xf32> to vector<1xf32>
    %191 = vector.shape_cast %190 : vector<1xf32> to vector<1x1x1xf32>
    %192 = vector.extract %191[0, 0, 0] : f32 from vector<1x1x1xf32>
    %cst_82 = arith.constant 2.560000e+02 : f32
    %193 = arith.divf %192, %cst_82 : f32
    %c0_83 = arith.constant 0 : index
    %c0_84 = arith.constant 0 : index
    %c0_85 = arith.constant 0 : index
    %194 = vector.load %arg3[%c0_83, %c0_84, %c0_85] : memref<1x16x16xf32, #tpu.memory_space<vmem>>, vector<1x16x16xf32>
    %195 = vector.shape_cast %194 : vector<1x16x16xf32> to vector<16x16xf32>
    %196 = arith.subf %86, %195 : vector<16x16xf32>
    %197 = arith.mulf %196, %196 : vector<16x16xf32>
    %198 = vector.shape_cast %197 : vector<16x16xf32> to vector<1x16x16xf32>
    %cst_86 = arith.constant dense<0.000000e+00> : vector<1xf32>
    %199 = vector.multi_reduction <add>, %198, %cst_86 [1, 2] : vector<1x16x16xf32> to vector<1xf32>
    %200 = vector.shape_cast %199 : vector<1xf32> to vector<1x1x1xf32>
    %201 = vector.extract %200[0, 0, 0] : f32 from vector<1x1x1xf32>
    %202 = arith.mulf %74, %74 : vector<16x16xf32>
    %203 = vector.shape_cast %202 : vector<16x16xf32> to vector<1x16x16xf32>
    %cst_87 = arith.constant dense<0.000000e+00> : vector<1xf32>
    %204 = vector.multi_reduction <add>, %203, %cst_87 [1, 2] : vector<1x16x16xf32> to vector<1xf32>
    %205 = vector.shape_cast %204 : vector<1xf32> to vector<1x1x1xf32>
    %206 = vector.extract %205[0, 0, 0] : f32 from vector<1x1x1xf32>
    %207 = tpu.iota {dimensions = array<i32: 1>} : vector<1x8xi32>
    %c0_i32 = arith.constant 0 : i32
    %208 = vector.broadcast %c0_i32 : i32 to vector<1x8xi32>
    %209 = arith.cmpi eq, %207, %208 : vector<1x8xi32>
    %c1_i32 = arith.constant 1 : i32
    %210 = vector.broadcast %c1_i32 : i32 to vector<1x8xi32>
    %211 = arith.cmpi eq, %207, %210 : vector<1x8xi32>
    %c2_i32 = arith.constant 2 : i32
    %212 = vector.broadcast %c2_i32 : i32 to vector<1x8xi32>
    %213 = arith.cmpi eq, %207, %212 : vector<1x8xi32>
    %c3_i32 = arith.constant 3 : i32
    %214 = vector.broadcast %c3_i32 : i32 to vector<1x8xi32>
    %215 = arith.cmpi eq, %207, %214 : vector<1x8xi32>
    %c4_i32 = arith.constant 4 : i32
    %216 = vector.broadcast %c4_i32 : i32 to vector<1x8xi32>
    %217 = arith.cmpi eq, %207, %216 : vector<1x8xi32>
    %cst_88 = arith.constant 0.000000e+00 : f32
    %218 = vector.broadcast %206 : f32 to vector<1x8xf32>
    %219 = vector.broadcast %cst_88 : f32 to vector<1x8xf32>
    %220 = arith.select %217, %218, %219 : vector<1x8xi1>, vector<1x8xf32>
    %221 = vector.broadcast %201 : f32 to vector<1x8xf32>
    %222 = arith.select %215, %221, %220 : vector<1x8xi1>, vector<1x8xf32>
    %223 = vector.broadcast %193 : f32 to vector<1x8xf32>
    %224 = arith.select %213, %223, %222 : vector<1x8xi1>, vector<1x8xf32>
    %225 = vector.broadcast %187 : f32 to vector<1x8xf32>
    %226 = arith.select %211, %225, %224 : vector<1x8xi1>, vector<1x8xf32>
    %227 = vector.broadcast %176 : f32 to vector<1x8xf32>
    %228 = arith.select %209, %227, %226 : vector<1x8xi1>, vector<1x8xf32>
    %c0_89 = arith.constant 0 : index
    %c0_90 = arith.constant 0 : index
    %c0_91 = arith.constant 0 : index
    %229 = vector.load %arg13[%c0_89, %c0_90, %c0_91] : memref<1x1x8xf32, #tpu.memory_space<vmem>>, vector<1x1x8xf32>
    %230 = vector.shape_cast %229 : vector<1x1x8xf32> to vector<1x8xf32>
    %231 = vector.shape_cast %228 : vector<1x8xf32> to vector<1x1x8xf32>
    tpu.vector_store %arg13[%c0_89, %c0_90, %c0_91], %231 {strides = array<i32>} : memref<1x1x8xf32, #tpu.memory_space<vmem>>, vector<1x1x8xf32>,
    return
  }
  func.func @transform_0(%arg0: i32) -> (i32, i32, i32) {
    %c0_i32 = arith.constant 0 : i32
    %c0_i32_0 = arith.constant 0 : i32
    %c0_i32_1 = arith.constant 0 : i32
    return %arg0, %c0_i32, %c0_i32_0 : i32, i32, i32
  }
  func.func @transform_1(%arg0: i32) -> (i32, i32, i32) {
    %c0_i32 = arith.constant 0 : i32
    %c0_i32_0 = arith.constant 0 : i32
    %c0_i32_1 = arith.constant 0 : i32
    return %arg0, %c0_i32, %c0_i32_0 : i32, i32, i32
  }
  func.func @transform_2(%arg0: i32) -> (i32, i32, i32) {
    %c0_i32 = arith.constant 0 : i32
    %c0_i32_0 = arith.constant 0 : i32
    %c0_i32_1 = arith.constant 0 : i32
    return %arg0, %c0_i32, %c0_i32_0 : i32, i32, i32
  }
  func.func @transform_3(%arg0: i32) -> (i32, i32, i32) {
    %c0_i32 = arith.constant 0 : i32
    %c0_i32_0 = arith.constant 0 : i32
    %c0_i32_1 = arith.constant 0 : i32
    return %arg0, %c0_i32, %c0_i32_0 : i32, i32, i32
  }
  func.func @transform_4(%arg0: i32) -> (i32, i32, i32) {
    %c0_i32 = arith.constant 0 : i32
    %c0_i32_0 = arith.constant 0 : i32
    %c0_i32_1 = arith.constant 0 : i32
    return %arg0, %c0_i32, %c0_i32_0 : i32, i32, i32
  }
  func.func @transform_5(%arg0: i32) -> (i32, i32) {
    %c0_i32 = arith.constant 0 : i32
    %c0_i32_0 = arith.constant 0 : i32
    %c0_i32_1 = arith.constant 0 : i32
    return %c0_i32, %c0_i32_0 : i32, i32
  }
  func.func @transform_6(%arg0: i32) -> (i32, i32, i32) {
    %c0_i32 = arith.constant 0 : i32
    %c0_i32_0 = arith.constant 0 : i32
    %c0_i32_1 = arith.constant 0 : i32
    %c0_i32_2 = arith.constant 0 : i32
    return %c0_i32, %c0_i32_0, %c0_i32_1 : i32, i32, i32
  }
  func.func @transform_7(%arg0: i32) -> (i32, i32, i32) {
    %c0_i32 = arith.constant 0 : i32
    %c0_i32_0 = arith.constant 0 : i32
    %c0_i32_1 = arith.constant 0 : i32
    %c0_i32_2 = arith.constant 0 : i32
    return %c0_i32, %c0_i32_0, %c0_i32_1 : i32, i32, i32
  }
  func.func @transform_8(%arg0: i32) -> (i32, i32, i32) {
    %c0_i32 = arith.constant 0 : i32
    %c0_i32_0 = arith.constant 0 : i32
    %c0_i32_1 = arith.constant 0 : i32
    %c0_i32_2 = arith.constant 0 : i32
    return %c0_i32, %c0_i32_0, %c0_i32_1 : i32, i32, i32
  }
  func.func @transform_9(%arg0: i32) -> (i32, i32, i32) {
    %c0_i32 = arith.constant 0 : i32
    %c0_i32_0 = arith.constant 0 : i32
    %c0_i32_1 = arith.constant 0 : i32
    return %arg0, %c0_i32, %c0_i32_0 : i32, i32, i32
  }
  func.func @transform_10(%arg0: i32) -> (i32, i32, i32) {
    %c0_i32 = arith.constant 0 : i32
    %c0_i32_0 = arith.constant 0 : i32
    %c0_i32_1 = arith.constant 0 : i32
    return %arg0, %c0_i32, %c0_i32_0 : i32, i32, i32
  }
  func.func @transform_11(%arg0: i32) -> (i32, i32, i32) {
    %c0_i32 = arith.constant 0 : i32
    %c0_i32_0 = arith.constant 0 : i32
    %c0_i32_1 = arith.constant 0 : i32
    return %arg0, %c0_i32, %c0_i32_0 : i32, i32, i32
  }
  func.func @transform_12(%arg0: i32) -> (i32, i32, i32) {
    %c0_i32 = arith.constant 0 : i32
    %c0_i32_0 = arith.constant 0 : i32
    %c0_i32_1 = arith.constant 0 : i32
    return %arg0, %c0_i32, %c0_i32_0 : i32, i32, i32
  }
}

module attributes {stable_mosaic.version = 11 : i64} {
  func.func @fused_iter_kernel(%arg0: i32, %arg1: memref<1x16x32xf32, #tpu.memory_space<vmem>>, %arg2: memref<1x16x32xf32, #tpu.memory_space<vmem>>, %arg3: memref<1x16x16xf32, #tpu.memory_space<vmem>>, %arg4: memref<1x16x16xf32, #tpu.memory_space<vmem>>, %arg5: memref<1x16x16xf32, #tpu.memory_space<vmem>>, %arg6: memref<4x32xf32, #tpu.memory_space<vmem>>, %arg7: memref<3x32x32xbf16, #tpu.memory_space<vmem>>, %arg8: memref<3x32x32xbf16, #tpu.memory_space<vmem>>, %arg9: memref<3x1x32xf32, #tpu.memory_space<vmem>>, %arg10: memref<1x16x16xf32, #tpu.memory_space<vmem>>, %arg11: memref<1x16x32xf32, #tpu.memory_space<vmem>>, %arg12: memref<1x1x32xf32, #tpu.memory_space<vmem>>, %arg13: memref<1x1x8xf32, #tpu.memory_space<vmem>>, %arg14: memref<16x128xf32, #tpu.memory_space<vmem>>) attributes {dimension_semantics = [#tpu.dimension_semantics<parallel>], iteration_bounds = array<i64: 2>, scalar_prefetch = 0 : i64, scratch_operands = 1 : i64, tpu.core_type = #tpu.core_type<tc>, window_params = [{transform_indices = @transform_0, window_bounds = array<i64: 1, 16, 32>}, {transform_indices = @transform_1, window_bounds = array<i64: 1, 16, 32>}, {transform_indices = @transform_2, window_bounds = array<i64: 1, 16, 16>}, {transform_indices = @transform_3, window_bounds = array<i64: 1, 16, 16>}, {transform_indices = @transform_4, window_bounds = array<i64: 1, 16, 16>}, {pipeline_mode = #tpu.pipeline_mode<synchronous>, transform_indices = @transform_5, window_bounds = array<i64: 4, 32>}, {pipeline_mode = #tpu.pipeline_mode<synchronous>, transform_indices = @transform_6, window_bounds = array<i64: 3, 32, 32>}, {pipeline_mode = #tpu.pipeline_mode<synchronous>, transform_indices = @transform_7, window_bounds = array<i64: 3, 32, 32>}, {pipeline_mode = #tpu.pipeline_mode<synchronous>, transform_indices = @transform_8, window_bounds = array<i64: 3, 1, 32>}, {transform_indices = @transform_9, window_bounds = array<i64: 1, 16, 16>}, {transform_indices = @transform_10, window_bounds = array<i64: 1, 16, 32>}, {transform_indices = @transform_11, window_bounds = array<i64: 1, 1, 32>}, {transform_indices = @transform_12, window_bounds = array<i64: 1, 1, 8>}]} {
    %c0 = arith.constant 0 : index
    %c0_0 = arith.constant 0 : index
    %c0_1 = arith.constant 0 : index
    %0 = vector.load %arg1[%c0, %c0_0, %c0_1] : memref<1x16x32xf32, #tpu.memory_space<vmem>>, vector<1x16x32xf32>
    %1 = vector.shape_cast %0 : vector<1x16x32xf32> to vector<16x32xf32>
    %c0_2 = arith.constant 0 : index
    %c0_3 = arith.constant 0 : index
    %c0_4 = arith.constant 0 : index
    %2 = vector.load %arg2[%c0_2, %c0_3, %c0_4] : memref<1x16x32xf32, #tpu.memory_space<vmem>>, vector<1x16x32xf32>
    %3 = vector.shape_cast %2 : vector<1x16x32xf32> to vector<16x32xf32>
    %c0_5 = arith.constant 0 : index
    %c0_6 = arith.constant 0 : index
    %4 = vector.load %arg6[%c0_5, %c0_6] : memref<4x32xf32, #tpu.memory_space<vmem>>, vector<1x32xf32>
    %5 = vector.broadcast %4 : vector<1x32xf32> to vector<16x32xf32>
    %6 = arith.mulf %1, %5 : vector<16x32xf32>
    %7 = arith.mulf %6, %6 : vector<16x32xf32>
    %cst = arith.constant dense<0.000000e+00> : vector<16xf32>
    %8 = vector.multi_reduction <add>, %7, %cst [1] : vector<16x32xf32> to vector<16xf32>
    %9 = vector.shape_cast %8 : vector<16xf32> to vector<16x1xf32>
    %cst_7 = arith.constant 1.000000e-16 : f32
    %10 = vector.broadcast %cst_7 : f32 to vector<16x1xf32>
    %11 = arith.addf %9, %10 : vector<16x1xf32>
    %12 = math.rsqrt %11 : vector<16x1xf32>
    %13 = vector.broadcast %12 : vector<16x1xf32> to vector<16x32xf32>
    %14 = arith.mulf %6, %13 : vector<16x32xf32>
    %c0_8 = arith.constant 0 : index
    %c0_9 = arith.constant 0 : index
    %15 = vector.load %arg14[%c0_8, %c0_9] : memref<16x128xf32, #tpu.memory_space<vmem>>, vector<16x32xf32>
    tpu.vector_store %arg14[%c0_8, %c0_9], %14 {strides = array<i32>} : memref<16x128xf32, #tpu.memory_space<vmem>>, vector<16x32xf32>,
    %c1 = arith.constant 1 : index
    %c0_10 = arith.constant 0 : index
    %16 = vector.load %arg6[%c1, %c0_10] : memref<4x32xf32, #tpu.memory_space<vmem>>, vector<1x32xf32>
    %17 = vector.broadcast %16 : vector<1x32xf32> to vector<16x32xf32>
    %18 = arith.mulf %1, %17 : vector<16x32xf32>
    %19 = arith.mulf %18, %18 : vector<16x32xf32>
    %cst_11 = arith.constant dense<0.000000e+00> : vector<16xf32>
    %20 = vector.multi_reduction <add>, %19, %cst_11 [1] : vector<16x32xf32> to vector<16xf32>
    %21 = vector.shape_cast %20 : vector<16xf32> to vector<16x1xf32>
    %cst_12 = arith.constant 1.000000e-16 : f32
    %22 = vector.broadcast %cst_12 : f32 to vector<16x1xf32>
    %23 = arith.addf %21, %22 : vector<16x1xf32>
    %24 = math.rsqrt %23 : vector<16x1xf32>
    %25 = vector.broadcast %24 : vector<16x1xf32> to vector<16x32xf32>
    %26 = arith.mulf %18, %25 : vector<16x32xf32>
    %c0_13 = arith.constant 0 : index
    %c32 = arith.constant 32 : index
    %27 = vector.load %arg14[%c0_13, %c32] : memref<16x128xf32, #tpu.memory_space<vmem>>, vector<16x32xf32>
    tpu.vector_store %arg14[%c0_13, %c32], %26 {strides = array<i32>} : memref<16x128xf32, #tpu.memory_space<vmem>>, vector<16x32xf32>,
    %c2 = arith.constant 2 : index
    %c0_14 = arith.constant 0 : index
    %28 = vector.load %arg6[%c2, %c0_14] : memref<4x32xf32, #tpu.memory_space<vmem>>, vector<1x32xf32>
    %29 = vector.broadcast %28 : vector<1x32xf32> to vector<16x32xf32>
    %30 = arith.mulf %1, %29 : vector<16x32xf32>
    %31 = arith.mulf %30, %30 : vector<16x32xf32>
    %cst_15 = arith.constant dense<0.000000e+00> : vector<16xf32>
    %32 = vector.multi_reduction <add>, %31, %cst_15 [1] : vector<16x32xf32> to vector<16xf32>
    %33 = vector.shape_cast %32 : vector<16xf32> to vector<16x1xf32>
    %cst_16 = arith.constant 1.000000e-16 : f32
    %34 = vector.broadcast %cst_16 : f32 to vector<16x1xf32>
    %35 = arith.addf %33, %34 : vector<16x1xf32>
    %36 = math.rsqrt %35 : vector<16x1xf32>
    %37 = vector.broadcast %36 : vector<16x1xf32> to vector<16x32xf32>
    %38 = arith.mulf %30, %37 : vector<16x32xf32>
    %c0_17 = arith.constant 0 : index
    %c64 = arith.constant 64 : index
    %39 = vector.load %arg14[%c0_17, %c64] : memref<16x128xf32, #tpu.memory_space<vmem>>, vector<16x32xf32>
    tpu.vector_store %arg14[%c0_17, %c64], %38 {strides = array<i32>} : memref<16x128xf32, #tpu.memory_space<vmem>>, vector<16x32xf32>,
    %c3 = arith.constant 3 : index
    %c0_18 = arith.constant 0 : index
    %40 = vector.load %arg6[%c3, %c0_18] : memref<4x32xf32, #tpu.memory_space<vmem>>, vector<1x32xf32>
    %41 = vector.broadcast %40 : vector<1x32xf32> to vector<16x32xf32>
    %42 = arith.mulf %1, %41 : vector<16x32xf32>
    %43 = arith.mulf %42, %42 : vector<16x32xf32>
    %cst_19 = arith.constant dense<0.000000e+00> : vector<16xf32>
    %44 = vector.multi_reduction <add>, %43, %cst_19 [1] : vector<16x32xf32> to vector<16xf32>
    %45 = vector.shape_cast %44 : vector<16xf32> to vector<16x1xf32>
    %cst_20 = arith.constant 1.000000e-16 : f32
    %46 = vector.broadcast %cst_20 : f32 to vector<16x1xf32>
    %47 = arith.addf %45, %46 : vector<16x1xf32>
    %48 = math.rsqrt %47 : vector<16x1xf32>
    %49 = vector.broadcast %48 : vector<16x1xf32> to vector<16x32xf32>
    %50 = arith.mulf %42, %49 : vector<16x32xf32>
    %c0_21 = arith.constant 0 : index
    %c96 = arith.constant 96 : index
    %51 = vector.load %arg14[%c0_21, %c96] : memref<16x128xf32, #tpu.memory_space<vmem>>, vector<16x32xf32>
    tpu.vector_store %arg14[%c0_21, %c96], %50 {strides = array<i32>} : memref<16x128xf32, #tpu.memory_space<vmem>>, vector<16x32xf32>,
    %c0_22 = arith.constant 0 : index
    %c0_23 = arith.constant 0 : index
    %52 = vector.load %arg14[%c0_22, %c0_23] : memref<16x128xf32, #tpu.memory_space<vmem>>, vector<16x128xf32>
    %53 = arith.truncf %52 : vector<16x128xf32> to vector<16x128xbf16>
    %cst_24 = arith.constant dense<0.000000e+00> : vector<16x16xf32>
    %54 = tpu.matmul %53, %53, %cst_24 {dimension_numbers = #tpu.dot_dimension_numbers<[1], [1], [0], [0], [0, 0, 1, 0], [], []>} : vector<16x128xbf16>, vector<16x128xbf16>, vector<16x16xf32> -> vector<16x16xf32>
    %cst_25 = arith.constant 2.500000e-01 : f32
    %55 = vector.broadcast %cst_25 : f32 to vector<16x16xf32>
    %56 = arith.mulf %54, %55 : vector<16x16xf32>
    %cst_26 = arith.constant 0.000000e+00 : f32
    %57 = vector.broadcast %cst_26 : f32 to vector<16x16xf32>
    %58 = arith.maximumf %56, %57 : vector<16x16xf32>
    %59 = vector.shape_cast %58 : vector<16x16xf32> to vector<1x16x16xf32>
    %cst_27 = arith.constant dense<0x7F800000> : vector<1xf32>
    %60 = vector.multi_reduction <minimumf>, %59, %cst_27 [1, 2] : vector<1x16x16xf32> to vector<1xf32>
    %61 = vector.shape_cast %60 : vector<1xf32> to vector<1x1x1xf32>
    %62 = vector.extract %61[0, 0, 0] : f32 from vector<1x1x1xf32>
    %63 = vector.shape_cast %58 : vector<16x16xf32> to vector<1x16x16xf32>
    %cst_28 = arith.constant dense<0xFF800000> : vector<1xf32>
    %64 = vector.multi_reduction <maximumf>, %63, %cst_28 [1, 2] : vector<1x16x16xf32> to vector<1xf32>
    %65 = vector.shape_cast %64 : vector<1xf32> to vector<1x1x1xf32>
    %66 = vector.extract %65[0, 0, 0] : f32 from vector<1x1x1xf32>
    %67 = vector.broadcast %62 : f32 to vector<16x16xf32>
    %68 = arith.subf %58, %67 : vector<16x16xf32>
    %69 = arith.subf %66, %62 : f32
    %cst_29 = arith.constant 9.99999993E-9 : f32
    %70 = arith.addf %69, %cst_29 : f32
    %71 = vector.broadcast %70 : f32 to vector<16x16xf32>
    %72 = arith.divf %68, %71 : vector<16x16xf32>
    %c0_30 = arith.constant 0 : index
    %c0_31 = arith.constant 0 : index
    %c0_32 = arith.constant 0 : index
    %73 = vector.load %arg4[%c0_30, %c0_31, %c0_32] : memref<1x16x16xf32, #tpu.memory_space<vmem>>, vector<1x16x16xf32>
    %74 = vector.shape_cast %73 : vector<1x16x16xf32> to vector<16x16xf32>
    %c0_33 = arith.constant 0 : index
    %c0_34 = arith.constant 0 : index
    %c0_35 = arith.constant 0 : index
    %75 = vector.load %arg5[%c0_33, %c0_34, %c0_35] : memref<1x16x16xf32, #tpu.memory_space<vmem>>, vector<1x16x16xf32>
    %76 = vector.shape_cast %75 : vector<1x16x16xf32> to vector<16x16xf32>
    %cst_36 = arith.constant 3.000000e-01 : f32
    %77 = vector.broadcast %cst_36 : f32 to vector<16x16xf32>
    %78 = arith.mulf %77, %76 : vector<16x16xf32>
    %cst_37 = arith.constant 4.000000e-01 : f32
    %79 = vector.broadcast %cst_37 : f32 to vector<16x16xf32>
    %80 = arith.mulf %79, %72 : vector<16x16xf32>
    %cst_38 = arith.constant 6.000000e-01 : f32
    %81 = vector.broadcast %cst_38 : f32 to vector<16x16xf32>
    %82 = arith.mulf %81, %74 : vector<16x16xf32>
    %83 = arith.addf %80, %82 : vector<16x16xf32>
    %cst_39 = arith.constant 6.000000e-01 : f32
    %84 = vector.broadcast %cst_39 : f32 to vector<16x16xf32>
    %85 = arith.mulf %84, %83 : vector<16x16xf32>
    %86 = arith.addf %78, %85 : vector<16x16xf32>
    %c0_40 = arith.constant 0 : index
    %c0_41 = arith.constant 0 : index
    %c0_42 = arith.constant 0 : index
    %87 = vector.load %arg10[%c0_40, %c0_41, %c0_42] : memref<1x16x16xf32, #tpu.memory_space<vmem>>, vector<1x16x16xf32>
    %88 = vector.shape_cast %87 : vector<1x16x16xf32> to vector<16x16xf32>
    %89 = vector.shape_cast %86 : vector<16x16xf32> to vector<1x16x16xf32>
    tpu.vector_store %arg10[%c0_40, %c0_41, %c0_42], %89 {strides = array<i32>} : memref<1x16x16xf32, #tpu.memory_space<vmem>>, vector<1x16x16xf32>,
    %90 = arith.truncf %86 : vector<16x16xf32> to vector<16x16xbf16>
    %91 = arith.truncf %1 : vector<16x32xf32> to vector<16x32xbf16>
    %cst_43 = arith.constant dense<0.000000e+00> : vector<16x32xf32>
    %92 = tpu.matmul %90, %91, %cst_43 {dimension_numbers = #tpu.dot_dimension_numbers<[1], [0], [0], [1], [0, 0, 1, 1], [], []>} : vector<16x16xbf16>, vector<16x32xbf16>, vector<16x32xf32> -> vector<16x32xf32>
    %93 = arith.truncf %92 : vector<16x32xf32> to vector<16x32xbf16>
    %c0_44 = arith.constant 0 : index
    %c0_45 = arith.constant 0 : index
    %c0_46 = arith.constant 0 : index
    %94 = vector.load %arg7[%c0_44, %c0_45, %c0_46] : memref<3x32x32xbf16, #tpu.memory_space<vmem>>, vector<3x32x32xbf16>
    %c0_47 = arith.constant 0 : index
    %c0_48 = arith.constant 0 : index
    %c0_49 = arith.constant 0 : index
    %95 = vector.load %arg8[%c0_47, %c0_48, %c0_49] : memref<3x32x32xbf16, #tpu.memory_space<vmem>>, vector<3x32x32xbf16>
    %c0_50 = arith.constant 0 : index
    %c0_51 = arith.constant 0 : index
    %c0_52 = arith.constant 0 : index
    %96 = vector.load %arg9[%c0_50, %c0_51, %c0_52] : memref<3x1x32xf32, #tpu.memory_space<vmem>>, vector<3x1x32xf32>
    %97 = vector.extract_strided_slice %94 {offsets = [0, 0, 0], sizes = [1, 32, 32], strides = [1, 1, 1]} : vector<3x32x32xbf16> to vector<1x32x32xbf16>
    %98 = vector.shape_cast %97 : vector<1x32x32xbf16> to vector<32x32xbf16>
    %cst_53 = arith.constant dense<0.000000e+00> : vector<16x32xf32>
    %99 = tpu.matmul %93, %98, %cst_53 {dimension_numbers = #tpu.dot_dimension_numbers<[1], [0], [0], [1], [0, 0, 1, 1], [], []>} : vector<16x32xbf16>, vector<32x32xbf16>, vector<16x32xf32> -> vector<16x32xf32>
    %100 = vector.extract_strided_slice %96 {offsets = [0, 0, 0], sizes = [1, 1, 32], strides = [1, 1, 1]} : vector<3x1x32xf32> to vector<1x1x32xf32>
    %101 = vector.shape_cast %100 : vector<1x1x32xf32> to vector<1x32xf32>
    %102 = vector.broadcast %101 : vector<1x32xf32> to vector<16x32xf32>
    %103 = arith.addf %99, %102 : vector<16x32xf32>
    %104 = vector.extract_strided_slice %95 {offsets = [0, 0, 0], sizes = [1, 32, 32], strides = [1, 1, 1]} : vector<3x32x32xbf16> to vector<1x32x32xbf16>
    %105 = vector.shape_cast %104 : vector<1x32x32xbf16> to vector<32x32xbf16>
    %cst_54 = arith.constant dense<0.000000e+00> : vector<16x32xf32>
    %106 = tpu.matmul %91, %105, %cst_54 {dimension_numbers = #tpu.dot_dimension_numbers<[1], [0], [0], [1], [0, 0, 1, 1], [], []>} : vector<16x32xbf16>, vector<32x32xbf16>, vector<16x32xf32> -> vector<16x32xf32>
    %107 = arith.addf %103, %106 : vector<16x32xf32>
    %108 = arith.negf %107 : vector<16x32xf32>
    %109 = math.exp %108 : vector<16x32xf32>
    %cst_55 = arith.constant 1.000000e+00 : f32
    %110 = vector.broadcast %cst_55 : f32 to vector<16x32xf32>
    %111 = arith.addf %110, %109 : vector<16x32xf32>
    %112 = arith.divf %110, %111 : vector<16x32xf32>
    %113 = vector.extract_strided_slice %94 {offsets = [1, 0, 0], sizes = [1, 32, 32], strides = [1, 1, 1]} : vector<3x32x32xbf16> to vector<1x32x32xbf16>
    %114 = vector.shape_cast %113 : vector<1x32x32xbf16> to vector<32x32xbf16>
    %cst_56 = arith.constant dense<0.000000e+00> : vector<16x32xf32>
    %115 = tpu.matmul %93, %114, %cst_56 {dimension_numbers = #tpu.dot_dimension_numbers<[1], [0], [0], [1], [0, 0, 1, 1], [], []>} : vector<16x32xbf16>, vector<32x32xbf16>, vector<16x32xf32> -> vector<16x32xf32>
    %116 = vector.extract_strided_slice %96 {offsets = [1, 0, 0], sizes = [1, 1, 32], strides = [1, 1, 1]} : vector<3x1x32xf32> to vector<1x1x32xf32>
    %117 = vector.shape_cast %116 : vector<1x1x32xf32> to vector<1x32xf32>
    %118 = vector.broadcast %117 : vector<1x32xf32> to vector<16x32xf32>
    %119 = arith.addf %115, %118 : vector<16x32xf32>
    %120 = vector.extract_strided_slice %95 {offsets = [1, 0, 0], sizes = [1, 32, 32], strides = [1, 1, 1]} : vector<3x32x32xbf16> to vector<1x32x32xbf16>
    %121 = vector.shape_cast %120 : vector<1x32x32xbf16> to vector<32x32xbf16>
    %cst_57 = arith.constant dense<0.000000e+00> : vector<16x32xf32>
    %122 = tpu.matmul %91, %121, %cst_57 {dimension_numbers = #tpu.dot_dimension_numbers<[1], [0], [0], [1], [0, 0, 1, 1], [], []>} : vector<16x32xbf16>, vector<32x32xbf16>, vector<16x32xf32> -> vector<16x32xf32>
    %123 = arith.addf %119, %122 : vector<16x32xf32>
    %124 = arith.negf %123 : vector<16x32xf32>
    %125 = math.exp %124 : vector<16x32xf32>
    %cst_58 = arith.constant 1.000000e+00 : f32
    %126 = vector.broadcast %cst_58 : f32 to vector<16x32xf32>
    %127 = arith.addf %126, %125 : vector<16x32xf32>
    %128 = arith.divf %126, %127 : vector<16x32xf32>
    %129 = vector.extract_strided_slice %94 {offsets = [2, 0, 0], sizes = [1, 32, 32], strides = [1, 1, 1]} : vector<3x32x32xbf16> to vector<1x32x32xbf16>
    %130 = vector.shape_cast %129 : vector<1x32x32xbf16> to vector<32x32xbf16>
    %cst_59 = arith.constant dense<0.000000e+00> : vector<16x32xf32>
    %131 = tpu.matmul %93, %130, %cst_59 {dimension_numbers = #tpu.dot_dimension_numbers<[1], [0], [0], [1], [0, 0, 1, 1], [], []>} : vector<16x32xbf16>, vector<32x32xbf16>, vector<16x32xf32> -> vector<16x32xf32>
    %132 = vector.extract_strided_slice %96 {offsets = [2, 0, 0], sizes = [1, 1, 32], strides = [1, 1, 1]} : vector<3x1x32xf32> to vector<1x1x32xf32>
    %133 = vector.shape_cast %132 : vector<1x1x32xf32> to vector<1x32xf32>
    %134 = vector.broadcast %133 : vector<1x32xf32> to vector<16x32xf32>
    %135 = arith.addf %131, %134 : vector<16x32xf32>
    %136 = arith.mulf %128, %1 : vector<16x32xf32>
    %137 = arith.truncf %136 : vector<16x32xf32> to vector<16x32xbf16>
    %138 = vector.extract_strided_slice %95 {offsets = [2, 0, 0], sizes = [1, 32, 32], strides = [1, 1, 1]} : vector<3x32x32xbf16> to vector<1x32x32xbf16>
    %139 = vector.shape_cast %138 : vector<1x32x32xbf16> to vector<32x32xbf16>
    %cst_60 = arith.constant dense<0.000000e+00> : vector<16x32xf32>
    %140 = tpu.matmul %137, %139, %cst_60 {dimension_numbers = #tpu.dot_dimension_numbers<[1], [0], [0], [1], [0, 0, 1, 1], [], []>} : vector<16x32xbf16>, vector<32x32xbf16>, vector<16x32xf32> -> vector<16x32xf32>
    %141 = arith.addf %135, %140 : vector<16x32xf32>
    %142 = math.tanh %141 : vector<16x32xf32>
    %cst_61 = arith.constant 1.000000e+00 : f32
    %143 = vector.broadcast %cst_61 : f32 to vector<16x32xf32>
    %144 = arith.subf %143, %112 : vector<16x32xf32>
    %145 = arith.mulf %144, %1 : vector<16x32xf32>
    %146 = arith.mulf %112, %142 : vector<16x32xf32>
    %147 = arith.addf %145, %146 : vector<16x32xf32>
    %c0_62 = arith.constant 0 : index
    %c0_63 = arith.constant 0 : index
    %c0_64 = arith.constant 0 : index
    %148 = vector.load %arg11[%c0_62, %c0_63, %c0_64] : memref<1x16x32xf32, #tpu.memory_space<vmem>>, vector<1x16x32xf32>
    %149 = vector.shape_cast %148 : vector<1x16x32xf32> to vector<16x32xf32>
    %150 = vector.shape_cast %147 : vector<16x32xf32> to vector<1x16x32xf32>
    tpu.vector_store %arg11[%c0_62, %c0_63, %c0_64], %150 {strides = array<i32>} : memref<1x16x32xf32, #tpu.memory_space<vmem>>, vector<1x16x32xf32>,
    %cst_65 = arith.constant dense<0.000000e+00> : vector<32xf32>
    %151 = vector.multi_reduction <add>, %147, %cst_65 [0] : vector<16x32xf32> to vector<32xf32>
    %152 = vector.shape_cast %151 : vector<32xf32> to vector<1x32xf32>
    %cst_66 = arith.constant 1.600000e+01 : f32
    %153 = vector.broadcast %cst_66 : f32 to vector<1x32xf32>
    %154 = arith.divf %152, %153 : vector<1x32xf32>
    %c0_67 = arith.constant 0 : index
    %c0_68 = arith.constant 0 : index
    %c0_69 = arith.constant 0 : index
    %155 = vector.load %arg12[%c0_67, %c0_68, %c0_69] : memref<1x1x32xf32, #tpu.memory_space<vmem>>, vector<1x1x32xf32>
    %156 = vector.shape_cast %155 : vector<1x1x32xf32> to vector<1x32xf32>
    %157 = vector.shape_cast %154 : vector<1x32xf32> to vector<1x1x32xf32>
    tpu.vector_store %arg12[%c0_67, %c0_68, %c0_69], %157 {strides = array<i32>} : memref<1x1x32xf32, #tpu.memory_space<vmem>>, vector<1x1x32xf32>,
    %cst_70 = arith.constant dense<0.000000e+00> : vector<16xf32>
    %158 = vector.multi_reduction <add>, %86, %cst_70 [1] : vector<16x16xf32> to vector<16xf32>
    %159 = vector.shape_cast %158 : vector<16xf32> to vector<16x1xf32>
    %160 = arith.truncf %3 : vector<16x32xf32> to vector<16x32xbf16>
    %cst_71 = arith.constant dense<0.000000e+00> : vector<16x32xf32>
    %161 = tpu.matmul %90, %160, %cst_71 {dimension_numbers = #tpu.dot_dimension_numbers<[1], [0], [0], [1], [0, 0, 1, 1], [], []>} : vector<16x16xbf16>, vector<16x32xbf16>, vector<16x32xf32> -> vector<16x32xf32>
    %162 = arith.mulf %3, %3 : vector<16x32xf32>
    %cst_72 = arith.constant dense<0.000000e+00> : vector<16xf32>
    %163 = vector.multi_reduction <add>, %162, %cst_72 [1] : vector<16x32xf32> to vector<16xf32>
    %164 = vector.shape_cast %163 : vector<16xf32> to vector<16x1xf32>
    %165 = arith.mulf %159, %164 : vector<16x1xf32>
    %166 = vector.shape_cast %165 : vector<16x1xf32> to vector<1x16x1xf32>
    %cst_73 = arith.constant dense<0.000000e+00> : vector<1xf32>
    %167 = vector.multi_reduction <add>, %166, %cst_73 [1, 2] : vector<1x16x1xf32> to vector<1xf32>
    %168 = vector.shape_cast %167 : vector<1xf32> to vector<1x1x1xf32>
    %169 = vector.extract %168[0, 0, 0] : f32 from vector<1x1x1xf32>
    %170 = arith.mulf %161, %3 : vector<16x32xf32>
    %171 = vector.shape_cast %170 : vector<16x32xf32> to vector<1x16x32xf32>
    %cst_74 = arith.constant dense<0.000000e+00> : vector<1xf32>
    %172 = vector.multi_reduction <add>, %171, %cst_74 [1, 2] : vector<1x16x32xf32> to vector<1xf32>
    %173 = vector.shape_cast %172 : vector<1xf32> to vector<1x1x1xf32>
    %174 = vector.extract %173[0, 0, 0] : f32 from vector<1x1x1xf32>
    %175 = arith.subf %169, %174 : f32
    %cst_75 = arith.constant 2.560000e+02 : f32
    %176 = arith.divf %175, %cst_75 : f32
    %cst_76 = arith.constant 0.000000e+00 : f32
    %177 = vector.broadcast %cst_76 : f32 to vector<16x1xf32>
    %178 = arith.maximumf %159, %177 : vector<16x1xf32>
    %cst_77 = arith.constant 9.99999993E-9 : f32
    %179 = vector.broadcast %cst_77 : f32 to vector<16x1xf32>
    %180 = arith.addf %178, %179 : vector<16x1xf32>
    %181 = math.log %180 : vector<16x1xf32>
    %182 = vector.shape_cast %181 : vector<16x1xf32> to vector<1x16x1xf32>
    %cst_78 = arith.constant dense<0.000000e+00> : vector<1xf32>
    %183 = vector.multi_reduction <add>, %182, %cst_78 [1, 2] : vector<1x16x1xf32> to vector<1xf32>
    %184 = vector.shape_cast %183 : vector<1xf32> to vector<1x1x1xf32>
    %185 = vector.extract %184[0, 0, 0] : f32 from vector<1x1x1xf32>
    %cst_79 = arith.constant 1.600000e+01 : f32
    %186 = arith.divf %185, %cst_79 : f32
    %cst_80 = arith.constant 0.000000e+00 : f32
    %187 = arith.subf %cst_80, %186 : f32
    %188 = arith.mulf %86, %86 : vector<16x16xf32>
    %189 = vector.shape_cast %188 : vector<16x16xf32> to vector<1x16x16xf32>
    %cst_81 = arith.constant dense<0.000000e+00> : vector<1xf32>
    %190 = vector.multi_reduction <add>, %189, %cst_81 [1, 2] : vector<1x16x16xf32> to vector<1xf32>
    %191 = vector.shape_cast %190 : vector<1xf32> to vector<1x1x1xf32>
    %192 = vector.extract %191[0, 0, 0] : f32 from vector<1x1x1xf32>
    %cst_82 = arith.constant 2.560000e+02 : f32
    %193 = arith.divf %192, %cst_82 : f32
    %c0_83 = arith.constant 0 : index
    %c0_84 = arith.constant 0 : index
    %c0_85 = arith.constant 0 : index
    %194 = vector.load %arg3[%c0_83, %c0_84, %c0_85] : memref<1x16x16xf32, #tpu.memory_space<vmem>>, vector<1x16x16xf32>
    %195 = vector.shape_cast %194 : vector<1x16x16xf32> to vector<16x16xf32>
    %196 = arith.subf %86, %195 : vector<16x16xf32>
    %197 = arith.mulf %196, %196 : vector<16x16xf32>
    %198 = vector.shape_cast %197 : vector<16x16xf32> to vector<1x16x16xf32>
    %cst_86 = arith.constant dense<0.000000e+00> : vector<1xf32>
    %199 = vector.multi_reduction <add>, %198, %cst_86 [1, 2] : vector<1x16x16xf32> to vector<1xf32>
    %200 = vector.shape_cast %199 : vector<1xf32> to vector<1x1x1xf32>
    %201 = vector.extract %200[0, 0, 0] : f32 from vector<1x1x1xf32>
    %202 = arith.mulf %74, %74 : vector<16x16xf32>
    %203 = vector.shape_cast %202 : vector<16x16xf32> to vector<1x16x16xf32>
    %cst_87 = arith.constant dense<0.000000e+00> : vector<1xf32>
    %204 = vector.multi_reduction <add>, %203, %cst_87 [1, 2] : vector<1x16x16xf32> to vector<1xf32>
    %205 = vector.shape_cast %204 : vector<1xf32> to vector<1x1x1xf32>
    %206 = vector.extract %205[0, 0, 0] : f32 from vector<1x1x1xf32>
    %207 = tpu.iota {dimensions = array<i32: 1>} : vector<1x8xi32>
    %c0_i32 = arith.constant 0 : i32
    %208 = vector.broadcast %c0_i32 : i32 to vector<1x8xi32>
    %209 = arith.cmpi eq, %207, %208 : vector<1x8xi32>
    %c1_i32 = arith.constant 1 : i32
    %210 = vector.broadcast %c1_i32 : i32 to vector<1x8xi32>
    %211 = arith.cmpi eq, %207, %210 : vector<1x8xi32>
    %c2_i32 = arith.constant 2 : i32
    %212 = vector.broadcast %c2_i32 : i32 to vector<1x8xi32>
    %213 = arith.cmpi eq, %207, %212 : vector<1x8xi32>
    %c3_i32 = arith.constant 3 : i32
    %214 = vector.broadcast %c3_i32 : i32 to vector<1x8xi32>
    %215 = arith.cmpi eq, %207, %214 : vector<1x8xi32>
    %c4_i32 = arith.constant 4 : i32
    %216 = vector.broadcast %c4_i32 : i32 to vector<1x8xi32>
    %217 = arith.cmpi eq, %207, %216 : vector<1x8xi32>
    %cst_88 = arith.constant 0.000000e+00 : f32
    %218 = vector.broadcast %206 : f32 to vector<1x8xf32>
    %219 = vector.broadcast %cst_88 : f32 to vector<1x8xf32>
    %220 = arith.select %217, %218, %219 : vector<1x8xi1>, vector<1x8xf32>
    %221 = vector.broadcast %201 : f32 to vector<1x8xf32>
    %222 = arith.select %215, %221, %220 : vector<1x8xi1>, vector<1x8xf32>
    %223 = vector.broadcast %193 : f32 to vector<1x8xf32>
    %224 = arith.select %213, %223, %222 : vector<1x8xi1>, vector<1x8xf32>
    %225 = vector.broadcast %187 : f32 to vector<1x8xf32>
    %226 = arith.select %211, %225, %224 : vector<1x8xi1>, vector<1x8xf32>
    %227 = vector.broadcast %176 : f32 to vector<1x8xf32>
    %228 = arith.select %209, %227, %226 : vector<1x8xi1>, vector<1x8xf32>
    %c0_89 = arith.constant 0 : index
    %c0_90 = arith.constant 0 : index
    %c0_91 = arith.constant 0 : index
    %229 = vector.load %arg13[%c0_89, %c0_90, %c0_91] : memref<1x1x8xf32, #tpu.memory_space<vmem>>, vector<1x1x8xf32>
    %230 = vector.shape_cast %229 : vector<1x1x8xf32> to vector<1x8xf32>
    %231 = vector.shape_cast %228 : vector<1x8xf32> to vector<1x1x8xf32>
    tpu.vector_store %arg13[%c0_89, %c0_90, %c0_91], %231 {strides = array<i32>} : memref<1x1x8xf32, #tpu.memory_space<vmem>>, vector<1x1x8xf32>,
    return
  }
  func.func @transform_0(%arg0: i32) -> (i32, i32, i32) {
    %c0_i32 = arith.constant 0 : i32
    %c0_i32_0 = arith.constant 0 : i32
    %c0_i32_1 = arith.constant 0 : i32
    return %arg0, %c0_i32, %c0_i32_0 : i32, i32, i32
  }
  func.func @transform_1(%arg0: i32) -> (i32, i32, i32) {
    %c0_i32 = arith.constant 0 : i32
    %c0_i32_0 = arith.constant 0 : i32
    %c0_i32_1 = arith.constant 0 : i32
    return %arg0, %c0_i32, %c0_i32_0 : i32, i32, i32
  }
  func.func @transform_2(%arg0: i32) -> (i32, i32, i32) {
    %c0_i32 = arith.constant 0 : i32
    %c0_i32_0 = arith.constant 0 : i32
    %c0_i32_1 = arith.constant 0 : i32
    return %arg0, %c0_i32, %c0_i32_0 : i32, i32, i32
  }
  func.func @transform_3(%arg0: i32) -> (i32, i32, i32) {
    %c0_i32 = arith.constant 0 : i32
    %c0_i32_0 = arith.constant 0 : i32
    %c0_i32_1 = arith.constant 0 : i32
    return %arg0, %c0_i32, %c0_i32_0 : i32, i32, i32
  }
  func.func @transform_4(%arg0: i32) -> (i32, i32, i32) {
    %c0_i32 = arith.constant 0 : i32
    %c0_i32_0 = arith.constant 0 : i32
    %c0_i32_1 = arith.constant 0 : i32
    return %arg0, %c0_i32, %c0_i32_0 : i32, i32, i32
  }
  func.func @transform_5(%arg0: i32) -> (i32, i32) {
    %c0_i32 = arith.constant 0 : i32
    %c0_i32_0 = arith.constant 0 : i32
    %c0_i32_1 = arith.constant 0 : i32
    return %c0_i32, %c0_i32_0 : i32, i32
  }
  func.func @transform_6(%arg0: i32) -> (i32, i32, i32) {
    %c0_i32 = arith.constant 0 : i32
    %c0_i32_0 = arith.constant 0 : i32
    %c0_i32_1 = arith.constant 0 : i32
    %c0_i32_2 = arith.constant 0 : i32
    return %c0_i32, %c0_i32_0, %c0_i32_1 : i32, i32, i32
  }
  func.func @transform_7(%arg0: i32) -> (i32, i32, i32) {
    %c0_i32 = arith.constant 0 : i32
    %c0_i32_0 = arith.constant 0 : i32
    %c0_i32_1 = arith.constant 0 : i32
    %c0_i32_2 = arith.constant 0 : i32
    return %c0_i32, %c0_i32_0, %c0_i32_1 : i32, i32, i32
  }
  func.func @transform_8(%arg0: i32) -> (i32, i32, i32) {
    %c0_i32 = arith.constant 0 : i32
    %c0_i32_0 = arith.constant 0 : i32
    %c0_i32_1 = arith.constant 0 : i32
    %c0_i32_2 = arith.constant 0 : i32
    return %c0_i32, %c0_i32_0, %c0_i32_1 : i32, i32, i32
  }
  func.func @transform_9(%arg0: i32) -> (i32, i32, i32) {
    %c0_i32 = arith.constant 0 : i32
    %c0_i32_0 = arith.constant 0 : i32
    %c0_i32_1 = arith.constant 0 : i32
    return %arg0, %c0_i32, %c0_i32_0 : i32, i32, i32
  }
  func.func @transform_10(%arg0: i32) -> (i32, i32, i32) {
    %c0_i32 = arith.constant 0 : i32
    %c0_i32_0 = arith.constant 0 : i32
    %c0_i32_1 = arith.constant 0 : i32
    return %arg0, %c0_i32, %c0_i32_0 : i32, i32, i32
  }
  func.func @transform_11(%arg0: i32) -> (i32, i32, i32) {
    %c0_i32 = arith.constant 0 : i32
    %c0_i32_0 = arith.constant 0 : i32
    %c0_i32_1 = arith.constant 0 : i32
    return %arg0, %c0_i32, %c0_i32_0 : i32, i32, i32
  }
  func.func @transform_12(%arg0: i32) -> (i32, i32, i32) {
    %c0_i32 = arith.constant 0 : i32
    %c0_i32_0 = arith.constant 0 : i32
    %c0_i32_1 = arith.constant 0 : i32
    return %arg0, %c0_i32, %c0_i32_0 : i32, i32, i32
  }
}

</mosaic_0001>

<llo_original>
// kernel: iggcn_forward.4
$region0: #{iggcn_forward.4}
  #allocation0 [shape = 'u32[]', space=smem, size = 0x4, offset = 0x4, fixed_abs, tag = 'smem constant byte address 0x4 - core index']
  #allocation1 [shape = 'u32[144,128]{1,0:T(1,128)}', space=vmem, size = 0x12000, scoped, tag = 'internal scratch']
  #allocation2 [shape = 'f32[16,128]{1,0:T(8,128)}', space=vmem, size = 0x2000, scoped, tag = 'scratch operand']
  %s0 = inlined_call_operand.vmem [shape: f32[2,16,32], index: 0, kind: input, shape index: {}]
  %s1 = inlined_call_operand.vmem [shape: f32[2,16,32], index: 1, kind: input, shape index: {}]
  %s2 = inlined_call_operand.vmem [shape: f32[2,16,16], index: 2, kind: input, shape index: {}]
  %s3 = inlined_call_operand.vmem [shape: f32[2,16,16], index: 3, kind: input, shape index: {}]
  %s4 = inlined_call_operand.vmem [shape: f32[2,16,16], index: 4, kind: input, shape index: {}]
  %s5 = inlined_call_operand.vmem [shape: f32[4,32], index: 5, kind: input, shape index: {}]
  %s6 = inlined_call_operand.vmem [shape: bf16[3,32,32], index: 6, kind: input, shape index: {}]
  %s7 = inlined_call_operand.vmem [shape: bf16[3,32,32], index: 7, kind: input, shape index: {}]
  %s8 = inlined_call_operand.vmem [shape: f32[3,1,32], index: 8, kind: input, shape index: {}]
  %s9 = inlined_call_operand.vmem [shape: f32[2,16,16], index: 9, kind: output, shape index: {0}]
  %s10 = inlined_call_operand.vmem [shape: f32[2,16,32], index: 10, kind: output, shape index: {1}]
  %s11 = inlined_call_operand.vmem [shape: f32[2,1,32], index: 11, kind: output, shape index: {2}]
  %s12 = inlined_call_operand.vmem [shape: f32[2,1,8], index: 12, kind: output, shape index: {3}]
  %13 = xla_tuple %s9, %s10, %s11, %s12
  %s14 = sld [smem:[#allocation0]]
  $region93: #{iggcn_forward.4} parent=0
    _
  %s16 = ssub.s32 1, %s14
  %s17 = scalar_select 0, %s16, %s14
  loop: start=0, step=1, limit=4
  $region2: #{iggcn_forward.4} parent=0 // loop_pre_header
    _
  $region3: #{iggcn_forward.4} parent=0 // loop_header
    %s19 = sphi 0, %s23
    %p20 = scmp.ge.s32.totalorder %s19, 4
    %s29 = sphi 0, %s31
    %s32 = sphi 0, %s29
    %s33 = sphi 0, %s32
    %s49 = sphi 0, %s33
    %s55 = sphi 0, %s57
    %s58 = sphi 0, %s55
    %s59 = sphi 0, %s58
    %s75 = sphi 0, %s59
    %s81 = sphi 0, %s83
    %s84 = sphi 0, %s81
    %s85 = sphi 0, %s84
    %s101 = sphi 0, %s85
    %s107 = sphi 0, %s109
    %s110 = sphi 0, %s107
    %s111 = sphi 0, %s110
    %s127 = sphi 0, %s111
    %s133 = sphi 0, %s135
    %s136 = sphi 0, %s133
    %s137 = sphi 0, %s136
    %s153 = sphi 0, %s137
    %s157 = sphi 0, %s157
    %s159 = sphi 0, %s157
    %s160 = sphi 0, %s159
    %s174 = sphi 0, %s160
    %s178 = sphi 0, %s178
    %s180 = sphi 0, %s178
    %s181 = sphi 0, %s180
    %s195 = sphi 0, %s181
    %s199 = sphi 0, %s199
    %s201 = sphi 0, %s199
    %s202 = sphi 0, %s201
    %s216 = sphi 0, %s202
    %s220 = sphi 0, %s220
    %s222 = sphi 0, %s220
    %s223 = sphi 0, %s222
    %s237 = sphi 0, %s223
    %s243 = sphi 0, %s245
    %s246 = sphi 0, %s243
    %s247 = sphi 0, %s246
    %s263 = sphi 0, %s247
    %s269 = sphi 0, %s271
    %s272 = sphi 0, %s269
    %s273 = sphi 0, %s272
    %s289 = sphi 0, %s273
    %s295 = sphi 0, %s297
    %s298 = sphi 0, %s295
    %s299 = sphi 0, %s298
    %s315 = sphi 0, %s299
    %s321 = sphi 0, %s323
    %s324 = sphi 0, %s321
    %s325 = sphi 0, %s324
    %s341 = sphi 0, %s325
  $region4: #{iggcn_forward.4} parent=0 // loop_header_branch
    %22 = sbr.rel (%p20) target = $region8
  $region5: #{iggcn_forward.4} parent=0 // loop_body
    %s24 = ssub.s32 %s19, 1
    %s25 = ssub.s32 %s19, 2
    %s26 = sadd.s32 %s19, 1
    %s27 = ssub.s32 %s19, %s26
    %p28 = scmp.eq.s32.totalorder %s27, 0
    %s30 = sadd.s32 %s29, 1
    %s31 = scalar_select %p28, %s29, %s30
    %p34 = pneg %p28
    %p35 = scmp.eq.s32.totalorder %s19, 1
    %p36 = por %p34, %p35
    %p37 = scmp.ne.s32.totalorder %s29, %s32
    %p38 = scmp.eq.s32.totalorder %s19, 0
    %p39 = por %p37, %p38
    %p40 = scmp.ne.s32.totalorder %s29, %s32
    %p41 = scmp.eq.s32.totalorder %s24, 1
    %p42 = por %p40, %p41
    %p43 = scmp.ne.s32.totalorder %s32, %s33
    %p44 = scmp.eq.s32.totalorder %s24, 0
    %p45 = por %p43, %p44
    %p46 = scmp.ne.s32.totalorder %s32, %s33
    %p47 = scmp.eq.s32.totalorder %s25, 1
    %p48 = por %p46, %p47
    %p50 = scmp.ne.s32.totalorder %s33, %s49
    %p51 = scmp.eq.s32.totalorder %s25, 0
    %p52 = por %p50, %p51
    %s53 = ssub.s32 %s19, %s26
    %p54 = scmp.eq.s32.totalorder %s53, 0
    %s56 = sadd.s32 %s55, 1
    %s57 = scalar_select %p54, %s55, %s56
    %p60 = pneg %p54
    %p61 = scmp.eq.s32.totalorder %s19, 1
    %p62 = por %p60, %p61
    %p63 = scmp.ne.s32.totalorder %s55, %s58
    %p64 = scmp.eq.s32.totalorder %s19, 0
    %p65 = por %p63, %p64
    %p66 = scmp.ne.s32.totalorder %s55, %s58
    %p67 = scmp.eq.s32.totalorder %s24, 1
    %p68 = por %p66, %p67
    %p69 = scmp.ne.s32.totalorder %s58, %s59
    %p70 = scmp.eq.s32.totalorder %s24, 0
    %p71 = por %p69, %p70
    %p72 = scmp.ne.s32.totalorder %s58, %s59
    %p73 = scmp.eq.s32.totalorder %s25, 1
    %p74 = por %p72, %p73
    %p76 = scmp.ne.s32.totalorder %s59, %s75
    %p77 = scmp.eq.s32.totalorder %s25, 0
    %p78 = por %p76, %p77
    %s79 = ssub.s32 %s19, %s26
    %p80 = scmp.eq.s32.totalorder %s79, 0
    %s82 = sadd.s32 %s81, 1
    %s83 = scalar_select %p80, %s81, %s82
    %p86 = pneg %p80
    %p87 = scmp.eq.s32.totalorder %s19, 1
    %p88 = por %p86, %p87
    %p89 = scmp.ne.s32.totalorder %s81, %s84
    %p90 = scmp.eq.s32.totalorder %s19, 0
    %p91 = por %p89, %p90
    %p92 = scmp.ne.s32.totalorder %s81, %s84
    %p93 = scmp.eq.s32.totalorder %s24, 1
    %p94 = por %p92, %p93
    %p95 = scmp.ne.s32.totalorder %s84, %s85
    %p96 = scmp.eq.s32.totalorder %s24, 0
    %p97 = por %p95, %p96
    %p98 = scmp.ne.s32.totalorder %s84, %s85
    %p99 = scmp.eq.s32.totalorder %s25, 1
    %p100 = por %p98, %p99
    %p102 = scmp.ne.s32.totalorder %s85, %s101
    %p103 = scmp.eq.s32.totalorder %s25, 0
    %p104 = por %p102, %p103
    %s105 = ssub.s32 %s19, %s26
    %p106 = scmp.eq.s32.totalorder %s105, 0
    %s108 = sadd.s32 %s107, 1
    %s109 = scalar_select %p106, %s107, %s108
    %p112 = pneg %p106
    %p113 = scmp.eq.s32.totalorder %s19, 1
    %p114 = por %p112, %p113
    %p115 = scmp.ne.s32.totalorder %s107, %s110
    %p116 = scmp.eq.s32.totalorder %s19, 0
    %p117 = por %p115, %p116
    %p118 = scmp.ne.s32.totalorder %s107, %s110
    %p119 = scmp.eq.s32.totalorder %s24, 1
    %p120 = por %p118, %p119
    %p121 = scmp.ne.s32.totalorder %s110, %s111
    %p122 = scmp.eq.s32.totalorder %s24, 0
    %p123 = por %p121, %p122
    %p124 = scmp.ne.s32.totalorder %s110, %s111
    %p125 = scmp.eq.s32.totalorder %s25, 1
    %p126 = por %p124, %p125
    %p128 = scmp.ne.s32.totalorder %s111, %s127
    %p129 = scmp.eq.s32.totalorder %s25, 0
    %p130 = por %p128, %p129
    %s131 = ssub.s32 %s19, %s26
    %p132 = scmp.eq.s32.totalorder %s131, 0
    %s134 = sadd.s32 %s133, 1
    %s135 = scalar_select %p132, %s133, %s134
    %p138 = pneg %p132
    %p139 = scmp.eq.s32.totalorder %s19, 1
    %p140 = por %p138, %p139
    %p141 = scmp.ne.s32.totalorder %s133, %s136
    %p142 = scmp.eq.s32.totalorder %s19, 0
    %p143 = por %p141, %p142
    %p144 = scmp.ne.s32.totalorder %s133, %s136
    %p145 = scmp.eq.s32.totalorder %s24, 1
    %p146 = por %p144, %p145
    %p147 = scmp.ne.s32.totalorder %s136, %s137
    %p148 = scmp.eq.s32.totalorder %s24, 0
    %p149 = por %p147, %p148
    %p150 = scmp.ne.s32.totalorder %s136, %s137
    %p151 = scmp.eq.s32.totalorder %s25, 1
    %p152 = por %p150, %p151
    %p154 = scmp.ne.s32.totalorder %s137, %s153
    %p155 = scmp.eq.s32.totalorder %s25, 0
    %p156 = por %p154, %p155
    %s158 = sadd.s32 %s157, 1
    %p161 = scmp.eq.s32.totalorder %s19, 1
    %p162 = scmp.ne.s32.totalorder %s157, %s159
    %p163 = scmp.eq.s32.totalorder %s19, 0
    %p164 = por %p162, %p163
    %p165 = scmp.ne.s32.totalorder %s157, %s159
    %p166 = scmp.eq.s32.totalorder %s24, 1
    %p167 = por %p165, %p166
    %p168 = scmp.ne.s32.totalorder %s159, %s160
    %p169 = scmp.eq.s32.totalorder %s24, 0
    %p170 = por %p168, %p169
    %p171 = scmp.ne.s32.totalorder %s159, %s160
    %p172 = scmp.eq.s32.totalorder %s25, 1
    %p173 = por %p171, %p172
    %p175 = scmp.ne.s32.totalorder %s160, %s174
    %p176 = scmp.eq.s32.totalorder %s25, 0
    %p177 = por %p175, %p176
    %s179 = sadd.s32 %s178, 1
    %p182 = scmp.eq.s32.totalorder %s19, 1
    %p183 = scmp.ne.s32.totalorder %s178, %s180
    %p184 = scmp.eq.s32.totalorder %s19, 0
    %p185 = por %p183, %p184
    %p186 = scmp.ne.s32.totalorder %s178, %s180
    %p187 = scmp.eq.s32.totalorder %s24, 1
    %p188 = por %p186, %p187
    %p189 = scmp.ne.s32.totalorder %s180, %s181
    %p190 = scmp.eq.s32.totalorder %s24, 0
    %p191 = por %p189, %p190
    %p192 = scmp.ne.s32.totalorder %s180, %s181
    %p193 = scmp.eq.s32.totalorder %s25, 1
    %p194 = por %p192, %p193
    %p196 = scmp.ne.s32.totalorder %s181, %s195
    %p197 = scmp.eq.s32.totalorder %s25, 0
    %p198 = por %p196, %p197
    %s200 = sadd.s32 %s199, 1
    %p203 = scmp.eq.s32.totalorder %s19, 1
    %p204 = scmp.ne.s32.totalorder %s199, %s201
    %p205 = scmp.eq.s32.totalorder %s19, 0
    %p206 = por %p204, %p205
    %p207 = scmp.ne.s32.totalorder %s199, %s201
    %p208 = scmp.eq.s32.totalorder %s24, 1
    %p209 = por %p207, %p208
    %p210 = scmp.ne.s32.totalorder %s201, %s202
    %p211 = scmp.eq.s32.totalorder %s24, 0
    %p212 = por %p210, %p211
    %p213 = scmp.ne.s32.totalorder %s201, %s202
    %p214 = scmp.eq.s32.totalorder %s25, 1
    %p215 = por %p213, %p214
    %p217 = scmp.ne.s32.totalorder %s202, %s216
    %p218 = scmp.eq.s32.totalorder %s25, 0
    %p219 = por %p217, %p218
    %s221 = sadd.s32 %s220, 1
    %p224 = scmp.eq.s32.totalorder %s19, 1
    %p225 = scmp.ne.s32.totalorder %s220, %s222
    %p226 = scmp.eq.s32.totalorder %s19, 0
    %p227 = por %p225, %p226
    %p228 = scmp.ne.s32.totalorder %s220, %s222
    %p229 = scmp.eq.s32.totalorder %s24, 1
    %p230 = por %p228, %p229
    %p231 = scmp.ne.s32.totalorder %s222, %s223
    %p232 = scmp.eq.s32.totalorder %s24, 0
    %p233 = por %p231, %p232
    %p234 = scmp.ne.s32.totalorder %s222, %s223
    %p235 = scmp.eq.s32.totalorder %s25, 1
    %p236 = por %p234, %p235
    %p238 = scmp.ne.s32.totalorder %s223, %s237
    %p239 = scmp.eq.s32.totalorder %s25, 0
    %p240 = por %p238, %p239
    %s241 = ssub.s32 %s19, %s26
    %p242 = scmp.eq.s32.totalorder %s241, 0
    %s244 = sadd.s32 %s243, 1
    %s245 = scalar_select %p242, %s243, %s244
    %p248 = pneg %p242
    %p249 = scmp.eq.s32.totalorder %s19, 1
    %p250 = por %p248, %p249
    %p251 = scmp.ne.s32.totalorder %s243, %s246
    %p252 = scmp.eq.s32.totalorder %s19, 0
    %p253 = por %p251, %p252
    %p254 = scmp.ne.s32.totalorder %s243, %s246
    %p255 = scmp.eq.s32.totalorder %s24, 1
    %p256 = por %p254, %p255
    %p257 = scmp.ne.s32.totalorder %s246, %s247
    %p258 = scmp.eq.s32.totalorder %s24, 0
    %p259 = por %p257, %p258
    %p260 = scmp.ne.s32.totalorder %s246, %s247
    %p261 = scmp.eq.s32.totalorder %s25, 1
    %p262 = por %p260, %p261
    %p264 = scmp.ne.s32.totalorder %s247, %s263
    %p265 = scmp.eq.s32.totalorder %s25, 0
    %p266 = por %p264, %p265
    %s267 = ssub.s32 %s19, %s26
    %p268 = scmp.eq.s32.totalorder %s267, 0
    %s270 = sadd.s32 %s269, 1
    %s271 = scalar_select %p268, %s269, %s270
    %p274 = pneg %p268
    %p275 = scmp.eq.s32.totalorder %s19, 1
    %p276 = por %p274, %p275
    %p277 = scmp.ne.s32.totalorder %s269, %s272
    %p278 = scmp.eq.s32.totalorder %s19, 0
    %p279 = por %p277, %p278
    %p280 = scmp.ne.s32.totalorder %s269, %s272
    %p281 = scmp.eq.s32.totalorder %s24, 1
    %p282 = por %p280, %p281
    %p283 = scmp.ne.s32.totalorder %s272, %s273
    %p284 = scmp.eq.s32.totalorder %s24, 0
    %p285 = por %p283, %p284
    %p286 = scmp.ne.s32.totalorder %s272, %s273
    %p287 = scmp.eq.s32.totalorder %s25, 1
    %p288 = por %p286, %p287
    %p290 = scmp.ne.s32.totalorder %s273, %s289
    %p291 = scmp.eq.s32.totalorder %s25, 0
    %p292 = por %p290, %p291
    %s293 = ssub.s32 %s19, %s26
    %p294 = scmp.eq.s32.totalorder %s293, 0
    %s296 = sadd.s32 %s295, 1
    %s297 = scalar_select %p294, %s295, %s296
    %p300 = pneg %p294
    %p301 = scmp.eq.s32.totalorder %s19, 1
    %p302 = por %p300, %p301
    %p303 = scmp.ne.s32.totalorder %s295, %s298
    %p304 = scmp.eq.s32.totalorder %s19, 0
    %p305 = por %p303, %p304
    %p306 = scmp.ne.s32.totalorder %s295, %s298
    %p307 = scmp.eq.s32.totalorder %s24, 1
    %p308 = por %p306, %p307
    %p309 = scmp.ne.s32.totalorder %s298, %s299
    %p310 = scmp.eq.s32.totalorder %s24, 0
    %p311 = por %p309, %p310
    %p312 = scmp.ne.s32.totalorder %s298, %s299
    %p313 = scmp.eq.s32.totalorder %s25, 1
    %p314 = por %p312, %p313
    %p316 = scmp.ne.s32.totalorder %s299, %s315
    %p317 = scmp.eq.s32.totalorder %s25, 0
    %p318 = por %p316, %p317
    %s319 = ssub.s32 %s19, %s26
    %p320 = scmp.eq.s32.totalorder %s319, 0
    %s322 = sadd.s32 %s321, 1
    %s323 = scalar_select %p320, %s321, %s322
    %p326 = pneg %p320
    %p327 = scmp.eq.s32.totalorder %s19, 1
    %p328 = por %p326, %p327
    %p329 = scmp.ne.s32.totalorder %s321, %s324
    %p330 = scmp.eq.s32.totalorder %s19, 0
    %p331 = por %p329, %p330
    %p332 = scmp.ne.s32.totalorder %s321, %s324
    %p333 = scmp.eq.s32.totalorder %s24, 1
    %p334 = por %p332, %p333
    %p335 = scmp.ne.s32.totalorder %s324, %s325
    %p336 = scmp.eq.s32.totalorder %s24, 0
    %p337 = por %p335, %p336
    %p338 = scmp.ne.s32.totalorder %s324, %s325
    %p339 = scmp.eq.s32.totalorder %s25, 1
    %p340 = por %p338, %p339
    %p342 = scmp.ne.s32.totalorder %s325, %s341
    %p343 = scmp.eq.s32.totalorder %s25, 0
    %p344 = por %p342, %p343
    %p345 = scmp.le.s32.totalorder 1, %s19
    %p346 = scmp.lt.s32.totalorder %s19, 3
    %p347 = pnand %p345, %p346
    %p348 = pneg %p347
    // Predicated region
    $region9: #{iggcn_forward.4} parent=5 // pred_check
      _
    $region10: #{iggcn_forward.4} parent=5 // pred_check_branch
      %350 = sbr.rel (%p347) target = $region12
    $region11: #{iggcn_forward.4} parent=5 // pred_region
      %s351 = ssub.s32 %s19, 1
      // Predicated region
      $region13: #{iggcn_forward.4} parent=11 // pred_check
        %p352 = pneg %p170
      $region14: #{iggcn_forward.4} parent=11 // pred_check_branch
        %354 = sbr.rel (%p352) target = $region16
      $region15: #{iggcn_forward.4} parent=11 // pred_region
        _
      $region16: #{iggcn_forward.4} parent=11 // pred_fallthru
        _
      // Predicated region
      $region17: #{iggcn_forward.4} parent=11 // pred_check
        %p355 = pneg %p191
      $region18: #{iggcn_forward.4} parent=11 // pred_check_branch
        %357 = sbr.rel (%p355) target = $region20
      $region19: #{iggcn_forward.4} parent=11 // pred_region
        _
      $region20: #{iggcn_forward.4} parent=11 // pred_fallthru
        _
      // Predicated region
      $region21: #{iggcn_forward.4} parent=11 // pred_check
        %p358 = pneg %p212
      $region22: #{iggcn_forward.4} parent=11 // pred_check_branch
        %360 = sbr.rel (%p358) target = $region24
      $region23: #{iggcn_forward.4} parent=11 // pred_region
        _
      $region24: #{iggcn_forward.4} parent=11 // pred_fallthru
        _
      // Predicated region
      $region25: #{iggcn_forward.4} parent=11 // pred_check
        %p361 = pneg %p233
      $region26: #{iggcn_forward.4} parent=11 // pred_check_branch
        %363 = sbr.rel (%p361) target = $region28
      $region27: #{iggcn_forward.4} parent=11 // pred_region
        _
      $region28: #{iggcn_forward.4} parent=11 // pred_fallthru
        _
    $region12: #{iggcn_forward.4} parent=5 // pred_fallthru
      _
    %p364 = scmp.lt.s32.totalorder %s19, 2
    // Predicated region
    $region29: #{iggcn_forward.4} parent=5 // pred_check
      %p365 = pneg %p364
    $region30: #{iggcn_forward.4} parent=5 // pred_check_branch
      %367 = sbr.rel (%p365) target = $region32
    $region31: #{iggcn_forward.4} parent=5 // pred_region
      // Predicated region
      $region33: #{iggcn_forward.4} parent=31 // pred_check
        %p368 = pneg %p39
      $region34: #{iggcn_forward.4} parent=31 // pred_check_branch
        %370 = sbr.rel (%p368) target = $region36
      $region35: #{iggcn_forward.4} parent=31 // pred_region
        %p371 = scmp.lt.s32.totalorder %s19, 1
        %s372 = scalar_select %p371, %s19, 1
        %s373 = smul.addr %s372, 2
        %s374 = smul.addr %s373, 8
        %s375 = scalar_lea.vmem %s0, %s374
      $region36: #{iggcn_forward.4} parent=31 // pred_fallthru
        _
      // Predicated region
      $region37: #{iggcn_forward.4} parent=31 // pred_check
        %p376 = pneg %p65
      $region38: #{iggcn_forward.4} parent=31 // pred_check_branch
        %378 = sbr.rel (%p376) target = $region40
      $region39: #{iggcn_forward.4} parent=31 // pred_region
        %p379 = scmp.lt.s32.totalorder %s19, 1
        %s380 = scalar_select %p379, %s19, 1
        %s381 = smul.addr %s380, 2
        %s382 = smul.addr %s381, 8
        %s383 = scalar_lea.vmem %s1, %s382
      $region40: #{iggcn_forward.4} parent=31 // pred_fallthru
        _
      // Predicated region
      $region41: #{iggcn_forward.4} parent=31 // pred_check
        %p384 = pneg %p91
      $region42: #{iggcn_forward.4} parent=31 // pred_check_branch
        %386 = sbr.rel (%p384) target = $region44
      $region43: #{iggcn_forward.4} parent=31 // pred_region
        %p387 = scmp.lt.s32.totalorder %s19, 1
        %s388 = scalar_select %p387, %s19, 1
        %s389 = smul.addr %s388, 2
        %s390 = smul.addr %s389, 8
        %s391 = scalar_lea.vmem %s2, %s390
      $region44: #{iggcn_forward.4} parent=31 // pred_fallthru
        _
      // Predicated region
      $region45: #{iggcn_forward.4} parent=31 // pred_check
        %p392 = pneg %p117
      $region46: #{iggcn_forward.4} parent=31 // pred_check_branch
        %394 = sbr.rel (%p392) target = $region48
      $region47: #{iggcn_forward.4} parent=31 // pred_region
        %p395 = scmp.lt.s32.totalorder %s19, 1
        %s396 = scalar_select %p395, %s19, 1
        %s397 = smul.addr %s396, 2
        %s398 = smul.addr %s397, 8
        %s399 = scalar_lea.vmem %s3, %s398
      $region48: #{iggcn_forward.4} parent=31 // pred_fallthru
        _
      // Predicated region
      $region49: #{iggcn_forward.4} parent=31 // pred_check
        %p400 = pneg %p143
      $region50: #{iggcn_forward.4} parent=31 // pred_check_branch
        %402 = sbr.rel (%p400) target = $region52
      $region51: #{iggcn_forward.4} parent=31 // pred_region
        %p403 = scmp.lt.s32.totalorder %s19, 1
        %s404 = scalar_select %p403, %s19, 1
        %s405 = smul.addr %s404, 2
        %s406 = smul.addr %s405, 8
        %s407 = scalar_lea.vmem %s4, %s406
      $region52: #{iggcn_forward.4} parent=31 // pred_fallthru
        _
    $region32: #{iggcn_forward.4} parent=5 // pred_fallthru
      _
    %p408 = scmp.le.s32.totalorder 1, %s19
    %p409 = scmp.lt.s32.totalorder %s19, 3
    %p410 = pnand %p408, %p409
    %p411 = pneg %p410
    // Predicated region
    $region53: #{iggcn_forward.4} parent=5 // pred_check
      _
    $region54: #{iggcn_forward.4} parent=5 // pred_check_branch
      %413 = sbr.rel (%p410) target = $region56
    $region55: #{iggcn_forward.4} parent=5 // pred_region
      %s414 = ssub.s32 %s19, 1
      %p415 = scmp.lt.s32.totalorder %s24, 1
      %s416 = scalar_select %p415, %s24, 1
      %s417 = smul.addr %s416, 2
      %s418 = smul.addr %s417, 8
      %s419 = scalar_lea.vmem %s0, %s418
      %p420 = pneg %p45
      %p421 = pneg %p42
      %p422 = scmp.lt.s32.totalorder %s24, 1
      %s423 = scalar_select %p422, %s24, 1
      %s424 = smul.addr %s423, 2
      %s425 = smul.addr %s424, 8
      %s426 = scalar_lea.vmem %s1, %s425
      %p427 = pneg %p71
      %p428 = pneg %p68
      %p429 = scmp.lt.s32.totalorder %s24, 1
      %s430 = scalar_select %p429, %s24, 1
      %s431 = smul.addr %s430, 2
      %s432 = smul.addr %s431, 8
      %s433 = scalar_lea.vmem %s2, %s432
      %p434 = pneg %p97
      %p435 = pneg %p94
      %p436 = scmp.lt.s32.totalorder %s24, 1
      %s437 = scalar_select %p436, %s24, 1
      %s438 = smul.addr %s437, 2
      %s439 = smul.addr %s438, 8
      %s440 = scalar_lea.vmem %s3, %s439
      %p441 = pneg %p123
      %p442 = pneg %p120
      %p443 = scmp.lt.s32.totalorder %s24, 1
      %s444 = scalar_select %p443, %s24, 1
      %s445 = smul.addr %s444, 2
      %s446 = smul.addr %s445, 8
      %s447 = scalar_lea.vmem %s4, %s446
      %p448 = pneg %p149
      %p449 = pneg %p146
      %p450 = pneg %p170
      %p451 = pneg %p167
      %p452 = pneg %p191
      %p453 = pneg %p188
      %p454 = pneg %p212
      %p455 = pneg %p209
      %p456 = pneg %p233
      %p457 = pneg %p230
      %p458 = pneg %p259
      %p459 = pneg %p256
      %p460 = scmp.lt.s32.totalorder %s24, 1
      %s461 = scalar_select %p460, %s24, 1
      %s462 = smul.addr %s461, 2
      %s463 = smul.addr %s462, 8
      %s464 = scalar_lea.vmem %s9, %s463
      %p465 = pneg %p285
      %p466 = pneg %p282
      %p467 = scmp.lt.s32.totalorder %s24, 1
      %s468 = scalar_select %p467, %s24, 1
      %s469 = smul.addr %s468, 2
      %s470 = smul.addr %s469, 8
      %s471 = scalar_lea.vmem %s10, %s470
      %p472 = pneg %p311
      %p473 = pneg %p308
      %p474 = scmp.lt.s32.totalorder %s24, 1
      %s475 = scalar_select %p474, %s24, 1
      %s476 = scalar_lea.vmem %s11, %s475
      %p477 = pneg %p337
      %p478 = pneg %p334
      %p479 = scmp.lt.s32.totalorder %s24, 1
      %s480 = scalar_select %p479, %s24, 1
      %s481 = scalar_lea.vmem %s12, %s480
      %p482 = scmp.lt.s32.totalorder %s24, 1
      %s483 = scalar_select %p482, %s24, 1
      %s484 = smul.addr %s483, 2
      %s485 = smul.addr %s484, 8
      %s486 = scalar_lea.vmem %s0, %s485
      %p487 = scmp.lt.s32.totalorder %s24, 1
      %s488 = scalar_select %p487, %s24, 1
      %s489 = smul.addr %s488, 2
      %s490 = smul.addr %s489, 8
      %s491 = scalar_lea.vmem %s1, %s490
      %p492 = scmp.lt.s32.totalorder %s24, 1
      %s493 = scalar_select %p492, %s24, 1
      %s494 = smul.addr %s493, 2
      %s495 = smul.addr %s494, 8
      %s496 = scalar_lea.vmem %s2, %s495
      %p497 = scmp.lt.s32.totalorder %s24, 1
      %s498 = scalar_select %p497, %s24, 1
      %s499 = smul.addr %s498, 2
      %s500 = smul.addr %s499, 8
      %s501 = scalar_lea.vmem %s3, %s500
      %p502 = scmp.lt.s32.totalorder %s24, 1
      %s503 = scalar_select %p502, %s24, 1
      %s504 = smul.addr %s503, 2
      %s505 = smul.addr %s504, 8
      %s506 = scalar_lea.vmem %s4, %s505
      %p507 = scmp.lt.s32.totalorder %s24, 1
      %s508 = scalar_select %p507, %s24, 1
      %s509 = smul.addr %s508, 2
      %s510 = smul.addr %s509, 8
      %s511 = scalar_lea.vmem %s9, %s510
      %p512 = scmp.lt.s32.totalorder %s24, 1
      %s513 = scalar_select %p512, %s24, 1
      %s514 = smul.addr %s513, 2
      %s515 = smul.addr %s514, 8
      %s516 = scalar_lea.vmem %s10, %s515
      %p517 = scmp.lt.s32.totalorder %s24, 1
      %s518 = scalar_select %p517, %s24, 1
      %s519 = scalar_lea.vmem %s11, %s518
      %p520 = scmp.lt.s32.totalorder %s24, 1
      %s521 = scalar_select %p520, %s24, 1
      %s522 = scalar_lea.vmem %s12, %s521
      %v524 = vld [vmem:[%s486] sm:$0xff]
      %v525 = vld [vmem:[%s486 + $0x8] sm:$0xff]
      %v526 = vld [vmem:[%s491] sm:$0xff]
      %v527 = vld [vmem:[%s491 + $0x8] sm:$0xff]
      %v528 = vld [vmem:[%s5] sm:$0x1]
      %v529 = vlaneseq
      %v530 = vshrl.u32 %v529, 7
      %v531 = vsub.s32 0, %v530
      %v532 = vrot.slane %v528, %v531
      %v533 = vmul.f32 %v524, %v532
      %v534 = vmul.f32 %v525, %v532
      %v535 = vmul.f32 %v533, %v533
      %v536 = vmul.f32 %v534, %v534
      %vm537 = vcmask 261120
      %v538 = vsel %vm537, %v535, 0.0
      %539 = vadd.xlane.f32.xlu0 %v538
      %v540 = vpop.xlane.xlu0 %539
      %v541 = vsel %vm537, %v536, 0.0
      %542 = vadd.xlane.f32.xlu0 %v541
      %v543 = vpop.xlane.xlu0 %542
      %v544 = vadd.f32 %v540, 1e-16
      %v545 = vadd.f32 %v543, 1e-16
      %v546 = vrsqrt.pop %v544
      %v547 = vrsqrt.pop %v545
      %v548 = vmul.f32 %v533, %v546
      %v549 = vmul.f32 %v534, %v547
      %550 = vst.msk [vmem:[#allocation2] sm:$0xff] %vm537, %v548
      %551 = vst.msk [vmem:[#allocation2 + $0x8] sm:$0xff] %vm537, %v549
      %v552 = vld [vmem:[%s5 + $0x1] sm:$0x1]
      %v553 = vlaneseq
      %v554 = vshrl.u32 %v553, 7
      %v555 = vsub.s32 0, %v554
      %v556 = vrot.slane %v552, %v555
      %v557 = vmul.f32 %v524, %v556
      %v558 = vmul.f32 %v525, %v556
      %v559 = vmul.f32 %v557, %v557
      %v560 = vmul.f32 %v558, %v558
      %v561 = vsel %vm537, %v559, 0.0
      %562 = vadd.xlane.f32.xlu0 %v561
      %v563 = vpop.xlane.xlu0 %562
      %v564 = vsel %vm537, %v560, 0.0
      %565 = vadd.xlane.f32.xlu0 %v564
      %v566 = vpop.xlane.xlu0 %565
      %v567 = vadd.f32 %v563, 1e-16
      %v568 = vadd.f32 %v566, 1e-16
      %v569 = vrsqrt.pop %v567
      %v570 = vrsqrt.pop %v568
      %v571 = vmul.f32 %v557, %v569
      %v572 = vmul.f32 %v558, %v570
      %575 = vrot.lane.b32.xlu0 %v571, 32
      %v576 = vpop.permute.xlu0 %575
      %577 = vrot.lane.b32.xlu0 %v572, 32
      %v578 = vpop.permute.xlu0 %577
      %vm581 = vcmask 523520
      %582 = vst.msk [vmem:[#allocation2] sm:$0xff] %vm581, %v576
      %583 = vst.msk [vmem:[#allocation2 + $0x8] sm:$0xff] %vm581, %v578
      %v584 = vld [vmem:[%s5 + $0x2] sm:$0x1]
      %v585 = vlaneseq
      %v586 = vshrl.u32 %v585, 7
      %v587 = vsub.s32 0, %v586
      %v588 = vrot.slane %v584, %v587
      %v589 = vmul.f32 %v524, %v588
      %v590 = vmul.f32 %v525, %v588
      %v591 = vmul.f32 %v589, %v589
      %v592 = vmul.f32 %v590, %v590
      %v593 = vsel %vm537, %v591, 0.0
      %594 = vadd.xlane.f32.xlu0 %v593
      %v595 = vpop.xlane.xlu0 %594
      %v596 = vsel %vm537, %v592, 0.0
      %597 = vadd.xlane.f32.xlu0 %v596
      %v598 = vpop.xlane.xlu0 %597
      %v599 = vadd.f32 %v595, 1e-16
      %v600 = vadd.f32 %v598, 1e-16
      %v601 = vrsqrt.pop %v599
      %v602 = vrsqrt.pop %v600
      %v603 = vmul.f32 %v589, %v601
      %v604 = vmul.f32 %v590, %v602
      %607 = vrot.lane.b32.xlu0 %v603, 64
      %v608 = vpop.permute.xlu0 %607
      %609 = vrot.lane.b32.xlu0 %v604, 64
      %v610 = vpop.permute.xlu0 %609
      %vm613 = vcmask 785920
      %614 = vst.msk [vmem:[#allocation2] sm:$0xff] %vm613, %v608
      %615 = vst.msk [vmem:[#allocation2 + $0x8] sm:$0xff] %vm613, %v610
      %v616 = vld [vmem:[%s5 + $0x3] sm:$0x1]
      %v617 = vlaneseq
      %v618 = vshrl.u32 %v617, 7
      %v619 = vsub.s32 0, %v618
      %v620 = vrot.slane %v616, %v619
      %v621 = vmul.f32 %v524, %v620
      %v622 = vmul.f32 %v525, %v620
      %v623 = vmul.f32 %v621, %v621
      %v624 = vmul.f32 %v622, %v622
      %v625 = vsel %vm537, %v623, 0.0
      %626 = vadd.xlane.f32.xlu0 %v625
      %v627 = vpop.xlane.xlu0 %626
      %v628 = vsel %vm537, %v624, 0.0
      %629 = vadd.xlane.f32.xlu0 %v628
      %v630 = vpop.xlane.xlu0 %629
      %v631 = vadd.f32 %v627, 1e-16
      %v632 = vadd.f32 %v630, 1e-16
      %v633 = vrsqrt.pop %v631
      %v634 = vrsqrt.pop %v632
      %v635 = vmul.f32 %v621, %v633
      %v636 = vmul.f32 %v622, %v634
      %639 = vrot.lane.b32.xlu0 %v635, 96
      %v640 = vpop.permute.xlu0 %639
      %641 = vrot.lane.b32.xlu0 %v636, 96
      %v642 = vpop.permute.xlu0 %641
      %vm645 = vcmask 1048320
      %646 = vst.msk [vmem:[#allocation2] sm:$0xff] %vm645, %v640
      %647 = vst.msk [vmem:[#allocation2 + $0x8] sm:$0xff] %vm645, %v642
      %v648 = vld [vmem:[#allocation2] sm:$0xff]
      %v649 = vld [vmem:[#allocation2 + $0x8] sm:$0xff]
      %v650 = vpack.c.bf16 %v649, %v648
      %651 = vmatprep.subr.bf16.mxu0 0
      %652 = vmatpush1.bf16.xpose.msra.mxu0 %v650
      %653 = vmatprep.subr.bf16.mxu0 0
      %654 = vmatpush1.bf16.xpose.msra.mxu0 0
      %655 = vmatprep.subr.bf16.mxu0 0
      %656 = vmatpush1.bf16.xpose.msra.mxu0 0
      %657 = vmatprep.subr.bf16.mxu0 0
      %658 = vmatpush1.bf16.xpose.msra.mxu0 0
      %659 = vmatprep.subr.bf16.mxu0 0
      %660 = vmatpush1.bf16.xpose.msra.mxu0 0
      %661 = vmatprep.subr.bf16.mxu0 0
      %662 = vmatpush1.bf16.xpose.msra.mxu0 0
      %663 = vmatprep.subr.bf16.mxu0 0
      %664 = vmatpush1.bf16.xpose.msra.mxu0 0
      %665 = vmatprep.subr.bf16.mxu0 0
      %666 = vmatpush1.bf16.xpose.msra.mxu0 0
      %667 = vmatprep.subr.bf16.mxu0 0
      %668 = vmatpush1.bf16.xpose.msra.mxu0 0
      %669 = vmatprep.subr.bf16.mxu0 0
      %670 = vmatpush1.bf16.xpose.msra.mxu0 0
      %671 = vmatprep.subr.bf16.mxu0 0
      %672 = vmatpush1.bf16.xpose.msra.mxu0 0
      %673 = vmatprep.subr.bf16.mxu0 0
      %674 = vmatpush1.bf16.xpose.msra.mxu0 0
      %675 = vmatprep.subr.bf16.mxu0 0
      %676 = vmatpush1.bf16.xpose.msra.mxu0 0
      %677 = vmatprep.subr.bf16.mxu0 0
      %678 = vmatpush1.bf16.xpose.msra.mxu0 0
      %679 = vmatprep.subr.bf16.mxu0 0
      %680 = vmatpush1.bf16.xpose.msra.mxu0 0
      %681 = vmatprep.subr.bf16.mxu0 0
      %682 = vmatpush1.bf16.xpose.msra.mxu0 0
      %683 = vmatprep.mubr.bf16.mxu0 0
      %684 = vmatmul.mubr.bf16.gmra.mrb[0].mxu0 %v650
      %v685 = vpop.f32.mrb[0].mxu0
      %v686 = vadd.f32 0.0, %v685
      %v687 = vpop.f32.mrb[0].mxu0
      %v688 = vpop.f32.mrb[0].mxu0
      %v689 = vadd.f32 0.0, %v688
      %v690 = vpop.f32.mrb[0].mxu0
      %691 = vdwg.mxu0
      %v692 = vmul.f32 %v686, 0.25
      %v693 = vmul.f32 %v689, 0.25
      %v694 = vmax.f32 %v692, 0.0
      %v695 = vmax.f32 %v693, 0.0
      %vm696 = vcmask 130048
      %v697 = vsel %vm696, %v694, inf
      %v698 = vsel %vm696, %v695, inf
      %v699 = vmin.f32 %v697, %v698
      %700 = vmin.xlane.f32.xlu0 %v699
      %v701 = vpop.xlane.xlu0 %700
      %v702 = vrot.slane %v701, 4
      %v703 = vmin.f32 %v701, %v702
      %v704 = vrot.slane %v703, 2
      %v705 = vmin.f32 %v703, %v704
      %v706 = vrot.slane %v705, 1
      %v707 = vmin.f32 %v705, %v706
      %s708 = vtos %v707
      %v709 = vsel %vm696, %v694, -inf
      %v710 = vsel %vm696, %v695, -inf
      %v711 = vmax.f32 %v709, %v710
      %712 = vmax.xlane.f32.xlu0 %v711
      %v713 = vpop.xlane.xlu0 %712
      %v714 = vrot.slane %v713, 4
      %v715 = vmax.f32 %v713, %v714
      %v716 = vrot.slane %v715, 2
      %v717 = vmax.f32 %v715, %v716
      %v718 = vrot.slane %v717, 1
      %v719 = vmax.f32 %v717, %v718
      %s720 = vtos %v719
      %v721 = vstv %s708
      %v722 = vsub.f32 %v694, %v721
      %v723 = vsub.f32 %v695, %v721
      %s724 = ssub.f32 %s720, %s708
      %s725 = sadd.f32 %s724, 1e-08
      %v726 = vstv %s725
      %v727 = vrcp.pop %v726
      %v728 = vmul.f32 %v722, %v727
      %v729 = vmul.f32 %v723, %v727
      %v730 = vld [vmem:[%s501] sm:$0xff]
      %v731 = vld [vmem:[%s501 + $0x8] sm:$0xff]
      %v732 = vld [vmem:[%s506] sm:$0xff]
      %v733 = vld [vmem:[%s506 + $0x8] sm:$0xff]
      %v734 = vmul.f32 %v732, 0.3
      %v735 = vmul.f32 %v733, 0.3
      %v736 = vmul.f32 %v728, 0.4
      %v737 = vmul.f32 %v729, 0.4
      %v738 = vmul.f32 %v730, 0.6
      %v739 = vmul.f32 %v731, 0.6
      %v740 = vadd.f32 %v736, %v738
      %v741 = vadd.f32 %v737, %v739
      %v742 = vmul.f32 %v740, 0.6
      %v743 = vmul.f32 %v741, 0.6
      %v744 = vadd.f32 %v734, %v742
      %v745 = vadd.f32 %v735, %v743
      %746 = vst.msk [vmem:[%s511] sm:$0xff] %vm696, %v744
      %747 = vst.msk [vmem:[%s511 + $0x8] sm:$0xff] %vm696, %v745
      %v748 = vpack.c.bf16 %v745, %v744
      %v749 = vpack.c.bf16 %v525, %v524
      %v751 = vsel %vm696, %v748, 0
      %753 = vmatprep.subr.bf16.mxu0 0
      %754 = vmatpush1.bf16.msra.mxu0 %v749
      %755 = vmatprep.subr.bf16.mxu0 0
      %756 = vmatpush1.bf16.msra.mxu0 0
      %757 = vmatprep.subr.bf16.mxu0 0
      %758 = vmatpush1.bf16.msra.mxu0 0
      %759 = vmatprep.subr.bf16.mxu0 0
      %760 = vmatpush1.bf16.msra.mxu0 0
      %761 = vmatprep.subr.bf16.mxu0 0
      %762 = vmatpush1.bf16.msra.mxu0 0
      %763 = vmatprep.subr.bf16.mxu0 0
      %764 = vmatpush1.bf16.msra.mxu0 0
      %765 = vmatprep.subr.bf16.mxu0 0
      %766 = vmatpush1.bf16.msra.mxu0 0
      %767 = vmatprep.subr.bf16.mxu0 0
      %768 = vmatpush1.bf16.msra.mxu0 0
      %769 = vmatprep.subr.bf16.mxu0 0
      %770 = vmatpush1.bf16.msra.mxu0 0
      %771 = vmatprep.subr.bf16.mxu0 0
      %772 = vmatpush1.bf16.msra.mxu0 0
      %773 = vmatprep.subr.bf16.mxu0 0
      %774 = vmatpush1.bf16.msra.mxu0 0
      %775 = vmatprep.subr.bf16.mxu0 0
      %776 = vmatpush1.bf16.msra.mxu0 0
      %777 = vmatprep.subr.bf16.mxu0 0
      %778 = vmatpush1.bf16.msra.mxu0 0
      %779 = vmatprep.subr.bf16.mxu0 0
      %780 = vmatpush1.bf16.msra.mxu0 0
      %781 = vmatprep.subr.bf16.mxu0 0
      %782 = vmatpush1.bf16.msra.mxu0 0
      %783 = vmatprep.subr.bf16.mxu0 0
      %784 = vmatpush1.bf16.msra.mxu0 0
      %785 = vmatprep.mubr.bf16.mxu0 0
      %786 = vmatmul.mubr.bf16.gmra.mrb[0].mxu0 %v751
      %v787 = vpop.f32.mrb[0].mxu0
      %v788 = vadd.f32 0.0, %v787
      %v789 = vpop.f32.mrb[0].mxu0
      %v790 = vpop.f32.mrb[0].mxu0
      %v791 = vadd.f32 0.0, %v790
      %v792 = vpop.f32.mrb[0].mxu0
      %793 = vdwg.mxu0
      %v794 = vpack.c.bf16 %v791, %v788
      %v795 = vld [vmem:[%s6] sm:$0xf]
      %v796 = vld [vmem:[%s6 + $0x4] sm:$0xf]
      %v797 = vld [vmem:[%s6 + $0x8] sm:$0xf]
      %v798 = vld [vmem:[%s6 + $0xc] sm:$0xf]
      %v799 = vld [vmem:[%s6 + $0x10] sm:$0xf]
      %v800 = vld [vmem:[%s6 + $0x14] sm:$0xf]
      %v801 = vld [vmem:[%s6 + $0x18] sm:$0xf]
      %v802 = vld [vmem:[%s6 + $0x1c] sm:$0xf]
      %v803 = vld [vmem:[%s6 + $0x20] sm:$0xf]
      %v804 = vld [vmem:[%s6 + $0x24] sm:$0xf]
      %v805 = vld [vmem:[%s6 + $0x28] sm:$0xf]
      %v806 = vld [vmem:[%s6 + $0x2c] sm:$0xf]
      %v807 = vld [vmem:[%s7] sm:$0xf]
      %v808 = vld [vmem:[%s7 + $0x4] sm:$0xf]
      %v809 = vld [vmem:[%s7 + $0x8] sm:$0xf]
      %v810 = vld [vmem:[%s7 + $0xc] sm:$0xf]
      %v811 = vld [vmem:[%s7 + $0x10] sm:$0xf]
      %v812 = vld [vmem:[%s7 + $0x14] sm:$0xf]
      %v813 = vld [vmem:[%s7 + $0x18] sm:$0xf]
      %v814 = vld [vmem:[%s7 + $0x1c] sm:$0xf]
      %v815 = vld [vmem:[%s7 + $0x20] sm:$0xf]
      %v816 = vld [vmem:[%s7 + $0x24] sm:$0xf]
      %v817 = vld [vmem:[%s7 + $0x28] sm:$0xf]
      %v818 = vld [vmem:[%s7 + $0x2c] sm:$0xf]
      %v819 = vld [vmem:[%s8] sm:$0x1]
      %v820 = vld [vmem:[%s8 + $0x1] sm:$0x1]
      %v821 = vld [vmem:[%s8 + $0x2] sm:$0x1]
      %v823 = vlaneseq
      %v824 = vshrl.u32 %v823, 7
      %v825 = vsub.s32 0, %v824
      %v826 = vrot.slane %v819, %v825
      %v832 = vunpack.c.l.b16 %v795
      %v833 = vunpack.c.l.b16 %v796
      %v834 = vunpack.c.l.b16 %v797
      %v835 = vunpack.c.l.b16 %v798
      %v836 = vpack.c.b16 %v833, %v832
      %v837 = vpack.c.b16 %v835, %v834
      %v841 = vsel %vm537, %v794, 0
      %843 = vmatprep.subr.bf16.mxu0 0
      %844 = vmatpush1.bf16.msra.mxu0 %v836
      %845 = vmatprep.subr.bf16.mxu0 0
      %846 = vmatpush1.bf16.msra.mxu0 %v837
      %847 = vmatprep.subr.bf16.mxu0 0
      %848 = vmatpush1.bf16.msra.mxu0 0
      %849 = vmatprep.subr.bf16.mxu0 0
      %850 = vmatpush1.bf16.msra.mxu0 0
      %851 = vmatprep.subr.bf16.mxu0 0
      %852 = vmatpush1.bf16.msra.mxu0 0
      %853 = vmatprep.subr.bf16.mxu0 0
      %854 = vmatpush1.bf16.msra.mxu0 0
      %855 = vmatprep.subr.bf16.mxu0 0
      %856 = vmatpush1.bf16.msra.mxu0 0
      %857 = vmatprep.subr.bf16.mxu0 0
      %858 = vmatpush1.bf16.msra.mxu0 0
      %859 = vmatprep.subr.bf16.mxu0 0
      %860 = vmatpush1.bf16.msra.mxu0 0
      %861 = vmatprep.subr.bf16.mxu0 0
      %862 = vmatpush1.bf16.msra.mxu0 0
      %863 = vmatprep.subr.bf16.mxu0 0
      %864 = vmatpush1.bf16.msra.mxu0 0
      %865 = vmatprep.subr.bf16.mxu0 0
      %866 = vmatpush1.bf16.msra.mxu0 0
      %867 = vmatprep.subr.bf16.mxu0 0
      %868 = vmatpush1.bf16.msra.mxu0 0
      %869 = vmatprep.subr.bf16.mxu0 0
      %870 = vmatpush1.bf16.msra.mxu0 0
      %871 = vmatprep.subr.bf16.mxu0 0
      %872 = vmatpush1.bf16.msra.mxu0 0
      %873 = vmatprep.subr.bf16.mxu0 0
      %874 = vmatpush1.bf16.msra.mxu0 0
      %875 = vmatprep.mubr.bf16.mxu0 0
      %876 = vmatmul.mubr.bf16.gmra.mrb[0].mxu0 %v841
      %v877 = vpop.f32.mrb[0].mxu0
      %v878 = vadd.f32 %v826, %v877
      %v879 = vpop.f32.mrb[0].mxu0
      %v880 = vpop.f32.mrb[0].mxu0
      %v881 = vadd.f32 %v826, %v880
      %v882 = vpop.f32.mrb[0].mxu0
      %883 = vdwg.mxu0
      %v888 = vunpack.c.l.b16 %v807
      %v889 = vunpack.c.l.b16 %v808
      %v890 = vunpack.c.l.b16 %v809
      %v891 = vunpack.c.l.b16 %v810
      %v892 = vpack.c.b16 %v889, %v888
      %v893 = vpack.c.b16 %v891, %v890
      %v897 = vsel %vm537, %v749, 0
      %899 = vmatprep.subr.bf16.mxu0 0
      %900 = vmatpush1.bf16.msra.mxu0 %v892
      %901 = vmatprep.subr.bf16.mxu0 0
      %902 = vmatpush1.bf16.msra.mxu0 %v893
      %903 = vmatprep.subr.bf16.mxu0 0
      %904 = vmatpush1.bf16.msra.mxu0 0
      %905 = vmatprep.subr.bf16.mxu0 0
      %906 = vmatpush1.bf16.msra.mxu0 0
      %907 = vmatprep.subr.bf16.mxu0 0
      %908 = vmatpush1.bf16.msra.mxu0 0
      %909 = vmatprep.subr.bf16.mxu0 0
      %910 = vmatpush1.bf16.msra.mxu0 0
      %911 = vmatprep.subr.bf16.mxu0 0
      %912 = vmatpush1.bf16.msra.mxu0 0
      %913 = vmatprep.subr.bf16.mxu0 0
      %914 = vmatpush1.bf16.msra.mxu0 0
      %915 = vmatprep.subr.bf16.mxu0 0
      %916 = vmatpush1.bf16.msra.mxu0 0
      %917 = vmatprep.subr.bf16.mxu0 0
      %918 = vmatpush1.bf16.msra.mxu0 0
      %919 = vmatprep.subr.bf16.mxu0 0
      %920 = vmatpush1.bf16.msra.mxu0 0
      %921 = vmatprep.subr.bf16.mxu0 0
      %922 = vmatpush1.bf16.msra.mxu0 0
      %923 = vmatprep.subr.bf16.mxu0 0
      %924 = vmatpush1.bf16.msra.mxu0 0
      %925 = vmatprep.subr.bf16.mxu0 0
      %926 = vmatpush1.bf16.msra.mxu0 0
      %927 = vmatprep.subr.bf16.mxu0 0
      %928 = vmatpush1.bf16.msra.mxu0 0
      %929 = vmatprep.subr.bf16.mxu0 0
      %930 = vmatpush1.bf16.msra.mxu0 0
      %931 = vmatprep.mubr.bf16.mxu0 0
      %932 = vmatmul.mubr.bf16.gmra.mrb[0].mxu0 %v897
      %v933 = vpop.f32.mrb[0].mxu0
      %v934 = vadd.f32 0.0, %v933
      %v935 = vpop.f32.mrb[0].mxu0
      %v936 = vpop.f32.mrb[0].mxu0
      %v937 = vadd.f32 0.0, %v936
      %v938 = vpop.f32.mrb[0].mxu0
      %939 = vdwg.mxu0
      %v940 = vadd.f32 %v878, %v934
      %v941 = vadd.f32 %v881, %v937
      %v942 = vxor.u32 %v940, 2147483648
      %v943 = vxor.u32 %v941, 2147483648
      %v944 = vmul.f32 %v942, 1.442695
      %v945 = vpow.pop %v944
      %v946 = vmul.f32 %v943, 1.442695
      %v947 = vpow.pop %v946
      %v948 = vadd.f32 %v945, 1.0
      %v949 = vadd.f32 %v947, 1.0
      %v950 = vrcp.pop %v948
      %v951 = vmul.f32 1.0, %v950
      %v952 = vrcp.pop %v949
      %v953 = vmul.f32 1.0, %v952
      %v955 = vlaneseq
      %v956 = vshrl.u32 %v955, 7
      %v957 = vsub.s32 0, %v956
      %v958 = vrot.slane %v820, %v957
      %v964 = vunpack.c.l.b16 %v799
      %v965 = vunpack.c.l.b16 %v800
      %v966 = vunpack.c.l.b16 %v801
      %v967 = vunpack.c.l.b16 %v802
      %v968 = vpack.c.b16 %v965, %v964
      %v969 = vpack.c.b16 %v967, %v966
      %972 = vmatprep.subr.bf16.mxu0 0
      %973 = vmatpush1.bf16.msra.mxu0 %v968
      %974 = vmatprep.subr.bf16.mxu0 0
      %975 = vmatpush1.bf16.msra.mxu0 %v969
      %976 = vmatprep.subr.bf16.mxu0 0
      %977 = vmatpush1.bf16.msra.mxu0 0
      %978 = vmatprep.subr.bf16.mxu0 0
      %979 = vmatpush1.bf16.msra.mxu0 0
      %980 = vmatprep.subr.bf16.mxu0 0
      %981 = vmatpush1.bf16.msra.mxu0 0
      %982 = vmatprep.subr.bf16.mxu0 0
      %983 = vmatpush1.bf16.msra.mxu0 0
      %984 = vmatprep.subr.bf16.mxu0 0
      %985 = vmatpush1.bf16.msra.mxu0 0
      %986 = vmatprep.subr.bf16.mxu0 0
      %987 = vmatpush1.bf16.msra.mxu0 0
      %988 = vmatprep.subr.bf16.mxu0 0
      %989 = vmatpush1.bf16.msra.mxu0 0
      %990 = vmatprep.subr.bf16.mxu0 0
      %991 = vmatpush1.bf16.msra.mxu0 0
      %992 = vmatprep.subr.bf16.mxu0 0
      %993 = vmatpush1.bf16.msra.mxu0 0
      %994 = vmatprep.subr.bf16.mxu0 0
      %995 = vmatpush1.bf16.msra.mxu0 0
      %996 = vmatprep.subr.bf16.mxu0 0
      %997 = vmatpush1.bf16.msra.mxu0 0
      %998 = vmatprep.subr.bf16.mxu0 0
      %999 = vmatpush1.bf16.msra.mxu0 0
      %1000 = vmatprep.subr.bf16.mxu0 0
      %1001 = vmatpush1.bf16.msra.mxu0 0
      %1002 = vmatprep.subr.bf16.mxu0 0
      %1003 = vmatpush1.bf16.msra.mxu0 0
      %1004 = vmatprep.mubr.bf16.mxu0 0
      %1005 = vmatmul.mubr.bf16.gmra.mrb[0].mxu0 %v841
      %v1006 = vpop.f32.mrb[0].mxu0
      %v1007 = vadd.f32 %v958, %v1006
      %v1008 = vpop.f32.mrb[0].mxu0
      %v1009 = vpop.f32.mrb[0].mxu0
      %v1010 = vadd.f32 %v958, %v1009
      %v1011 = vpop.f32.mrb[0].mxu0
      %1012 = vdwg.mxu0
      %v1017 = vunpack.c.l.b16 %v811
      %v1018 = vunpack.c.l.b16 %v812
      %v1019 = vunpack.c.l.b16 %v813
      %v1020 = vunpack.c.l.b16 %v814
      %v1021 = vpack.c.b16 %v1018, %v1017
      %v1022 = vpack.c.b16 %v1020, %v1019
      %1025 = vmatprep.subr.bf16.mxu0 0
      %1026 = vmatpush1.bf16.msra.mxu0 %v1021
      %1027 = vmatprep.subr.bf16.mxu0 0
      %1028 = vmatpush1.bf16.msra.mxu0 %v1022
      %1029 = vmatprep.subr.bf16.mxu0 0
      %1030 = vmatpush1.bf16.msra.mxu0 0
      %1031 = vmatprep.subr.bf16.mxu0 0
      %1032 = vmatpush1.bf16.msra.mxu0 0
      %1033 = vmatprep.subr.bf16.mxu0 0
      %1034 = vmatpush1.bf16.msra.mxu0 0
      %1035 = vmatprep.subr.bf16.mxu0 0
      %1036 = vmatpush1.bf16.msra.mxu0 0
      %1037 = vmatprep.subr.bf16.mxu0 0
      %1038 = vmatpush1.bf16.msra.mxu0 0
      %1039 = vmatprep.subr.bf16.mxu0 0
      %1040 = vmatpush1.bf16.msra.mxu0 0
      %1041 = vmatprep.subr.bf16.mxu0 0
      %1042 = vmatpush1.bf16.msra.mxu0 0
      %1043 = vmatprep.subr.bf16.mxu0 0
      %1044 = vmatpush1.bf16.msra.mxu0 0
      %1045 = vmatprep.subr.bf16.mxu0 0
      %1046 = vmatpush1.bf16.msra.mxu0 0
      %1047 = vmatprep.subr.bf16.mxu0 0
      %1048 = vmatpush1.bf16.msra.mxu0 0
      %1049 = vmatprep.subr.bf16.mxu0 0
      %1050 = vmatpush1.bf16.msra.mxu0 0
      %1051 = vmatprep.subr.bf16.mxu0 0
      %1052 = vmatpush1.bf16.msra.mxu0 0
      %1053 = vmatprep.subr.bf16.mxu0 0
      %1054 = vmatpush1.bf16.msra.mxu0 0
      %1055 = vmatprep.subr.bf16.mxu0 0
      %1056 = vmatpush1.bf16.msra.mxu0 0
      %1057 = vmatprep.mubr.bf16.mxu0 0
      %1058 = vmatmul.mubr.bf16.gmra.mrb[0].mxu0 %v897
      %v1059 = vpop.f32.mrb[0].mxu0
      %v1060 = vadd.f32 0.0, %v1059
      %v1061 = vpop.f32.mrb[0].mxu0
      %v1062 = vpop.f32.mrb[0].mxu0
      %v1063 = vadd.f32 0.0, %v1062
      %v1064 = vpop.f32.mrb[0].mxu0
      %1065 = vdwg.mxu0
      %v1066 = vadd.f32 %v1007, %v1060
      %v1067 = vadd.f32 %v1010, %v1063
      %v1068 = vxor.u32 %v1066, 2147483648
      %v1069 = vxor.u32 %v1067, 2147483648
      %v1070 = vmul.f32 %v1068, 1.442695
      %v1071 = vpow.pop %v1070
      %v1072 = vmul.f32 %v1069, 1.442695
      %v1073 = vpow.pop %v1072
      %v1074 = vadd.f32 %v1071, 1.0
      %v1075 = vadd.f32 %v1073, 1.0
      %v1076 = vrcp.pop %v1074
      %v1077 = vmul.f32 1.0, %v1076
      %v1078 = vrcp.pop %v1075
      %v1079 = vmul.f32 1.0, %v1078
      %v1081 = vlaneseq
      %v1082 = vshrl.u32 %v1081, 7
      %v1083 = vsub.s32 0, %v1082
      %v1084 = vrot.slane %v821, %v1083
      %v1090 = vunpack.c.l.b16 %v803
      %v1091 = vunpack.c.l.b16 %v804
      %v1092 = vunpack.c.l.b16 %v805
      %v1093 = vunpack.c.l.b16 %v806
      %v1094 = vpack.c.b16 %v1091, %v1090
      %v1095 = vpack.c.b16 %v1093, %v1092
      %1098 = vmatprep.subr.bf16.mxu0 0
      %1099 = vmatpush1.bf16.msra.mxu0 %v1094
      %1100 = vmatprep.subr.bf16.mxu0 0
      %1101 = vmatpush1.bf16.msra.mxu0 %v1095
      %1102 = vmatprep.subr.bf16.mxu0 0
      %1103 = vmatpush1.bf16.msra.mxu0 0
      %1104 = vmatprep.subr.bf16.mxu0 0
      %1105 = vmatpush1.bf16.msra.mxu0 0
      %1106 = vmatprep.subr.bf16.mxu0 0
      %1107 = vmatpush1.bf16.msra.mxu0 0
      %1108 = vmatprep.subr.bf16.mxu0 0
      %1109 = vmatpush1.bf16.msra.mxu0 0
      %1110 = vmatprep.subr.bf16.mxu0 0
      %1111 = vmatpush1.bf16.msra.mxu0 0
      %1112 = vmatprep.subr.bf16.mxu0 0
      %1113 = vmatpush1.bf16.msra.mxu0 0
      %1114 = vmatprep.subr.bf16.mxu0 0
      %1115 = vmatpush1.bf16.msra.mxu0 0
      %1116 = vmatprep.subr.bf16.mxu0 0
      %1117 = vmatpush1.bf16.msra.mxu0 0
      %1118 = vmatprep.subr.bf16.mxu0 0
      %1119 = vmatpush1.bf16.msra.mxu0 0
      %1120 = vmatprep.subr.bf16.mxu0 0
      %1121 = vmatpush1.bf16.msra.mxu0 0
      %1122 = vmatprep.subr.bf16.mxu0 0
      %1123 = vmatpush1.bf16.msra.mxu0 0
      %1124 = vmatprep.subr.bf16.mxu0 0
      %1125 = vmatpush1.bf16.msra.mxu0 0
      %1126 = vmatprep.subr.bf16.mxu0 0
      %1127 = vmatpush1.bf16.msra.mxu0 0
      %1128 = vmatprep.subr.bf16.mxu0 0
      %1129 = vmatpush1.bf16.msra.mxu0 0
      %1130 = vmatprep.mubr.bf16.mxu0 0
      %1131 = vmatmul.mubr.bf16.gmra.mrb[0].mxu0 %v841
      %v1132 = vpop.f32.mrb[0].mxu0
      %v1133 = vadd.f32 %v1084, %v1132
      %v1134 = vpop.f32.mrb[0].mxu0
      %v1135 = vpop.f32.mrb[0].mxu0
      %v1136 = vadd.f32 %v1084, %v1135
      %v1137 = vpop.f32.mrb[0].mxu0
      %1138 = vdwg.mxu0
      %v1139 = vmul.f32 %v1077, %v524
      %v1140 = vmul.f32 %v1079, %v525
      %v1141 = vpack.c.bf16 %v1140, %v1139
      %v1146 = vunpack.c.l.b16 %v815
      %v1147 = vunpack.c.l.b16 %v816
      %v1148 = vunpack.c.l.b16 %v817
      %v1149 = vunpack.c.l.b16 %v818
      %v1150 = vpack.c.b16 %v1147, %v1146
      %v1151 = vpack.c.b16 %v1149, %v1148
      %v1155 = vsel %vm537, %v1141, 0
      %1157 = vmatprep.subr.bf16.mxu0 0
      %1158 = vmatpush1.bf16.msra.mxu0 %v1150
      %1159 = vmatprep.subr.bf16.mxu0 0
      %1160 = vmatpush1.bf16.msra.mxu0 %v1151
      %1161 = vmatprep.subr.bf16.mxu0 0
      %1162 = vmatpush1.bf16.msra.mxu0 0
      %1163 = vmatprep.subr.bf16.mxu0 0
      %1164 = vmatpush1.bf16.msra.mxu0 0
      %1165 = vmatprep.subr.bf16.mxu0 0
      %1166 = vmatpush1.bf16.msra.mxu0 0
      %1167 = vmatprep.subr.bf16.mxu0 0
      %1168 = vmatpush1.bf16.msra.mxu0 0
      %1169 = vmatprep.subr.bf16.mxu0 0
      %1170 = vmatpush1.bf16.msra.mxu0 0
      %1171 = vmatprep.subr.bf16.mxu0 0
      %1172 = vmatpush1.bf16.msra.mxu0 0
      %1173 = vmatprep.subr.bf16.mxu0 0
      %1174 = vmatpush1.bf16.msra.mxu0 0
      %1175 = vmatprep.subr.bf16.mxu0 0
      %1176 = vmatpush1.bf16.msra.mxu0 0
      %1177 = vmatprep.subr.bf16.mxu0 0
      %1178 = vmatpush1.bf16.msra.mxu0 0
      %1179 = vmatprep.subr.bf16.mxu0 0
      %1180 = vmatpush1.bf16.msra.mxu0 0
      %1181 = vmatprep.subr.bf16.mxu0 0
      %1182 = vmatpush1.bf16.msra.mxu0 0
      %1183 = vmatprep.subr.bf16.mxu0 0
      %1184 = vmatpush1.bf16.msra.mxu0 0
      %1185 = vmatprep.subr.bf16.mxu0 0
      %1186 = vmatpush1.bf16.msra.mxu0 0
      %1187 = vmatprep.subr.bf16.mxu0 0
      %1188 = vmatpush1.bf16.msra.mxu0 0
      %1189 = vmatprep.mubr.bf16.mxu0 0
      %1190 = vmatmul.mubr.bf16.gmra.mrb[0].mxu0 %v1155
      %v1191 = vpop.f32.mrb[0].mxu0
      %v1192 = vadd.f32 0.0, %v1191
      %v1193 = vpop.f32.mrb[0].mxu0
      %v1194 = vpop.f32.mrb[0].mxu0
      %v1195 = vadd.f32 0.0, %v1194
      %v1196 = vpop.f32.mrb[0].mxu0
      %1197 = vdwg.mxu0
      %v1198 = vadd.f32 %v1133, %v1192
      %v1199 = vadd.f32 %v1136, %v1195
      %v1200 = vtanh.pop %v1198
      %v1201 = vtanh.pop %v1199
      %v1202 = vsub.f32 1.0, %v951
      %v1203 = vsub.f32 1.0, %v953
      %v1204 = vmul.f32 %v1202, %v524
      %v1205 = vmul.f32 %v1203, %v525
      %v1206 = vmul.f32 %v951, %v1200
      %v1207 = vmul.f32 %v953, %v1201
      %v1208 = vadd.f32 %v1204, %v1206
      %v1209 = vadd.f32 %v1205, %v1207
      %1210 = vst.msk [vmem:[%s516] sm:$0xff] %vm537, %v1208
      %1211 = vst.msk [vmem:[%s516 + $0x8] sm:$0xff] %vm537, %v1209
      %v1212 = vsel %vm537, %v1208, 0.0
      %v1213 = vsel %vm537, %v1209, 0.0
      %v1214 = vadd.f32 %v1212, %v1213
      %v1215 = vrot.slane %v1214, 4
      %v1216 = vadd.f32 %v1214, %v1215
      %v1217 = vrot.slane %v1216, 2
      %v1218 = vadd.f32 %v1216, %v1217
      %v1219 = vrot.slane %v1218, 1
      %v1220 = vadd.f32 %v1218, %v1219
      %v1221 = vrcp.pop 16.0
      %v1222 = vmul.f32 %v1220, %v1221
      %vm1223 = vcmask 253952
      %1224 = vst.msk [vmem:[%s519] sm:$0x1] %vm1223, %v1222
      %v1225 = vsel %vm696, %v744, 0.0
      %1226 = vadd.xlane.f32.xlu0 %v1225
      %v1227 = vpop.xlane.xlu0 %1226
      %v1228 = vsel %vm696, %v745, 0.0
      %1229 = vadd.xlane.f32.xlu0 %v1228
      %v1230 = vpop.xlane.xlu0 %1229
      %v1231 = vpack.c.bf16 %v527, %v526
      %1232 = vmatprep.subr.bf16.mxu0 0
      %1233 = vmatpush1.bf16.msra.mxu0 %v1231
      %1234 = vmatprep.subr.bf16.mxu0 0
      %1235 = vmatpush1.bf16.msra.mxu0 0
      %1236 = vmatprep.subr.bf16.mxu0 0
      %1237 = vmatpush1.bf16.msra.mxu0 0
      %1238 = vmatprep.subr.bf16.mxu0 0
      %1239 = vmatpush1.bf16.msra.mxu0 0
      %1240 = vmatprep.subr.bf16.mxu0 0
      %1241 = vmatpush1.bf16.msra.mxu0 0
      %1242 = vmatprep.subr.bf16.mxu0 0
      %1243 = vmatpush1.bf16.msra.mxu0 0
      %1244 = vmatprep.subr.bf16.mxu0 0
      %1245 = vmatpush1.bf16.msra.mxu0 0
      %1246 = vmatprep.subr.bf16.mxu0 0
      %1247 = vmatpush1.bf16.msra.mxu0 0
      %1248 = vmatprep.subr.bf16.mxu0 0
      %1249 = vmatpush1.bf16.msra.mxu0 0
      %1250 = vmatprep.subr.bf16.mxu0 0
      %1251 = vmatpush1.bf16.msra.mxu0 0
      %1252 = vmatprep.subr.bf16.mxu0 0
      %1253 = vmatpush1.bf16.msra.mxu0 0
      %1254 = vmatprep.subr.bf16.mxu0 0
      %1255 = vmatpush1.bf16.msra.mxu0 0
      %1256 = vmatprep.subr.bf16.mxu0 0
      %1257 = vmatpush1.bf16.msra.mxu0 0
      %1258 = vmatprep.subr.bf16.mxu0 0
      %1259 = vmatpush1.bf16.msra.mxu0 0
      %1260 = vmatprep.subr.bf16.mxu0 0
      %1261 = vmatpush1.bf16.msra.mxu0 0
      %1262 = vmatprep.subr.bf16.mxu0 0
      %1263 = vmatpush1.bf16.msra.mxu0 0
      %1264 = vmatprep.mubr.bf16.mxu0 0
      %1265 = vmatmul.mubr.bf16.gmra.mrb[0].mxu0 %v751
      %v1266 = vpop.f32.mrb[0].mxu0
      %v1267 = vadd.f32 0.0, %v1266
      %v1268 = vpop.f32.mrb[0].mxu0
      %v1269 = vpop.f32.mrb[0].mxu0
      %v1270 = vadd.f32 0.0, %v1269
      %v1271 = vpop.f32.mrb[0].mxu0
      %1272 = vdwg.mxu0
      %v1273 = vmul.f32 %v526, %v526
      %v1274 = vmul.f32 %v527, %v527
      %v1275 = vsel %vm537, %v1273, 0.0
      %1276 = vadd.xlane.f32.xlu0 %v1275
      %v1277 = vpop.xlane.xlu0 %1276
      %v1278 = vsel %vm537, %v1274, 0.0
      %1279 = vadd.xlane.f32.xlu0 %v1278
      %v1280 = vpop.xlane.xlu0 %1279
      %v1281 = vmul.f32 %v1227, %v1277
      %v1282 = vmul.f32 %v1230, %v1280
      %vm1283 = vcmask 7168
      %v1284 = vsel %vm1283, %v1281, 0.0
      %v1285 = vsel %vm1283, %v1282, 0.0
      %v1286 = vadd.f32 %v1284, %v1285
      %1287 = vadd.xlane.f32.xlu0 %v1286
      %v1288 = vpop.xlane.xlu0 %1287
      %v1289 = vrot.slane %v1288, 4
      %v1290 = vadd.f32 %v1288, %v1289
      %v1291 = vrot.slane %v1290, 2
      %v1292 = vadd.f32 %v1290, %v1291
      %v1293 = vrot.slane %v1292, 1
      %v1294 = vadd.f32 %v1292, %v1293
      %s1295 = vtos %v1294
      %v1296 = vmul.f32 %v1267, %v526
      %v1297 = vmul.f32 %v1270, %v527
      %v1298 = vsel %vm537, %v1296, 0.0
      %v1299 = vsel %vm537, %v1297, 0.0
      %v1300 = vadd.f32 %v1298, %v1299
      %1301 = vadd.xlane.f32.xlu0 %v1300
      %v1302 = vpop.xlane.xlu0 %1301
      %v1303 = vrot.slane %v1302, 4
      %v1304 = vadd.f32 %v1302, %v1303
      %v1305 = vrot.slane %v1304, 2
      %v1306 = vadd.f32 %v1304, %v1305
      %v1307 = vrot.slane %v1306, 1
      %v1308 = vadd.f32 %v1306, %v1307
      %s1309 = vtos %v1308
      %s1310 = ssub.f32 %s1295, %s1309
      %v1311 = vrcp.pop 256.0
      %s1312 = vtos %v1311
      %s1313 = smul.f32 %s1310, %s1312
      %v1314 = vmax.f32 %v1227, 0.0
      %v1315 = vmax.f32 %v1230, 0.0
      %v1316 = vadd.f32 %v1314, 1e-08
      %v1317 = vadd.f32 %v1315, 1e-08
      %v1318 = vlog2.pop %v1316
      %v1319 = vmul.f32 %v1318, 0.6931472
      %v1320 = vlog2.pop %v1317
      %v1321 = vmul.f32 %v1320, 0.6931472
      %v1322 = vsel %vm1283, %v1319, 0.0
      %v1323 = vsel %vm1283, %v1321, 0.0
      %v1324 = vadd.f32 %v1322, %v1323
      %1325 = vadd.xlane.f32.xlu0 %v1324
      %v1326 = vpop.xlane.xlu0 %1325
      %v1327 = vrot.slane %v1326, 4
      %v1328 = vadd.f32 %v1326, %v1327
      %v1329 = vrot.slane %v1328, 2
      %v1330 = vadd.f32 %v1328, %v1329
      %v1331 = vrot.slane %v1330, 1
      %v1332 = vadd.f32 %v1330, %v1331
      %s1333 = vtos %v1332
      %v1334 = vrcp.pop 16.0
      %s1335 = vtos %v1334
      %s1336 = smul.f32 %s1333, %s1335
      %s1337 = ssub.f32 0.0, %s1336
      %v1338 = vmul.f32 %v744, %v744
      %v1339 = vmul.f32 %v745, %v745
      %v1340 = vsel %vm696, %v1338, 0.0
      %v1341 = vsel %vm696, %v1339, 0.0
      %v1342 = vadd.f32 %v1340, %v1341
      %1343 = vadd.xlane.f32.xlu0 %v1342
      %v1344 = vpop.xlane.xlu0 %1343
      %v1345 = vrot.slane %v1344, 4
      %v1346 = vadd.f32 %v1344, %v1345
      %v1347 = vrot.slane %v1346, 2
      %v1348 = vadd.f32 %v1346, %v1347
      %v1349 = vrot.slane %v1348, 1
      %v1350 = vadd.f32 %v1348, %v1349
      %s1351 = vtos %v1350
      %v1352 = vrcp.pop 256.0
      %s1353 = vtos %v1352
      %s1354 = smul.f32 %s1351, %s1353
      %v1355 = vld [vmem:[%s496] sm:$0xff]
      %v1356 = vld [vmem:[%s496 + $0x8] sm:$0xff]
      %v1357 = vsub.f32 %v744, %v1355
      %v1358 = vsub.f32 %v745, %v1356
      %v1359 = vmul.f32 %v1357, %v1357
      %v1360 = vmul.f32 %v1358, %v1358
      %v1361 = vsel %vm696, %v1359, 0.0
      %v1362 = vsel %vm696, %v1360, 0.0
      %v1363 = vadd.f32 %v1361, %v1362
      %1364 = vadd.xlane.f32.xlu0 %v1363
      %v1365 = vpop.xlane.xlu0 %1364
      %v1366 = vrot.slane %v1365, 4
      %v1367 = vadd.f32 %v1365, %v1366
      %v1368 = vrot.slane %v1367, 2
      %v1369 = vadd.f32 %v1367, %v1368
      %v1370 = vrot.slane %v1369, 1
      %v1371 = vadd.f32 %v1369, %v1370
      %s1372 = vtos %v1371
      %v1373 = vmul.f32 %v730, %v730
      %v1374 = vmul.f32 %v731, %v731
      %v1375 = vsel %vm696, %v1373, 0.0
      %v1376 = vsel %vm696, %v1374, 0.0
      %v1377 = vadd.f32 %v1375, %v1376
      %1378 = vadd.xlane.f32.xlu0 %v1377
      %v1379 = vpop.xlane.xlu0 %1378
      %v1380 = vrot.slane %v1379, 4
      %v1381 = vadd.f32 %v1379, %v1380
      %v1382 = vrot.slane %v1381, 2
      %v1383 = vadd.f32 %v1381, %v1382
      %v1384 = vrot.slane %v1383, 1
      %v1385 = vadd.f32 %v1383, %v1384
      %s1386 = vtos %v1385
      %v1387 = vlaneseq
      %v1388 = vand.u32 %v1387, 127
      %vm1389 = vcmp.eq.s32.totalorder %v1388, 0
      %vm1390 = vcmp.eq.s32.totalorder %v1388, 1
      %vm1391 = vcmp.eq.s32.totalorder %v1388, 2
      %vm1392 = vcmp.eq.s32.totalorder %v1388, 3
      %vm1393 = vcmp.eq.s32.totalorder %v1388, 4
      %v1394 = vstv %s1386
      %v1395 = vsel %vm1393, %v1394, 0.0
      %v1396 = vstv %s1372
      %v1397 = vsel %vm1392, %v1396, %v1395
      %v1398 = vstv %s1354
      %v1399 = vsel %vm1391, %v1398, %v1397
      %v1400 = vstv %s1337
      %v1401 = vsel %vm1390, %v1400, %v1399
      %v1402 = vstv %s1313
      %v1403 = vsel %vm1389, %v1402, %v1401
      %vm1404 = vcmask 57344
      %1405 = vst.msk [vmem:[%s522] sm:$0x1] %vm1404, %v1403
      %p1406 = scmp.lt.s32.totalorder %s24, 1
      %s1407 = scalar_select %p1406, %s24, 1
      %s1408 = smul.addr %s1407, 2
      %s1409 = smul.addr %s1408, 8
      %s1410 = scalar_lea.vmem %s9, %s1409
      %p1411 = scmp.lt.s32.totalorder %s24, 1
      %s1412 = scalar_select %p1411, %s24, 1
      %s1413 = smul.addr %s1412, 2
      %s1414 = smul.addr %s1413, 8
      %s1415 = scalar_lea.vmem %s10, %s1414
      %p1416 = scmp.lt.s32.totalorder %s24, 1
      %s1417 = scalar_select %p1416, %s24, 1
      %s1418 = scalar_lea.vmem %s11, %s1417
      %p1419 = scmp.lt.s32.totalorder %s24, 1
      %s1420 = scalar_select %p1419, %s24, 1
      %s1421 = scalar_lea.vmem %s12, %s1420
      // Predicated region
      $region57: #{iggcn_forward.4} parent=55 // pred_check
        %p1422 = pneg %p256
      $region58: #{iggcn_forward.4} parent=55 // pred_check_branch
        %1424 = sbr.rel (%p1422) target = $region60
      $region59: #{iggcn_forward.4} parent=55 // pred_region
        _
      $region60: #{iggcn_forward.4} parent=55 // pred_fallthru
        _
      // Predicated region
      $region61: #{iggcn_forward.4} parent=55 // pred_check
        %p1425 = pneg %p282
      $region62: #{iggcn_forward.4} parent=55 // pred_check_branch
        %1427 = sbr.rel (%p1425) target = $region64
      $region63: #{iggcn_forward.4} parent=55 // pred_region
        _
      $region64: #{iggcn_forward.4} parent=55 // pred_fallthru
        _
      // Predicated region
      $region65: #{iggcn_forward.4} parent=55 // pred_check
        %p1428 = pneg %p308
      $region66: #{iggcn_forward.4} parent=55 // pred_check_branch
        %1430 = sbr.rel (%p1428) target = $region68
      $region67: #{iggcn_forward.4} parent=55 // pred_region
        _
      $region68: #{iggcn_forward.4} parent=55 // pred_fallthru
        _
      // Predicated region
      $region69: #{iggcn_forward.4} parent=55 // pred_check
        %p1431 = pneg %p334
      $region70: #{iggcn_forward.4} parent=55 // pred_check_branch
        %1433 = sbr.rel (%p1431) target = $region72
      $region71: #{iggcn_forward.4} parent=55 // pred_region
        _
      $region72: #{iggcn_forward.4} parent=55 // pred_fallthru
        _
    $region56: #{iggcn_forward.4} parent=5 // pred_fallthru
      _
    %p1434 = scmp.le.s32.totalorder 2, %s19
    // Predicated region
    $region73: #{iggcn_forward.4} parent=5 // pred_check
      %p1435 = pneg %p1434
    $region74: #{iggcn_forward.4} parent=5 // pred_check_branch
      %1437 = sbr.rel (%p1435) target = $region76
    $region75: #{iggcn_forward.4} parent=5 // pred_region
      %s1438 = ssub.s32 %s19, 2
      // Predicated region
      $region77: #{iggcn_forward.4} parent=75 // pred_check
        %p1439 = pneg %p262
      $region78: #{iggcn_forward.4} parent=75 // pred_check_branch
        %1441 = sbr.rel (%p1439) target = $region80
      $region79: #{iggcn_forward.4} parent=75 // pred_region
        %p1442 = scmp.lt.s32.totalorder %s25, 1
        %s1443 = scalar_select %p1442, %s25, 1
        %s1444 = smul.addr %s1443, 2
        %s1445 = smul.addr %s1444, 8
        %s1446 = scalar_lea.vmem %s9, %s1445
      $region80: #{iggcn_forward.4} parent=75 // pred_fallthru
        _
      // Predicated region
      $region81: #{iggcn_forward.4} parent=75 // pred_check
        %p1447 = pneg %p288
      $region82: #{iggcn_forward.4} parent=75 // pred_check_branch
        %1449 = sbr.rel (%p1447) target = $region84
      $region83: #{iggcn_forward.4} parent=75 // pred_region
        %p1450 = scmp.lt.s32.totalorder %s25, 1
        %s1451 = scalar_select %p1450, %s25, 1
        %s1452 = smul.addr %s1451, 2
        %s1453 = smul.addr %s1452, 8
        %s1454 = scalar_lea.vmem %s10, %s1453
      $region84: #{iggcn_forward.4} parent=75 // pred_fallthru
        _
      // Predicated region
      $region85: #{iggcn_forward.4} parent=75 // pred_check
        %p1455 = pneg %p314
      $region86: #{iggcn_forward.4} parent=75 // pred_check_branch
        %1457 = sbr.rel (%p1455) target = $region88
      $region87: #{iggcn_forward.4} parent=75 // pred_region
        %p1458 = scmp.lt.s32.totalorder %s25, 1
        %s1459 = scalar_select %p1458, %s25, 1
        %s1460 = scalar_lea.vmem %s11, %s1459
      $region88: #{iggcn_forward.4} parent=75 // pred_fallthru
        _
      // Predicated region
      $region89: #{iggcn_forward.4} parent=75 // pred_check
        %p1461 = pneg %p340
      $region90: #{iggcn_forward.4} parent=75 // pred_check_branch
        %1463 = sbr.rel (%p1461) target = $region92
      $region91: #{iggcn_forward.4} parent=75 // pred_region
        %p1464 = scmp.lt.s32.totalorder %s25, 1
        %s1465 = scalar_select %p1464, %s25, 1
        %s1466 = scalar_lea.vmem %s12, %s1465
      $region92: #{iggcn_forward.4} parent=75 // pred_fallthru
        _
    $region76: #{iggcn_forward.4} parent=5 // pred_fallthru
      _
  $region6: #{iggcn_forward.4} parent=0 // loop_footer
    %s23 = sadd.s32 1, %s19
  $region7: #{iggcn_forward.4} parent=0 // loop_footer_branch
    %18 = sbr.rel target = $region3
  $region8: #{iggcn_forward.4} parent=0 // loop_exit
    _

// kernel: iggcn_forward.5
$region0: #{iggcn_forward.5}
  #allocation0 [shape = 'u32[]', space=smem, size = 0x4, offset = 0x4, fixed_abs, tag = 'smem constant byte address 0x4 - core index']
  #allocation1 [shape = 'u32[144,128]{1,0:T(1,128)}', space=vmem, size = 0x12000, scoped, tag = 'internal scratch']
  #allocation2 [shape = 'f32[16,128]{1,0:T(8,128)}', space=vmem, size = 0x2000, scoped, tag = 'scratch operand']
  %s0 = inlined_call_operand.vmem [shape: f32[2,16,32], index: 0, kind: input, shape index: {}]
  %s1 = inlined_call_operand.vmem [shape: f32[2,16,32], index: 1, kind: input, shape index: {}]
  %s2 = inlined_call_operand.vmem [shape: f32[2,16,16], index: 2, kind: input, shape index: {}]
  %s3 = inlined_call_operand.vmem [shape: f32[2,16,16], index: 3, kind: input, shape index: {}]
  %s4 = inlined_call_operand.vmem [shape: f32[2,16,16], index: 4, kind: input, shape index: {}]
  %s5 = inlined_call_operand.vmem [shape: f32[4,32], index: 5, kind: input, shape index: {}]
  %s6 = inlined_call_operand.vmem [shape: bf16[3,32,32], index: 6, kind: input, shape index: {}]
  %s7 = inlined_call_operand.vmem [shape: bf16[3,32,32], index: 7, kind: input, shape index: {}]
  %s8 = inlined_call_operand.vmem [shape: f32[3,1,32], index: 8, kind: input, shape index: {}]
  %s9 = inlined_call_operand.hbm [shape: f32[2,16,16], index: 9, kind: output, shape index: {0}]
  %s10 = inlined_call_operand.hbm [shape: f32[2,16,32], index: 10, kind: output, shape index: {1}]
  %s11 = inlined_call_operand.vmem [shape: f32[2,1,32], index: 11, kind: output, shape index: {2}]
  %s12 = inlined_call_operand.vmem [shape: f32[2,1,8], index: 12, kind: output, shape index: {3}]
  %13 = xla_tuple %s9, %s10, %s11, %s12
  %s14 = sld [smem:[#allocation0]]
  $region93: #{iggcn_forward.5} parent=0
    _
  %s16 = ssub.s32 1, %s14
  %s17 = scalar_select 0, %s16, %s14
  $region1: #{iggcn_forward.5} parent=0
    #allocation3 [shape = 'u8[16384]{0}', space=vmem, size = 0x4000, scoped, tag = 'output window, operand 0']
    #allocation4 [shape = 's32[2]{0}', space=sflag, size = 0x8, scoped, tag = 'scoped memory for iggcn_forward.5']
    #allocation5 [shape = 'u8[16384]{0}', space=vmem, size = 0x4000, scoped, tag = 'output window, operand 1']
    #allocation6 [shape = 's32[2]{0}', space=sflag, size = 0x8, scoped, tag = 'scoped memory for iggcn_forward.5']
    %18 = vsyncpa [#allocation4], 0
    %s19 = scalar_lea.sflag [#allocation4], 1
    %20 = vsyncpa %s19, 0
    %21 = vsyncpa [#allocation6], 0
    %s22 = scalar_lea.sflag [#allocation6], 1
    %23 = vsyncpa %s22, 0
    loop: start=0, step=1, limit=4
    $region2: #{iggcn_forward.5} parent=1 // loop_pre_header
      _
    $region3: #{iggcn_forward.5} parent=1 // loop_header
      %s25 = sphi 0, %s29
      %p26 = scmp.ge.s32.totalorder %s25, 4
      %s35 = sphi 0, %s37
      %s38 = sphi 0, %s35
      %s39 = sphi 0, %s38
      %s55 = sphi 0, %s39
      %s61 = sphi 0, %s63
      %s64 = sphi 0, %s61
      %s65 = sphi 0, %s64
      %s81 = sphi 0, %s65
      %s87 = sphi 0, %s89
      %s90 = sphi 0, %s87
      %s91 = sphi 0, %s90
      %s107 = sphi 0, %s91
      %s113 = sphi 0, %s115
      %s116 = sphi 0, %s113
      %s117 = sphi 0, %s116
      %s133 = sphi 0, %s117
      %s139 = sphi 0, %s141
      %s142 = sphi 0, %s139
      %s143 = sphi 0, %s142
      %s159 = sphi 0, %s143
      %s163 = sphi 0, %s163
      %s165 = sphi 0, %s163
      %s166 = sphi 0, %s165
      %s180 = sphi 0, %s166
      %s184 = sphi 0, %s184
      %s186 = sphi 0, %s184
      %s187 = sphi 0, %s186
      %s201 = sphi 0, %s187
      %s205 = sphi 0, %s205
      %s207 = sphi 0, %s205
      %s208 = sphi 0, %s207
      %s222 = sphi 0, %s208
      %s226 = sphi 0, %s226
      %s228 = sphi 0, %s226
      %s229 = sphi 0, %s228
      %s243 = sphi 0, %s229
      %s249 = sphi 0, %s251
      %s252 = sphi 0, %s249
      %s253 = sphi 0, %s252
      %s269 = sphi 0, %s253
      %s275 = sphi 0, %s277
      %s278 = sphi 0, %s275
      %s279 = sphi 0, %s278
      %s295 = sphi 0, %s279
      %s301 = sphi 0, %s303
      %s304 = sphi 0, %s301
      %s305 = sphi 0, %s304
      %s321 = sphi 0, %s305
      %s327 = sphi 0, %s329
      %s330 = sphi 0, %s327
      %s331 = sphi 0, %s330
      %s347 = sphi 0, %s331
    $region4: #{iggcn_forward.5} parent=1 // loop_header_branch
      %28 = sbr.rel (%p26) target = $region8
    $region5: #{iggcn_forward.5} parent=1 // loop_body
      %s30 = ssub.s32 %s25, 1
      %s31 = ssub.s32 %s25, 2
      %s32 = sadd.s32 %s25, 1
      %s33 = ssub.s32 %s25, %s32
      %p34 = scmp.eq.s32.totalorder %s33, 0
      %s36 = sadd.s32 %s35, 1
      %s37 = scalar_select %p34, %s35, %s36
      %p40 = pneg %p34
      %p41 = scmp.eq.s32.totalorder %s25, 1
      %p42 = por %p40, %p41
      %p43 = scmp.ne.s32.totalorder %s35, %s38
      %p44 = scmp.eq.s32.totalorder %s25, 0
      %p45 = por %p43, %p44
      %p46 = scmp.ne.s32.totalorder %s35, %s38
      %p47 = scmp.eq.s32.totalorder %s30, 1
      %p48 = por %p46, %p47
      %p49 = scmp.ne.s32.totalorder %s38, %s39
      %p50 = scmp.eq.s32.totalorder %s30, 0
      %p51 = por %p49, %p50
      %p52 = scmp.ne.s32.totalorder %s38, %s39
      %p53 = scmp.eq.s32.totalorder %s31, 1
      %p54 = por %p52, %p53
      %p56 = scmp.ne.s32.totalorder %s39, %s55
      %p57 = scmp.eq.s32.totalorder %s31, 0
      %p58 = por %p56, %p57
      %s59 = ssub.s32 %s25, %s32
      %p60 = scmp.eq.s32.totalorder %s59, 0
      %s62 = sadd.s32 %s61, 1
      %s63 = scalar_select %p60, %s61, %s62
      %p66 = pneg %p60
      %p67 = scmp.eq.s32.totalorder %s25, 1
      %p68 = por %p66, %p67
      %p69 = scmp.ne.s32.totalorder %s61, %s64
      %p70 = scmp.eq.s32.totalorder %s25, 0
      %p71 = por %p69, %p70
      %p72 = scmp.ne.s32.totalorder %s61, %s64
      %p73 = scmp.eq.s32.totalorder %s30, 1
      %p74 = por %p72, %p73
      %p75 = scmp.ne.s32.totalorder %s64, %s65
      %p76 = scmp.eq.s32.totalorder %s30, 0
      %p77 = por %p75, %p76
      %p78 = scmp.ne.s32.totalorder %s64, %s65
      %p79 = scmp.eq.s32.totalorder %s31, 1
      %p80 = por %p78, %p79
      %p82 = scmp.ne.s32.totalorder %s65, %s81
      %p83 = scmp.eq.s32.totalorder %s31, 0
      %p84 = por %p82, %p83
      %s85 = ssub.s32 %s25, %s32
      %p86 = scmp.eq.s32.totalorder %s85, 0
      %s88 = sadd.s32 %s87, 1
      %s89 = scalar_select %p86, %s87, %s88
      %p92 = pneg %p86
      %p93 = scmp.eq.s32.totalorder %s25, 1
      %p94 = por %p92, %p93
      %p95 = scmp.ne.s32.totalorder %s87, %s90
      %p96 = scmp.eq.s32.totalorder %s25, 0
      %p97 = por %p95, %p96
      %p98 = scmp.ne.s32.totalorder %s87, %s90
      %p99 = scmp.eq.s32.totalorder %s30, 1
      %p100 = por %p98, %p99
      %p101 = scmp.ne.s32.totalorder %s90, %s91
      %p102 = scmp.eq.s32.totalorder %s30, 0
      %p103 = por %p101, %p102
      %p104 = scmp.ne.s32.totalorder %s90, %s91
      %p105 = scmp.eq.s32.totalorder %s31, 1
      %p106 = por %p104, %p105
      %p108 = scmp.ne.s32.totalorder %s91, %s107
      %p109 = scmp.eq.s32.totalorder %s31, 0
      %p110 = por %p108, %p109
      %s111 = ssub.s32 %s25, %s32
      %p112 = scmp.eq.s32.totalorder %s111, 0
      %s114 = sadd.s32 %s113, 1
      %s115 = scalar_select %p112, %s113, %s114
      %p118 = pneg %p112
      %p119 = scmp.eq.s32.totalorder %s25, 1
      %p120 = por %p118, %p119
      %p121 = scmp.ne.s32.totalorder %s113, %s116
      %p122 = scmp.eq.s32.totalorder %s25, 0
      %p123 = por %p121, %p122
      %p124 = scmp.ne.s32.totalorder %s113, %s116
      %p125 = scmp.eq.s32.totalorder %s30, 1
      %p126 = por %p124, %p125
      %p127 = scmp.ne.s32.totalorder %s116, %s117
      %p128 = scmp.eq.s32.totalorder %s30, 0
      %p129 = por %p127, %p128
      %p130 = scmp.ne.s32.totalorder %s116, %s117
      %p131 = scmp.eq.s32.totalorder %s31, 1
      %p132 = por %p130, %p131
      %p134 = scmp.ne.s32.totalorder %s117, %s133
      %p135 = scmp.eq.s32.totalorder %s31, 0
      %p136 = por %p134, %p135
      %s137 = ssub.s32 %s25, %s32
      %p138 = scmp.eq.s32.totalorder %s137, 0
      %s140 = sadd.s32 %s139, 1
      %s141 = scalar_select %p138, %s139, %s140
      %p144 = pneg %p138
      %p145 = scmp.eq.s32.totalorder %s25, 1
      %p146 = por %p144, %p145
      %p147 = scmp.ne.s32.totalorder %s139, %s142
      %p148 = scmp.eq.s32.totalorder %s25, 0
      %p149 = por %p147, %p148
      %p150 = scmp.ne.s32.totalorder %s139, %s142
      %p151 = scmp.eq.s32.totalorder %s30, 1
      %p152 = por %p150, %p151
      %p153 = scmp.ne.s32.totalorder %s142, %s143
      %p154 = scmp.eq.s32.totalorder %s30, 0
      %p155 = por %p153, %p154
      %p156 = scmp.ne.s32.totalorder %s142, %s143
      %p157 = scmp.eq.s32.totalorder %s31, 1
      %p158 = por %p156, %p157
      %p160 = scmp.ne.s32.totalorder %s143, %s159
      %p161 = scmp.eq.s32.totalorder %s31, 0
      %p162 = por %p160, %p161
      %s164 = sadd.s32 %s163, 1
      %p167 = scmp.eq.s32.totalorder %s25, 1
      %p168 = scmp.ne.s32.totalorder %s163, %s165
      %p169 = scmp.eq.s32.totalorder %s25, 0
      %p170 = por %p168, %p169
      %p171 = scmp.ne.s32.totalorder %s163, %s165
      %p172 = scmp.eq.s32.totalorder %s30, 1
      %p173 = por %p171, %p172
      %p174 = scmp.ne.s32.totalorder %s165, %s166
      %p175 = scmp.eq.s32.totalorder %s30, 0
      %p176 = por %p174, %p175
      %p177 = scmp.ne.s32.totalorder %s165, %s166
      %p178 = scmp.eq.s32.totalorder %s31, 1
      %p179 = por %p177, %p178
      %p181 = scmp.ne.s32.totalorder %s166, %s180
      %p182 = scmp.eq.s32.totalorder %s31, 0
      %p183 = por %p181, %p182
      %s185 = sadd.s32 %s184, 1
      %p188 = scmp.eq.s32.totalorder %s25, 1
      %p189 = scmp.ne.s32.totalorder %s184, %s186
      %p190 = scmp.eq.s32.totalorder %s25, 0
      %p191 = por %p189, %p190
      %p192 = scmp.ne.s32.totalorder %s184, %s186
      %p193 = scmp.eq.s32.totalorder %s30, 1
      %p194 = por %p192, %p193
      %p195 = scmp.ne.s32.totalorder %s186, %s187
      %p196 = scmp.eq.s32.totalorder %s30, 0
      %p197 = por %p195, %p196
      %p198 = scmp.ne.s32.totalorder %s186, %s187
      %p199 = scmp.eq.s32.totalorder %s31, 1
      %p200 = por %p198, %p199
      %p202 = scmp.ne.s32.totalorder %s187, %s201
      %p203 = scmp.eq.s32.totalorder %s31, 0
      %p204 = por %p202, %p203
      %s206 = sadd.s32 %s205, 1
      %p209 = scmp.eq.s32.totalorder %s25, 1
      %p210 = scmp.ne.s32.totalorder %s205, %s207
      %p211 = scmp.eq.s32.totalorder %s25, 0
      %p212 = por %p210, %p211
      %p213 = scmp.ne.s32.totalorder %s205, %s207
      %p214 = scmp.eq.s32.totalorder %s30, 1
      %p215 = por %p213, %p214
      %p216 = scmp.ne.s32.totalorder %s207, %s208
      %p217 = scmp.eq.s32.totalorder %s30, 0
      %p218 = por %p216, %p217
      %p219 = scmp.ne.s32.totalorder %s207, %s208
      %p220 = scmp.eq.s32.totalorder %s31, 1
      %p221 = por %p219, %p220
      %p223 = scmp.ne.s32.totalorder %s208, %s222
      %p224 = scmp.eq.s32.totalorder %s31, 0
      %p225 = por %p223, %p224
      %s227 = sadd.s32 %s226, 1
      %p230 = scmp.eq.s32.totalorder %s25, 1
      %p231 = scmp.ne.s32.totalorder %s226, %s228
      %p232 = scmp.eq.s32.totalorder %s25, 0
      %p233 = por %p231, %p232
      %p234 = scmp.ne.s32.totalorder %s226, %s228
      %p235 = scmp.eq.s32.totalorder %s30, 1
      %p236 = por %p234, %p235
      %p237 = scmp.ne.s32.totalorder %s228, %s229
      %p238 = scmp.eq.s32.totalorder %s30, 0
      %p239 = por %p237, %p238
      %p240 = scmp.ne.s32.totalorder %s228, %s229
      %p241 = scmp.eq.s32.totalorder %s31, 1
      %p242 = por %p240, %p241
      %p244 = scmp.ne.s32.totalorder %s229, %s243
      %p245 = scmp.eq.s32.totalorder %s31, 0
      %p246 = por %p244, %p245
      %s247 = ssub.s32 %s25, %s32
      %p248 = scmp.eq.s32.totalorder %s247, 0
      %s250 = sadd.s32 %s249, 1
      %s251 = scalar_select %p248, %s249, %s250
      %p254 = pneg %p248
      %p255 = scmp.eq.s32.totalorder %s25, 1
      %p256 = por %p254, %p255
      %p257 = scmp.ne.s32.totalorder %s249, %s252
      %p258 = scmp.eq.s32.totalorder %s25, 0
      %p259 = por %p257, %p258
      %p260 = scmp.ne.s32.totalorder %s249, %s252
      %p261 = scmp.eq.s32.totalorder %s30, 1
      %p262 = por %p260, %p261
      %p263 = scmp.ne.s32.totalorder %s252, %s253
      %p264 = scmp.eq.s32.totalorder %s30, 0
      %p265 = por %p263, %p264
      %p266 = scmp.ne.s32.totalorder %s252, %s253
      %p267 = scmp.eq.s32.totalorder %s31, 1
      %p268 = por %p266, %p267
      %p270 = scmp.ne.s32.totalorder %s253, %s269
      %p271 = scmp.eq.s32.totalorder %s31, 0
      %p272 = por %p270, %p271
      %s273 = ssub.s32 %s25, %s32
      %p274 = scmp.eq.s32.totalorder %s273, 0
      %s276 = sadd.s32 %s275, 1
      %s277 = scalar_select %p274, %s275, %s276
      %p280 = pneg %p274
      %p281 = scmp.eq.s32.totalorder %s25, 1
      %p282 = por %p280, %p281
      %p283 = scmp.ne.s32.totalorder %s275, %s278
      %p284 = scmp.eq.s32.totalorder %s25, 0
      %p285 = por %p283, %p284
      %p286 = scmp.ne.s32.totalorder %s275, %s278
      %p287 = scmp.eq.s32.totalorder %s30, 1
      %p288 = por %p286, %p287
      %p289 = scmp.ne.s32.totalorder %s278, %s279
      %p290 = scmp.eq.s32.totalorder %s30, 0
      %p291 = por %p289, %p290
      %p292 = scmp.ne.s32.totalorder %s278, %s279
      %p293 = scmp.eq.s32.totalorder %s31, 1
      %p294 = por %p292, %p293
      %p296 = scmp.ne.s32.totalorder %s279, %s295
      %p297 = scmp.eq.s32.totalorder %s31, 0
      %p298 = por %p296, %p297
      %s299 = ssub.s32 %s25, %s32
      %p300 = scmp.eq.s32.totalorder %s299, 0
      %s302 = sadd.s32 %s301, 1
      %s303 = scalar_select %p300, %s301, %s302
      %p306 = pneg %p300
      %p307 = scmp.eq.s32.totalorder %s25, 1
      %p308 = por %p306, %p307
      %p309 = scmp.ne.s32.totalorder %s301, %s304
      %p310 = scmp.eq.s32.totalorder %s25, 0
      %p311 = por %p309, %p310
      %p312 = scmp.ne.s32.totalorder %s301, %s304
      %p313 = scmp.eq.s32.totalorder %s30, 1
      %p314 = por %p312, %p313
      %p315 = scmp.ne.s32.totalorder %s304, %s305
      %p316 = scmp.eq.s32.totalorder %s30, 0
      %p317 = por %p315, %p316
      %p318 = scmp.ne.s32.totalorder %s304, %s305
      %p319 = scmp.eq.s32.totalorder %s31, 1
      %p320 = por %p318, %p319
      %p322 = scmp.ne.s32.totalorder %s305, %s321
      %p323 = scmp.eq.s32.totalorder %s31, 0
      %p324 = por %p322, %p323
      %s325 = ssub.s32 %s25, %s32
      %p326 = scmp.eq.s32.totalorder %s325, 0
      %s328 = sadd.s32 %s327, 1
      %s329 = scalar_select %p326, %s327, %s328
      %p332 = pneg %p326
      %p333 = scmp.eq.s32.totalorder %s25, 1
      %p334 = por %p332, %p333
      %p335 = scmp.ne.s32.totalorder %s327, %s330
      %p336 = scmp.eq.s32.totalorder %s25, 0
      %p337 = por %p335, %p336
      %p338 = scmp.ne.s32.totalorder %s327, %s330
      %p339 = scmp.eq.s32.totalorder %s30, 1
      %p340 = por %p338, %p339
      %p341 = scmp.ne.s32.totalorder %s330, %s331
      %p342 = scmp.eq.s32.totalorder %s30, 0
      %p343 = por %p341, %p342
      %p344 = scmp.ne.s32.totalorder %s330, %s331
      %p345 = scmp.eq.s32.totalorder %s31, 1
      %p346 = por %p344, %p345
      %p348 = scmp.ne.s32.totalorder %s331, %s347
      %p349 = scmp.eq.s32.totalorder %s31, 0
      %p350 = por %p348, %p349
      %p351 = scmp.le.s32.totalorder 1, %s25
      %p352 = scmp.lt.s32.totalorder %s25, 3
      %p353 = pnand %p351, %p352
      %p354 = pneg %p353
      // Predicated region
      $region9: #{iggcn_forward.5} parent=5 // pred_check
        _
      $region10: #{iggcn_forward.5} parent=5 // pred_check_branch
        %356 = sbr.rel (%p353) target = $region12
      $region11: #{iggcn_forward.5} parent=5 // pred_region
        %s357 = ssub.s32 %s25, 1
        // Predicated region
        $region13: #{iggcn_forward.5} parent=11 // pred_check
          %p358 = pneg %p176
        $region14: #{iggcn_forward.5} parent=11 // pred_check_branch
          %360 = sbr.rel (%p358) target = $region16
        $region15: #{iggcn_forward.5} parent=11 // pred_region
          _
        $region16: #{iggcn_forward.5} parent=11 // pred_fallthru
          _
        // Predicated region
        $region17: #{iggcn_forward.5} parent=11 // pred_check
          %p361 = pneg %p197
        $region18: #{iggcn_forward.5} parent=11 // pred_check_branch
          %363 = sbr.rel (%p361) target = $region20
        $region19: #{iggcn_forward.5} parent=11 // pred_region
          _
        $region20: #{iggcn_forward.5} parent=11 // pred_fallthru
          _
        // Predicated region
        $region21: #{iggcn_forward.5} parent=11 // pred_check
          %p364 = pneg %p218
        $region22: #{iggcn_forward.5} parent=11 // pred_check_branch
          %366 = sbr.rel (%p364) target = $region24
        $region23: #{iggcn_forward.5} parent=11 // pred_region
          _
        $region24: #{iggcn_forward.5} parent=11 // pred_fallthru
          _
        // Predicated region
        $region25: #{iggcn_forward.5} parent=11 // pred_check
          %p367 = pneg %p239
        $region26: #{iggcn_forward.5} parent=11 // pred_check_branch
          %369 = sbr.rel (%p367) target = $region28
        $region27: #{iggcn_forward.5} parent=11 // pred_region
          _
        $region28: #{iggcn_forward.5} parent=11 // pred_fallthru
          _
      $region12: #{iggcn_forward.5} parent=5 // pred_fallthru
        _
      %p370 = scmp.lt.s32.totalorder %s25, 2
      // Predicated region
      $region29: #{iggcn_forward.5} parent=5 // pred_check
        %p371 = pneg %p370
      $region30: #{iggcn_forward.5} parent=5 // pred_check_branch
        %373 = sbr.rel (%p371) target = $region32
      $region31: #{iggcn_forward.5} parent=5 // pred_region
        // Predicated region
        $region33: #{iggcn_forward.5} parent=31 // pred_check
          %p374 = pneg %p45
        $region34: #{iggcn_forward.5} parent=31 // pred_check_branch
          %376 = sbr.rel (%p374) target = $region36
        $region35: #{iggcn_forward.5} parent=31 // pred_region
          %p377 = scmp.lt.s32.totalorder %s25, 1
          %s378 = scalar_select %p377, %s25, 1
          %s379 = smul.addr %s378, 2
          %s380 = smul.addr %s379, 8
          %s381 = scalar_lea.vmem %s0, %s380
        $region36: #{iggcn_forward.5} parent=31 // pred_fallthru
          _
        // Predicated region
        $region37: #{iggcn_forward.5} parent=31 // pred_check
          %p382 = pneg %p71
        $region38: #{iggcn_forward.5} parent=31 // pred_check_branch
          %384 = sbr.rel (%p382) target = $region40
        $region39: #{iggcn_forward.5} parent=31 // pred_region
          %p385 = scmp.lt.s32.totalorder %s25, 1
          %s386 = scalar_select %p385, %s25, 1
          %s387 = smul.addr %s386, 2
          %s388 = smul.addr %s387, 8
          %s389 = scalar_lea.vmem %s1, %s388
        $region40: #{iggcn_forward.5} parent=31 // pred_fallthru
          _
        // Predicated region
        $region41: #{iggcn_forward.5} parent=31 // pred_check
          %p390 = pneg %p97
        $region42: #{iggcn_forward.5} parent=31 // pred_check_branch
          %392 = sbr.rel (%p390) target = $region44
        $region43: #{iggcn_forward.5} parent=31 // pred_region
          %p393 = scmp.lt.s32.totalorder %s25, 1
          %s394 = scalar_select %p393, %s25, 1
          %s395 = smul.addr %s394, 2
          %s396 = smul.addr %s395, 8
          %s397 = scalar_lea.vmem %s2, %s396
        $region44: #{iggcn_forward.5} parent=31 // pred_fallthru
          _
        // Predicated region
        $region45: #{iggcn_forward.5} parent=31 // pred_check
          %p398 = pneg %p123
        $region46: #{iggcn_forward.5} parent=31 // pred_check_branch
          %400 = sbr.rel (%p398) target = $region48
        $region47: #{iggcn_forward.5} parent=31 // pred_region
          %p401 = scmp.lt.s32.totalorder %s25, 1
          %s402 = scalar_select %p401, %s25, 1
          %s403 = smul.addr %s402, 2
          %s404 = smul.addr %s403, 8
          %s405 = scalar_lea.vmem %s3, %s404
        $region48: #{iggcn_forward.5} parent=31 // pred_fallthru
          _
        // Predicated region
        $region49: #{iggcn_forward.5} parent=31 // pred_check
          %p406 = pneg %p149
        $region50: #{iggcn_forward.5} parent=31 // pred_check_branch
          %408 = sbr.rel (%p406) target = $region52
        $region51: #{iggcn_forward.5} parent=31 // pred_region
          %p409 = scmp.lt.s32.totalorder %s25, 1
          %s410 = scalar_select %p409, %s25, 1
          %s411 = smul.addr %s410, 2
          %s412 = smul.addr %s411, 8
          %s413 = scalar_lea.vmem %s4, %s412
        $region52: #{iggcn_forward.5} parent=31 // pred_fallthru
          _
      $region32: #{iggcn_forward.5} parent=5 // pred_fallthru
        _
      %p414 = scmp.le.s32.totalorder 1, %s25
      %p415 = scmp.lt.s32.totalorder %s25, 3
      %p416 = pnand %p414, %p415
      %p417 = pneg %p416
      // Predicated region
      $region53: #{iggcn_forward.5} parent=5 // pred_check
        _
      $region54: #{iggcn_forward.5} parent=5 // pred_check_branch
        %419 = sbr.rel (%p416) target = $region56
      $region55: #{iggcn_forward.5} parent=5 // pred_region
        %s420 = ssub.s32 %s25, 1
        %p421 = scmp.lt.s32.totalorder %s30, 1
        %s422 = scalar_select %p421, %s30, 1
        %s423 = smul.addr %s422, 2
        %s424 = smul.addr %s423, 8
        %s425 = scalar_lea.vmem %s0, %s424
        %p426 = pneg %p51
        %p427 = pneg %p48
        %p428 = scmp.lt.s32.totalorder %s30, 1
        %s429 = scalar_select %p428, %s30, 1
        %s430 = smul.addr %s429, 2
        %s431 = smul.addr %s430, 8
        %s432 = scalar_lea.vmem %s1, %s431
        %p433 = pneg %p77
        %p434 = pneg %p74
        %p435 = scmp.lt.s32.totalorder %s30, 1
        %s436 = scalar_select %p435, %s30, 1
        %s437 = smul.addr %s436, 2
        %s438 = smul.addr %s437, 8
        %s439 = scalar_lea.vmem %s2, %s438
        %p440 = pneg %p103
        %p441 = pneg %p100
        %p442 = scmp.lt.s32.totalorder %s30, 1
        %s443 = scalar_select %p442, %s30, 1
        %s444 = smul.addr %s443, 2
        %s445 = smul.addr %s444, 8
        %s446 = scalar_lea.vmem %s3, %s445
        %p447 = pneg %p129
        %p448 = pneg %p126
        %p449 = scmp.lt.s32.totalorder %s30, 1
        %s450 = scalar_select %p449, %s30, 1
        %s451 = smul.addr %s450, 2
        %s452 = smul.addr %s451, 8
        %s453 = scalar_lea.vmem %s4, %s452
        %p454 = pneg %p155
        %p455 = pneg %p152
        %p456 = pneg %p176
        %p457 = pneg %p173
        %p458 = pneg %p197
        %p459 = pneg %p194
        %p460 = pneg %p218
        %p461 = pneg %p215
        %p462 = pneg %p239
        %p463 = pneg %p236
        %p464 = pneg %p265
        %p465 = pneg %p262
        %s466 = sand.u32 %s252, 1
        %s467 = scalar_lea.sflag [#allocation4], %s466
        %s468 = sand.u32 %s252, 1
        %s469 = smul.addr %s468, 16
        %s470 = scalar_lea.vmem [#allocation3], %s469
        %p471 = pneg %p291
        %p472 = pneg %p288
        %s473 = sand.u32 %s278, 1
        %s474 = scalar_lea.sflag [#allocation6], %s473
        %s475 = sand.u32 %s278, 1
        %s476 = smul.addr %s475, 16
        %s477 = scalar_lea.vmem [#allocation5], %s476
        %p478 = pneg %p317
        %p479 = pneg %p314
        %p480 = scmp.lt.s32.totalorder %s30, 1
        %s481 = scalar_select %p480, %s30, 1
        %s482 = scalar_lea.vmem %s11, %s481
        %p483 = pneg %p343
        %p484 = pneg %p340
        %p485 = scmp.lt.s32.totalorder %s30, 1
        %s486 = scalar_select %p485, %s30, 1
        %s487 = scalar_lea.vmem %s12, %s486
        %p488 = scmp.lt.s32.totalorder %s30, 1
        %s489 = scalar_select %p488, %s30, 1
        %s490 = smul.addr %s489, 2
        %s491 = smul.addr %s490, 8
        %s492 = scalar_lea.vmem %s0, %s491
        %p493 = scmp.lt.s32.totalorder %s30, 1
        %s494 = scalar_select %p493, %s30, 1
        %s495 = smul.addr %s494, 2
        %s496 = smul.addr %s495, 8
        %s497 = scalar_lea.vmem %s1, %s496
        %p498 = scmp.lt.s32.totalorder %s30, 1
        %s499 = scalar_select %p498, %s30, 1
        %s500 = smul.addr %s499, 2
        %s501 = smul.addr %s500, 8
        %s502 = scalar_lea.vmem %s2, %s501
        %p503 = scmp.lt.s32.totalorder %s30, 1
        %s504 = scalar_select %p503, %s30, 1
        %s505 = smul.addr %s504, 2
        %s506 = smul.addr %s505, 8
        %s507 = scalar_lea.vmem %s3, %s506
        %p508 = scmp.lt.s32.totalorder %s30, 1
        %s509 = scalar_select %p508, %s30, 1
        %s510 = smul.addr %s509, 2
        %s511 = smul.addr %s510, 8
        %s512 = scalar_lea.vmem %s4, %s511
        %p513 = scmp.lt.s32.totalorder %s30, 1
        %s514 = scalar_select %p513, %s30, 1
        %s515 = scalar_lea.vmem %s11, %s514
        %p516 = scmp.lt.s32.totalorder %s30, 1
        %s517 = scalar_select %p516, %s30, 1
        %s518 = scalar_lea.vmem %s12, %s517
        %v520 = vld [vmem:[%s492] sm:$0xff]
        %v521 = vld [vmem:[%s492 + $0x8] sm:$0xff]
        %v522 = vld [vmem:[%s497] sm:$0xff]
        %v523 = vld [vmem:[%s497 + $0x8] sm:$0xff]
        %v524 = vld [vmem:[%s5] sm:$0x1]
        %v525 = vlaneseq
        %v526 = vshrl.u32 %v525, 7
        %v527 = vsub.s32 0, %v526
        %v528 = vrot.slane %v524, %v527
        %v529 = vmul.f32 %v520, %v528
        %v530 = vmul.f32 %v521, %v528
        %v531 = vmul.f32 %v529, %v529
        %v532 = vmul.f32 %v530, %v530
        %vm533 = vcmask 261120
        %v534 = vsel %vm533, %v531, 0.0
        %535 = vadd.xlane.f32.xlu0 %v534
        %v536 = vpop.xlane.xlu0 %535
        %v537 = vsel %vm533, %v532, 0.0
        %538 = vadd.xlane.f32.xlu0 %v537
        %v539 = vpop.xlane.xlu0 %538
        %v540 = vadd.f32 %v536, 1e-16
        %v541 = vadd.f32 %v539, 1e-16
        %v542 = vrsqrt.pop %v540
        %v543 = vrsqrt.pop %v541
        %v544 = vmul.f32 %v529, %v542
        %v545 = vmul.f32 %v530, %v543
        %546 = vst.msk [vmem:[#allocation2] sm:$0xff] %vm533, %v544
        %547 = vst.msk [vmem:[#allocation2 + $0x8] sm:$0xff] %vm533, %v545
        %v548 = vld [vmem:[%s5 + $0x1] sm:$0x1]
        %v549 = vlaneseq
        %v550 = vshrl.u32 %v549, 7
        %v551 = vsub.s32 0, %v550
        %v552 = vrot.slane %v548, %v551
        %v553 = vmul.f32 %v520, %v552
        %v554 = vmul.f32 %v521, %v552
        %v555 = vmul.f32 %v553, %v553
        %v556 = vmul.f32 %v554, %v554
        %v557 = vsel %vm533, %v555, 0.0
        %558 = vadd.xlane.f32.xlu0 %v557
        %v559 = vpop.xlane.xlu0 %558
        %v560 = vsel %vm533, %v556, 0.0
        %561 = vadd.xlane.f32.xlu0 %v560
        %v562 = vpop.xlane.xlu0 %561
        %v563 = vadd.f32 %v559, 1e-16
        %v564 = vadd.f32 %v562, 1e-16
        %v565 = vrsqrt.pop %v563
        %v566 = vrsqrt.pop %v564
        %v567 = vmul.f32 %v553, %v565
        %v568 = vmul.f32 %v554, %v566
        %571 = vrot.lane.b32.xlu0 %v567, 32
        %v572 = vpop.permute.xlu0 %571
        %573 = vrot.lane.b32.xlu0 %v568, 32
        %v574 = vpop.permute.xlu0 %573
        %vm577 = vcmask 523520
        %578 = vst.msk [vmem:[#allocation2] sm:$0xff] %vm577, %v572
        %579 = vst.msk [vmem:[#allocation2 + $0x8] sm:$0xff] %vm577, %v574
        %v580 = vld [vmem:[%s5 + $0x2] sm:$0x1]
        %v581 = vlaneseq
        %v582 = vshrl.u32 %v581, 7
        %v583 = vsub.s32 0, %v582
        %v584 = vrot.slane %v580, %v583
        %v585 = vmul.f32 %v520, %v584
        %v586 = vmul.f32 %v521, %v584
        %v587 = vmul.f32 %v585, %v585
        %v588 = vmul.f32 %v586, %v586
        %v589 = vsel %vm533, %v587, 0.0
        %590 = vadd.xlane.f32.xlu0 %v589
        %v591 = vpop.xlane.xlu0 %590
        %v592 = vsel %vm533, %v588, 0.0
        %593 = vadd.xlane.f32.xlu0 %v592
        %v594 = vpop.xlane.xlu0 %593
        %v595 = vadd.f32 %v591, 1e-16
        %v596 = vadd.f32 %v594, 1e-16
        %v597 = vrsqrt.pop %v595
        %v598 = vrsqrt.pop %v596
        %v599 = vmul.f32 %v585, %v597
        %v600 = vmul.f32 %v586, %v598
        %603 = vrot.lane.b32.xlu0 %v599, 64
        %v604 = vpop.permute.xlu0 %603
        %605 = vrot.lane.b32.xlu0 %v600, 64
        %v606 = vpop.permute.xlu0 %605
        %vm609 = vcmask 785920
        %610 = vst.msk [vmem:[#allocation2] sm:$0xff] %vm609, %v604
        %611 = vst.msk [vmem:[#allocation2 + $0x8] sm:$0xff] %vm609, %v606
        %v612 = vld [vmem:[%s5 + $0x3] sm:$0x1]
        %v613 = vlaneseq
        %v614 = vshrl.u32 %v613, 7
        %v615 = vsub.s32 0, %v614
        %v616 = vrot.slane %v612, %v615
        %v617 = vmul.f32 %v520, %v616
        %v618 = vmul.f32 %v521, %v616
        %v619 = vmul.f32 %v617, %v617
        %v620 = vmul.f32 %v618, %v618
        %v621 = vsel %vm533, %v619, 0.0
        %622 = vadd.xlane.f32.xlu0 %v621
        %v623 = vpop.xlane.xlu0 %622
        %v624 = vsel %vm533, %v620, 0.0
        %625 = vadd.xlane.f32.xlu0 %v624
        %v626 = vpop.xlane.xlu0 %625
        %v627 = vadd.f32 %v623, 1e-16
        %v628 = vadd.f32 %v626, 1e-16
        %v629 = vrsqrt.pop %v627
        %v630 = vrsqrt.pop %v628
        %v631 = vmul.f32 %v617, %v629
        %v632 = vmul.f32 %v618, %v630
        %635 = vrot.lane.b32.xlu0 %v631, 96
        %v636 = vpop.permute.xlu0 %635
        %637 = vrot.lane.b32.xlu0 %v632, 96
        %v638 = vpop.permute.xlu0 %637
        %vm641 = vcmask 1048320
        %642 = vst.msk [vmem:[#allocation2] sm:$0xff] %vm641, %v636
        %643 = vst.msk [vmem:[#allocation2 + $0x8] sm:$0xff] %vm641, %v638
        %v644 = vld [vmem:[#allocation2] sm:$0xff]
        %v645 = vld [vmem:[#allocation2 + $0x8] sm:$0xff]
        %v646 = vpack.c.bf16 %v645, %v644
        %647 = vmatprep.subr.bf16.mxu0 0
        %648 = vmatpush1.bf16.xpose.msra.mxu0 %v646
        %649 = vmatprep.subr.bf16.mxu0 0
        %650 = vmatpush1.bf16.xpose.msra.mxu0 0
        %651 = vmatprep.subr.bf16.mxu0 0
        %652 = vmatpush1.bf16.xpose.msra.mxu0 0
        %653 = vmatprep.subr.bf16.mxu0 0
        %654 = vmatpush1.bf16.xpose.msra.mxu0 0
        %655 = vmatprep.subr.bf16.mxu0 0
        %656 = vmatpush1.bf16.xpose.msra.mxu0 0
        %657 = vmatprep.subr.bf16.mxu0 0
        %658 = vmatpush1.bf16.xpose.msra.mxu0 0
        %659 = vmatprep.subr.bf16.mxu0 0
        %660 = vmatpush1.bf16.xpose.msra.mxu0 0
        %661 = vmatprep.subr.bf16.mxu0 0
        %662 = vmatpush1.bf16.xpose.msra.mxu0 0
        %663 = vmatprep.subr.bf16.mxu0 0
        %664 = vmatpush1.bf16.xpose.msra.mxu0 0
        %665 = vmatprep.subr.bf16.mxu0 0
        %666 = vmatpush1.bf16.xpose.msra.mxu0 0
        %667 = vmatprep.subr.bf16.mxu0 0
        %668 = vmatpush1.bf16.xpose.msra.mxu0 0
        %669 = vmatprep.subr.bf16.mxu0 0
        %670 = vmatpush1.bf16.xpose.msra.mxu0 0
        %671 = vmatprep.subr.bf16.mxu0 0
        %672 = vmatpush1.bf16.xpose.msra.mxu0 0
        %673 = vmatprep.subr.bf16.mxu0 0
        %674 = vmatpush1.bf16.xpose.msra.mxu0 0
        %675 = vmatprep.subr.bf16.mxu0 0
        %676 = vmatpush1.bf16.xpose.msra.mxu0 0
        %677 = vmatprep.subr.bf16.mxu0 0
        %678 = vmatpush1.bf16.xpose.msra.mxu0 0
        %679 = vmatprep.mubr.bf16.mxu0 0
        %680 = vmatmul.mubr.bf16.gmra.mrb[0].mxu0 %v646
        %v681 = vpop.f32.mrb[0].mxu0
        %v682 = vadd.f32 0.0, %v681
        %v683 = vpop.f32.mrb[0].mxu0
        %v684 = vpop.f32.mrb[0].mxu0
        %v685 = vadd.f32 0.0, %v684
        %v686 = vpop.f32.mrb[0].mxu0
        %687 = vdwg.mxu0
        %v688 = vmul.f32 %v682, 0.25
        %v689 = vmul.f32 %v685, 0.25
        %v690 = vmax.f32 %v688, 0.0
        %v691 = vmax.f32 %v689, 0.0
        %vm692 = vcmask 130048
        %v693 = vsel %vm692, %v690, inf
        %v694 = vsel %vm692, %v691, inf
        %v695 = vmin.f32 %v693, %v694
        %696 = vmin.xlane.f32.xlu0 %v695
        %v697 = vpop.xlane.xlu0 %696
        %v698 = vrot.slane %v697, 4
        %v699 = vmin.f32 %v697, %v698
        %v700 = vrot.slane %v699, 2
        %v701 = vmin.f32 %v699, %v700
        %v702 = vrot.slane %v701, 1
        %v703 = vmin.f32 %v701, %v702
        %s704 = vtos %v703
        %v705 = vsel %vm692, %v690, -inf
        %v706 = vsel %vm692, %v691, -inf
        %v707 = vmax.f32 %v705, %v706
        %708 = vmax.xlane.f32.xlu0 %v707
        %v709 = vpop.xlane.xlu0 %708
        %v710 = vrot.slane %v709, 4
        %v711 = vmax.f32 %v709, %v710
        %v712 = vrot.slane %v711, 2
        %v713 = vmax.f32 %v711, %v712
        %v714 = vrot.slane %v713, 1
        %v715 = vmax.f32 %v713, %v714
        %s716 = vtos %v715
        %v717 = vstv %s704
        %v718 = vsub.f32 %v690, %v717
        %v719 = vsub.f32 %v691, %v717
        %s720 = ssub.f32 %s716, %s704
        %s721 = sadd.f32 %s720, 1e-08
        %v722 = vstv %s721
        %v723 = vrcp.pop %v722
        %v724 = vmul.f32 %v718, %v723
        %v725 = vmul.f32 %v719, %v723
        %v726 = vld [vmem:[%s507] sm:$0xff]
        %v727 = vld [vmem:[%s507 + $0x8] sm:$0xff]
        %v728 = vld [vmem:[%s512] sm:$0xff]
        %v729 = vld [vmem:[%s512 + $0x8] sm:$0xff]
        %v730 = vmul.f32 %v728, 0.3
        %v731 = vmul.f32 %v729, 0.3
        %v732 = vmul.f32 %v724, 0.4
        %v733 = vmul.f32 %v725, 0.4
        %v734 = vmul.f32 %v726, 0.6
        %v735 = vmul.f32 %v727, 0.6
        %v736 = vadd.f32 %v732, %v734
        %v737 = vadd.f32 %v733, %v735
        %v738 = vmul.f32 %v736, 0.6
        %v739 = vmul.f32 %v737, 0.6
        %v740 = vadd.f32 %v730, %v738
        %v741 = vadd.f32 %v731, %v739
        %742 = vst.msk [vmem:[%s470] sm:$0xff] %vm692, %v740
        %743 = vst.msk [vmem:[%s470 + $0x8] sm:$0xff] %vm692, %v741
        %v744 = vpack.c.bf16 %v741, %v740
        %v745 = vpack.c.bf16 %v521, %v520
        %v747 = vsel %vm692, %v744, 0
        %749 = vmatprep.subr.bf16.mxu0 0
        %750 = vmatpush1.bf16.msra.mxu0 %v745
        %751 = vmatprep.subr.bf16.mxu0 0
        %752 = vmatpush1.bf16.msra.mxu0 0
        %753 = vmatprep.subr.bf16.mxu0 0
        %754 = vmatpush1.bf16.msra.mxu0 0
        %755 = vmatprep.subr.bf16.mxu0 0
        %756 = vmatpush1.bf16.msra.mxu0 0
        %757 = vmatprep.subr.bf16.mxu0 0
        %758 = vmatpush1.bf16.msra.mxu0 0
        %759 = vmatprep.subr.bf16.mxu0 0
        %760 = vmatpush1.bf16.msra.mxu0 0
        %761 = vmatprep.subr.bf16.mxu0 0
        %762 = vmatpush1.bf16.msra.mxu0 0
        %763 = vmatprep.subr.bf16.mxu0 0
        %764 = vmatpush1.bf16.msra.mxu0 0
        %765 = vmatprep.subr.bf16.mxu0 0
        %766 = vmatpush1.bf16.msra.mxu0 0
        %767 = vmatprep.subr.bf16.mxu0 0
        %768 = vmatpush1.bf16.msra.mxu0 0
        %769 = vmatprep.subr.bf16.mxu0 0
        %770 = vmatpush1.bf16.msra.mxu0 0
        %771 = vmatprep.subr.bf16.mxu0 0
        %772 = vmatpush1.bf16.msra.mxu0 0
        %773 = vmatprep.subr.bf16.mxu0 0
        %774 = vmatpush1.bf16.msra.mxu0 0
        %775 = vmatprep.subr.bf16.mxu0 0
        %776 = vmatpush1.bf16.msra.mxu0 0
        %777 = vmatprep.subr.bf16.mxu0 0
        %778 = vmatpush1.bf16.msra.mxu0 0
        %779 = vmatprep.subr.bf16.mxu0 0
        %780 = vmatpush1.bf16.msra.mxu0 0
        %781 = vmatprep.mubr.bf16.mxu0 0
        %782 = vmatmul.mubr.bf16.gmra.mrb[0].mxu0 %v747
        %v783 = vpop.f32.mrb[0].mxu0
        %v784 = vadd.f32 0.0, %v783
        %v785 = vpop.f32.mrb[0].mxu0
        %v786 = vpop.f32.mrb[0].mxu0
        %v787 = vadd.f32 0.0, %v786
        %v788 = vpop.f32.mrb[0].mxu0
        %789 = vdwg.mxu0
        %v790 = vpack.c.bf16 %v787, %v784
        %v791 = vld [vmem:[%s6] sm:$0xf]
        %v792 = vld [vmem:[%s6 + $0x4] sm:$0xf]
        %v793 = vld [vmem:[%s6 + $0x8] sm:$0xf]
        %v794 = vld [vmem:[%s6 + $0xc] sm:$0xf]
        %v795 = vld [vmem:[%s6 + $0x10] sm:$0xf]
        %v796 = vld [vmem:[%s6 + $0x14] sm:$0xf]
        %v797 = vld [vmem:[%s6 + $0x18] sm:$0xf]
        %v798 = vld [vmem:[%s6 + $0x1c] sm:$0xf]
        %v799 = vld [vmem:[%s6 + $0x20] sm:$0xf]
        %v800 = vld [vmem:[%s6 + $0x24] sm:$0xf]
        %v801 = vld [vmem:[%s6 + $0x28] sm:$0xf]
        %v802 = vld [vmem:[%s6 + $0x2c] sm:$0xf]
        %v803 = vld [vmem:[%s7] sm:$0xf]
        %v804 = vld [vmem:[%s7 + $0x4] sm:$0xf]
        %v805 = vld [vmem:[%s7 + $0x8] sm:$0xf]
        %v806 = vld [vmem:[%s7 + $0xc] sm:$0xf]
        %v807 = vld [vmem:[%s7 + $0x10] sm:$0xf]
        %v808 = vld [vmem:[%s7 + $0x14] sm:$0xf]
        %v809 = vld [vmem:[%s7 + $0x18] sm:$0xf]
        %v810 = vld [vmem:[%s7 + $0x1c] sm:$0xf]
        %v811 = vld [vmem:[%s7 + $0x20] sm:$0xf]
        %v812 = vld [vmem:[%s7 + $0x24] sm:$0xf]
        %v813 = vld [vmem:[%s7 + $0x28] sm:$0xf]
        %v814 = vld [vmem:[%s7 + $0x2c] sm:$0xf]
        %v815 = vld [vmem:[%s8] sm:$0x1]
        %v816 = vld [vmem:[%s8 + $0x1] sm:$0x1]
        %v817 = vld [vmem:[%s8 + $0x2] sm:$0x1]
        %v819 = vlaneseq
        %v820 = vshrl.u32 %v819, 7
        %v821 = vsub.s32 0, %v820
        %v822 = vrot.slane %v815, %v821
        %v828 = vunpack.c.l.b16 %v791
        %v829 = vunpack.c.l.b16 %v792
        %v830 = vunpack.c.l.b16 %v793
        %v831 = vunpack.c.l.b16 %v794
        %v832 = vpack.c.b16 %v829, %v828
        %v833 = vpack.c.b16 %v831, %v830
        %v837 = vsel %vm533, %v790, 0
        %839 = vmatprep.subr.bf16.mxu0 0
        %840 = vmatpush1.bf16.msra.mxu0 %v832
        %841 = vmatprep.subr.bf16.mxu0 0
        %842 = vmatpush1.bf16.msra.mxu0 %v833
        %843 = vmatprep.subr.bf16.mxu0 0
        %844 = vmatpush1.bf16.msra.mxu0 0
        %845 = vmatprep.subr.bf16.mxu0 0
        %846 = vmatpush1.bf16.msra.mxu0 0
        %847 = vmatprep.subr.bf16.mxu0 0
        %848 = vmatpush1.bf16.msra.mxu0 0
        %849 = vmatprep.subr.bf16.mxu0 0
        %850 = vmatpush1.bf16.msra.mxu0 0
        %851 = vmatprep.subr.bf16.mxu0 0
        %852 = vmatpush1.bf16.msra.mxu0 0
        %853 = vmatprep.subr.bf16.mxu0 0
        %854 = vmatpush1.bf16.msra.mxu0 0
        %855 = vmatprep.subr.bf16.mxu0 0
        %856 = vmatpush1.bf16.msra.mxu0 0
        %857 = vmatprep.subr.bf16.mxu0 0
        %858 = vmatpush1.bf16.msra.mxu0 0
        %859 = vmatprep.subr.bf16.mxu0 0
        %860 = vmatpush1.bf16.msra.mxu0 0
        %861 = vmatprep.subr.bf16.mxu0 0
        %862 = vmatpush1.bf16.msra.mxu0 0
        %863 = vmatprep.subr.bf16.mxu0 0
        %864 = vmatpush1.bf16.msra.mxu0 0
        %865 = vmatprep.subr.bf16.mxu0 0
        %866 = vmatpush1.bf16.msra.mxu0 0
        %867 = vmatprep.subr.bf16.mxu0 0
        %868 = vmatpush1.bf16.msra.mxu0 0
        %869 = vmatprep.subr.bf16.mxu0 0
        %870 = vmatpush1.bf16.msra.mxu0 0
        %871 = vmatprep.mubr.bf16.mxu0 0
        %872 = vmatmul.mubr.bf16.gmra.mrb[0].mxu0 %v837
        %v873 = vpop.f32.mrb[0].mxu0
        %v874 = vadd.f32 %v822, %v873
        %v875 = vpop.f32.mrb[0].mxu0
        %v876 = vpop.f32.mrb[0].mxu0
        %v877 = vadd.f32 %v822, %v876
        %v878 = vpop.f32.mrb[0].mxu0
        %879 = vdwg.mxu0
        %v884 = vunpack.c.l.b16 %v803
        %v885 = vunpack.c.l.b16 %v804
        %v886 = vunpack.c.l.b16 %v805
        %v887 = vunpack.c.l.b16 %v806
        %v888 = vpack.c.b16 %v885, %v884
        %v889 = vpack.c.b16 %v887, %v886
        %v893 = vsel %vm533, %v745, 0
        %895 = vmatprep.subr.bf16.mxu0 0
        %896 = vmatpush1.bf16.msra.mxu0 %v888
        %897 = vmatprep.subr.bf16.mxu0 0
        %898 = vmatpush1.bf16.msra.mxu0 %v889
        %899 = vmatprep.subr.bf16.mxu0 0
        %900 = vmatpush1.bf16.msra.mxu0 0
        %901 = vmatprep.subr.bf16.mxu0 0
        %902 = vmatpush1.bf16.msra.mxu0 0
        %903 = vmatprep.subr.bf16.mxu0 0
        %904 = vmatpush1.bf16.msra.mxu0 0
        %905 = vmatprep.subr.bf16.mxu0 0
        %906 = vmatpush1.bf16.msra.mxu0 0
        %907 = vmatprep.subr.bf16.mxu0 0
        %908 = vmatpush1.bf16.msra.mxu0 0
        %909 = vmatprep.subr.bf16.mxu0 0
        %910 = vmatpush1.bf16.msra.mxu0 0
        %911 = vmatprep.subr.bf16.mxu0 0
        %912 = vmatpush1.bf16.msra.mxu0 0
        %913 = vmatprep.subr.bf16.mxu0 0
        %914 = vmatpush1.bf16.msra.mxu0 0
        %915 = vmatprep.subr.bf16.mxu0 0
        %916 = vmatpush1.bf16.msra.mxu0 0
        %917 = vmatprep.subr.bf16.mxu0 0
        %918 = vmatpush1.bf16.msra.mxu0 0
        %919 = vmatprep.subr.bf16.mxu0 0
        %920 = vmatpush1.bf16.msra.mxu0 0
        %921 = vmatprep.subr.bf16.mxu0 0
        %922 = vmatpush1.bf16.msra.mxu0 0
        %923 = vmatprep.subr.bf16.mxu0 0
        %924 = vmatpush1.bf16.msra.mxu0 0
        %925 = vmatprep.subr.bf16.mxu0 0
        %926 = vmatpush1.bf16.msra.mxu0 0
        %927 = vmatprep.mubr.bf16.mxu0 0
        %928 = vmatmul.mubr.bf16.gmra.mrb[0].mxu0 %v893
        %v929 = vpop.f32.mrb[0].mxu0
        %v930 = vadd.f32 0.0, %v929
        %v931 = vpop.f32.mrb[0].mxu0
        %v932 = vpop.f32.mrb[0].mxu0
        %v933 = vadd.f32 0.0, %v932
        %v934 = vpop.f32.mrb[0].mxu0
        %935 = vdwg.mxu0
        %v936 = vadd.f32 %v874, %v930
        %v937 = vadd.f32 %v877, %v933
        %v938 = vxor.u32 %v936, 2147483648
        %v939 = vxor.u32 %v937, 2147483648
        %v940 = vmul.f32 %v938, 1.442695
        %v941 = vpow.pop %v940
        %v942 = vmul.f32 %v939, 1.442695
        %v943 = vpow.pop %v942
        %v944 = vadd.f32 %v941, 1.0
        %v945 = vadd.f32 %v943, 1.0
        %v946 = vrcp.pop %v944
        %v947 = vmul.f32 1.0, %v946
        %v948 = vrcp.pop %v945
        %v949 = vmul.f32 1.0, %v948
        %v951 = vlaneseq
        %v952 = vshrl.u32 %v951, 7
        %v953 = vsub.s32 0, %v952
        %v954 = vrot.slane %v816, %v953
        %v960 = vunpack.c.l.b16 %v795
        %v961 = vunpack.c.l.b16 %v796
        %v962 = vunpack.c.l.b16 %v797
        %v963 = vunpack.c.l.b16 %v798
        %v964 = vpack.c.b16 %v961, %v960
        %v965 = vpack.c.b16 %v963, %v962
        %968 = vmatprep.subr.bf16.mxu0 0
        %969 = vmatpush1.bf16.msra.mxu0 %v964
        %970 = vmatprep.subr.bf16.mxu0 0
        %971 = vmatpush1.bf16.msra.mxu0 %v965
        %972 = vmatprep.subr.bf16.mxu0 0
        %973 = vmatpush1.bf16.msra.mxu0 0
        %974 = vmatprep.subr.bf16.mxu0 0
        %975 = vmatpush1.bf16.msra.mxu0 0
        %976 = vmatprep.subr.bf16.mxu0 0
        %977 = vmatpush1.bf16.msra.mxu0 0
        %978 = vmatprep.subr.bf16.mxu0 0
        %979 = vmatpush1.bf16.msra.mxu0 0
        %980 = vmatprep.subr.bf16.mxu0 0
        %981 = vmatpush1.bf16.msra.mxu0 0
        %982 = vmatprep.subr.bf16.mxu0 0
        %983 = vmatpush1.bf16.msra.mxu0 0
        %984 = vmatprep.subr.bf16.mxu0 0
        %985 = vmatpush1.bf16.msra.mxu0 0
        %986 = vmatprep.subr.bf16.mxu0 0
        %987 = vmatpush1.bf16.msra.mxu0 0
        %988 = vmatprep.subr.bf16.mxu0 0
        %989 = vmatpush1.bf16.msra.mxu0 0
        %990 = vmatprep.subr.bf16.mxu0 0
        %991 = vmatpush1.bf16.msra.mxu0 0
        %992 = vmatprep.subr.bf16.mxu0 0
        %993 = vmatpush1.bf16.msra.mxu0 0
        %994 = vmatprep.subr.bf16.mxu0 0
        %995 = vmatpush1.bf16.msra.mxu0 0
        %996 = vmatprep.subr.bf16.mxu0 0
        %997 = vmatpush1.bf16.msra.mxu0 0
        %998 = vmatprep.subr.bf16.mxu0 0
        %999 = vmatpush1.bf16.msra.mxu0 0
        %1000 = vmatprep.mubr.bf16.mxu0 0
        %1001 = vmatmul.mubr.bf16.gmra.mrb[0].mxu0 %v837
        %v1002 = vpop.f32.mrb[0].mxu0
        %v1003 = vadd.f32 %v954, %v1002
        %v1004 = vpop.f32.mrb[0].mxu0
        %v1005 = vpop.f32.mrb[0].mxu0
        %v1006 = vadd.f32 %v954, %v1005
        %v1007 = vpop.f32.mrb[0].mxu0
        %1008 = vdwg.mxu0
        %v1013 = vunpack.c.l.b16 %v807
        %v1014 = vunpack.c.l.b16 %v808
        %v1015 = vunpack.c.l.b16 %v809
        %v1016 = vunpack.c.l.b16 %v810
        %v1017 = vpack.c.b16 %v1014, %v1013
        %v1018 = vpack.c.b16 %v1016, %v1015
        %1021 = vmatprep.subr.bf16.mxu0 0
        %1022 = vmatpush1.bf16.msra.mxu0 %v1017
        %1023 = vmatprep.subr.bf16.mxu0 0
        %1024 = vmatpush1.bf16.msra.mxu0 %v1018
        %1025 = vmatprep.subr.bf16.mxu0 0
        %1026 = vmatpush1.bf16.msra.mxu0 0
        %1027 = vmatprep.subr.bf16.mxu0 0
        %1028 = vmatpush1.bf16.msra.mxu0 0
        %1029 = vmatprep.subr.bf16.mxu0 0
        %1030 = vmatpush1.bf16.msra.mxu0 0
        %1031 = vmatprep.subr.bf16.mxu0 0
        %1032 = vmatpush1.bf16.msra.mxu0 0
        %1033 = vmatprep.subr.bf16.mxu0 0
        %1034 = vmatpush1.bf16.msra.mxu0 0
        %1035 = vmatprep.subr.bf16.mxu0 0
        %1036 = vmatpush1.bf16.msra.mxu0 0
        %1037 = vmatprep.subr.bf16.mxu0 0
        %1038 = vmatpush1.bf16.msra.mxu0 0
        %1039 = vmatprep.subr.bf16.mxu0 0
        %1040 = vmatpush1.bf16.msra.mxu0 0
        %1041 = vmatprep.subr.bf16.mxu0 0
        %1042 = vmatpush1.bf16.msra.mxu0 0
        %1043 = vmatprep.subr.bf16.mxu0 0
        %1044 = vmatpush1.bf16.msra.mxu0 0
        %1045 = vmatprep.subr.bf16.mxu0 0
        %1046 = vmatpush1.bf16.msra.mxu0 0
        %1047 = vmatprep.subr.bf16.mxu0 0
        %1048 = vmatpush1.bf16.msra.mxu0 0
        %1049 = vmatprep.subr.bf16.mxu0 0
        %1050 = vmatpush1.bf16.msra.mxu0 0
        %1051 = vmatprep.subr.bf16.mxu0 0
        %1052 = vmatpush1.bf16.msra.mxu0 0
        %1053 = vmatprep.mubr.bf16.mxu0 0
        %1054 = vmatmul.mubr.bf16.gmra.mrb[0].mxu0 %v893
        %v1055 = vpop.f32.mrb[0].mxu0
        %v1056 = vadd.f32 0.0, %v1055
        %v1057 = vpop.f32.mrb[0].mxu0
        %v1058 = vpop.f32.mrb[0].mxu0
        %v1059 = vadd.f32 0.0, %v1058
        %v1060 = vpop.f32.mrb[0].mxu0
        %1061 = vdwg.mxu0
        %v1062 = vadd.f32 %v1003, %v1056
        %v1063 = vadd.f32 %v1006, %v1059
        %v1064 = vxor.u32 %v1062, 2147483648
        %v1065 = vxor.u32 %v1063, 2147483648
        %v1066 = vmul.f32 %v1064, 1.442695
        %v1067 = vpow.pop %v1066
        %v1068 = vmul.f32 %v1065, 1.442695
        %v1069 = vpow.pop %v1068
        %v1070 = vadd.f32 %v1067, 1.0
        %v1071 = vadd.f32 %v1069, 1.0
        %v1072 = vrcp.pop %v1070
        %v1073 = vmul.f32 1.0, %v1072
        %v1074 = vrcp.pop %v1071
        %v1075 = vmul.f32 1.0, %v1074
        %v1077 = vlaneseq
        %v1078 = vshrl.u32 %v1077, 7
        %v1079 = vsub.s32 0, %v1078
        %v1080 = vrot.slane %v817, %v1079
        %v1086 = vunpack.c.l.b16 %v799
        %v1087 = vunpack.c.l.b16 %v800
        %v1088 = vunpack.c.l.b16 %v801
        %v1089 = vunpack.c.l.b16 %v802
        %v1090 = vpack.c.b16 %v1087, %v1086
        %v1091 = vpack.c.b16 %v1089, %v1088
        %1094 = vmatprep.subr.bf16.mxu0 0
        %1095 = vmatpush1.bf16.msra.mxu0 %v1090
        %1096 = vmatprep.subr.bf16.mxu0 0
        %1097 = vmatpush1.bf16.msra.mxu0 %v1091
        %1098 = vmatprep.subr.bf16.mxu0 0
        %1099 = vmatpush1.bf16.msra.mxu0 0
        %1100 = vmatprep.subr.bf16.mxu0 0
        %1101 = vmatpush1.bf16.msra.mxu0 0
        %1102 = vmatprep.subr.bf16.mxu0 0
        %1103 = vmatpush1.bf16.msra.mxu0 0
        %1104 = vmatprep.subr.bf16.mxu0 0
        %1105 = vmatpush1.bf16.msra.mxu0 0
        %1106 = vmatprep.subr.bf16.mxu0 0
        %1107 = vmatpush1.bf16.msra.mxu0 0
        %1108 = vmatprep.subr.bf16.mxu0 0
        %1109 = vmatpush1.bf16.msra.mxu0 0
        %1110 = vmatprep.subr.bf16.mxu0 0
        %1111 = vmatpush1.bf16.msra.mxu0 0
        %1112 = vmatprep.subr.bf16.mxu0 0
        %1113 = vmatpush1.bf16.msra.mxu0 0
        %1114 = vmatprep.subr.bf16.mxu0 0
        %1115 = vmatpush1.bf16.msra.mxu0 0
        %1116 = vmatprep.subr.bf16.mxu0 0
        %1117 = vmatpush1.bf16.msra.mxu0 0
        %1118 = vmatprep.subr.bf16.mxu0 0
        %1119 = vmatpush1.bf16.msra.mxu0 0
        %1120 = vmatprep.subr.bf16.mxu0 0
        %1121 = vmatpush1.bf16.msra.mxu0 0
        %1122 = vmatprep.subr.bf16.mxu0 0
        %1123 = vmatpush1.bf16.msra.mxu0 0
        %1124 = vmatprep.subr.bf16.mxu0 0
        %1125 = vmatpush1.bf16.msra.mxu0 0
        %1126 = vmatprep.mubr.bf16.mxu0 0
        %1127 = vmatmul.mubr.bf16.gmra.mrb[0].mxu0 %v837
        %v1128 = vpop.f32.mrb[0].mxu0
        %v1129 = vadd.f32 %v1080, %v1128
        %v1130 = vpop.f32.mrb[0].mxu0
        %v1131 = vpop.f32.mrb[0].mxu0
        %v1132 = vadd.f32 %v1080, %v1131
        %v1133 = vpop.f32.mrb[0].mxu0
        %1134 = vdwg.mxu0
        %v1135 = vmul.f32 %v1073, %v520
        %v1136 = vmul.f32 %v1075, %v521
        %v1137 = vpack.c.bf16 %v1136, %v1135
        %v1142 = vunpack.c.l.b16 %v811
        %v1143 = vunpack.c.l.b16 %v812
        %v1144 = vunpack.c.l.b16 %v813
        %v1145 = vunpack.c.l.b16 %v814
        %v1146 = vpack.c.b16 %v1143, %v1142
        %v1147 = vpack.c.b16 %v1145, %v1144
        %v1151 = vsel %vm533, %v1137, 0
        %1153 = vmatprep.subr.bf16.mxu0 0
        %1154 = vmatpush1.bf16.msra.mxu0 %v1146
        %1155 = vmatprep.subr.bf16.mxu0 0
        %1156 = vmatpush1.bf16.msra.mxu0 %v1147
        %1157 = vmatprep.subr.bf16.mxu0 0
        %1158 = vmatpush1.bf16.msra.mxu0 0
        %1159 = vmatprep.subr.bf16.mxu0 0
        %1160 = vmatpush1.bf16.msra.mxu0 0
        %1161 = vmatprep.subr.bf16.mxu0 0
        %1162 = vmatpush1.bf16.msra.mxu0 0
        %1163 = vmatprep.subr.bf16.mxu0 0
        %1164 = vmatpush1.bf16.msra.mxu0 0
        %1165 = vmatprep.subr.bf16.mxu0 0
        %1166 = vmatpush1.bf16.msra.mxu0 0
        %1167 = vmatprep.subr.bf16.mxu0 0
        %1168 = vmatpush1.bf16.msra.mxu0 0
        %1169 = vmatprep.subr.bf16.mxu0 0
        %1170 = vmatpush1.bf16.msra.mxu0 0
        %1171 = vmatprep.subr.bf16.mxu0 0
        %1172 = vmatpush1.bf16.msra.mxu0 0
        %1173 = vmatprep.subr.bf16.mxu0 0
        %1174 = vmatpush1.bf16.msra.mxu0 0
        %1175 = vmatprep.subr.bf16.mxu0 0
        %1176 = vmatpush1.bf16.msra.mxu0 0
        %1177 = vmatprep.subr.bf16.mxu0 0
        %1178 = vmatpush1.bf16.msra.mxu0 0
        %1179 = vmatprep.subr.bf16.mxu0 0
        %1180 = vmatpush1.bf16.msra.mxu0 0
        %1181 = vmatprep.subr.bf16.mxu0 0
        %1182 = vmatpush1.bf16.msra.mxu0 0
        %1183 = vmatprep.subr.bf16.mxu0 0
        %1184 = vmatpush1.bf16.msra.mxu0 0
        %1185 = vmatprep.mubr.bf16.mxu0 0
        %1186 = vmatmul.mubr.bf16.gmra.mrb[0].mxu0 %v1151
        %v1187 = vpop.f32.mrb[0].mxu0
        %v1188 = vadd.f32 0.0, %v1187
        %v1189 = vpop.f32.mrb[0].mxu0
        %v1190 = vpop.f32.mrb[0].mxu0
        %v1191 = vadd.f32 0.0, %v1190
        %v1192 = vpop.f32.mrb[0].mxu0
        %1193 = vdwg.mxu0
        %v1194 = vadd.f32 %v1129, %v1188
        %v1195 = vadd.f32 %v1132, %v1191
        %v1196 = vtanh.pop %v1194
        %v1197 = vtanh.pop %v1195
        %v1198 = vsub.f32 1.0, %v947
        %v1199 = vsub.f32 1.0, %v949
        %v1200 = vmul.f32 %v1198, %v520
        %v1201 = vmul.f32 %v1199, %v521
        %v1202 = vmul.f32 %v947, %v1196
        %v1203 = vmul.f32 %v949, %v1197
        %v1204 = vadd.f32 %v1200, %v1202
        %v1205 = vadd.f32 %v1201, %v1203
        %1206 = vst.msk [vmem:[%s477] sm:$0xff] %vm533, %v1204
        %1207 = vst.msk [vmem:[%s477 + $0x8] sm:$0xff] %vm533, %v1205
        %v1208 = vsel %vm533, %v1204, 0.0
        %v1209 = vsel %vm533, %v1205, 0.0
        %v1210 = vadd.f32 %v1208, %v1209
        %v1211 = vrot.slane %v1210, 4
        %v1212 = vadd.f32 %v1210, %v1211
        %v1213 = vrot.slane %v1212, 2
        %v1214 = vadd.f32 %v1212, %v1213
        %v1215 = vrot.slane %v1214, 1
        %v1216 = vadd.f32 %v1214, %v1215
        %v1217 = vrcp.pop 16.0
        %v1218 = vmul.f32 %v1216, %v1217
        %vm1219 = vcmask 253952
        %1220 = vst.msk [vmem:[%s515] sm:$0x1] %vm1219, %v1218
        %v1221 = vsel %vm692, %v740, 0.0
        %1222 = vadd.xlane.f32.xlu0 %v1221
        %v1223 = vpop.xlane.xlu0 %1222
        %v1224 = vsel %vm692, %v741, 0.0
        %1225 = vadd.xlane.f32.xlu0 %v1224
        %v1226 = vpop.xlane.xlu0 %1225
        %v1227 = vpack.c.bf16 %v523, %v522
        %1228 = vmatprep.subr.bf16.mxu0 0
        %1229 = vmatpush1.bf16.msra.mxu0 %v1227
        %1230 = vmatprep.subr.bf16.mxu0 0
        %1231 = vmatpush1.bf16.msra.mxu0 0
        %1232 = vmatprep.subr.bf16.mxu0 0
        %1233 = vmatpush1.bf16.msra.mxu0 0
        %1234 = vmatprep.subr.bf16.mxu0 0
        %1235 = vmatpush1.bf16.msra.mxu0 0
        %1236 = vmatprep.subr.bf16.mxu0 0
        %1237 = vmatpush1.bf16.msra.mxu0 0
        %1238 = vmatprep.subr.bf16.mxu0 0
        %1239 = vmatpush1.bf16.msra.mxu0 0
        %1240 = vmatprep.subr.bf16.mxu0 0
        %1241 = vmatpush1.bf16.msra.mxu0 0
        %1242 = vmatprep.subr.bf16.mxu0 0
        %1243 = vmatpush1.bf16.msra.mxu0 0
        %1244 = vmatprep.subr.bf16.mxu0 0
        %1245 = vmatpush1.bf16.msra.mxu0 0
        %1246 = vmatprep.subr.bf16.mxu0 0
        %1247 = vmatpush1.bf16.msra.mxu0 0
        %1248 = vmatprep.subr.bf16.mxu0 0
        %1249 = vmatpush1.bf16.msra.mxu0 0
        %1250 = vmatprep.subr.bf16.mxu0 0
        %1251 = vmatpush1.bf16.msra.mxu0 0
        %1252 = vmatprep.subr.bf16.mxu0 0
        %1253 = vmatpush1.bf16.msra.mxu0 0
        %1254 = vmatprep.subr.bf16.mxu0 0
        %1255 = vmatpush1.bf16.msra.mxu0 0
        %1256 = vmatprep.subr.bf16.mxu0 0
        %1257 = vmatpush1.bf16.msra.mxu0 0
        %1258 = vmatprep.subr.bf16.mxu0 0
        %1259 = vmatpush1.bf16.msra.mxu0 0
        %1260 = vmatprep.mubr.bf16.mxu0 0
        %1261 = vmatmul.mubr.bf16.gmra.mrb[0].mxu0 %v747
        %v1262 = vpop.f32.mrb[0].mxu0
        %v1263 = vadd.f32 0.0, %v1262
        %v1264 = vpop.f32.mrb[0].mxu0
        %v1265 = vpop.f32.mrb[0].mxu0
        %v1266 = vadd.f32 0.0, %v1265
        %v1267 = vpop.f32.mrb[0].mxu0
        %1268 = vdwg.mxu0
        %v1269 = vmul.f32 %v522, %v522
        %v1270 = vmul.f32 %v523, %v523
        %v1271 = vsel %vm533, %v1269, 0.0
        %1272 = vadd.xlane.f32.xlu0 %v1271
        %v1273 = vpop.xlane.xlu0 %1272
        %v1274 = vsel %vm533, %v1270, 0.0
        %1275 = vadd.xlane.f32.xlu0 %v1274
        %v1276 = vpop.xlane.xlu0 %1275
        %v1277 = vmul.f32 %v1223, %v1273
        %v1278 = vmul.f32 %v1226, %v1276
        %vm1279 = vcmask 7168
        %v1280 = vsel %vm1279, %v1277, 0.0
        %v1281 = vsel %vm1279, %v1278, 0.0
        %v1282 = vadd.f32 %v1280, %v1281
        %1283 = vadd.xlane.f32.xlu0 %v1282
        %v1284 = vpop.xlane.xlu0 %1283
        %v1285 = vrot.slane %v1284, 4
        %v1286 = vadd.f32 %v1284, %v1285
        %v1287 = vrot.slane %v1286, 2
        %v1288 = vadd.f32 %v1286, %v1287
        %v1289 = vrot.slane %v1288, 1
        %v1290 = vadd.f32 %v1288, %v1289
        %s1291 = vtos %v1290
        %v1292 = vmul.f32 %v1263, %v522
        %v1293 = vmul.f32 %v1266, %v523
        %v1294 = vsel %vm533, %v1292, 0.0
        %v1295 = vsel %vm533, %v1293, 0.0
        %v1296 = vadd.f32 %v1294, %v1295
        %1297 = vadd.xlane.f32.xlu0 %v1296
        %v1298 = vpop.xlane.xlu0 %1297
        %v1299 = vrot.slane %v1298, 4
        %v1300 = vadd.f32 %v1298, %v1299
        %v1301 = vrot.slane %v1300, 2
        %v1302 = vadd.f32 %v1300, %v1301
        %v1303 = vrot.slane %v1302, 1
        %v1304 = vadd.f32 %v1302, %v1303
        %s1305 = vtos %v1304
        %s1306 = ssub.f32 %s1291, %s1305
        %v1307 = vrcp.pop 256.0
        %s1308 = vtos %v1307
        %s1309 = smul.f32 %s1306, %s1308
        %v1310 = vmax.f32 %v1223, 0.0
        %v1311 = vmax.f32 %v1226, 0.0
        %v1312 = vadd.f32 %v1310, 1e-08
        %v1313 = vadd.f32 %v1311, 1e-08
        %v1314 = vlog2.pop %v1312
        %v1315 = vmul.f32 %v1314, 0.6931472
        %v1316 = vlog2.pop %v1313
        %v1317 = vmul.f32 %v1316, 0.6931472
        %v1318 = vsel %vm1279, %v1315, 0.0
        %v1319 = vsel %vm1279, %v1317, 0.0
        %v1320 = vadd.f32 %v1318, %v1319
        %1321 = vadd.xlane.f32.xlu0 %v1320
        %v1322 = vpop.xlane.xlu0 %1321
        %v1323 = vrot.slane %v1322, 4
        %v1324 = vadd.f32 %v1322, %v1323
        %v1325 = vrot.slane %v1324, 2
        %v1326 = vadd.f32 %v1324, %v1325
        %v1327 = vrot.slane %v1326, 1
        %v1328 = vadd.f32 %v1326, %v1327
        %s1329 = vtos %v1328
        %v1330 = vrcp.pop 16.0
        %s1331 = vtos %v1330
        %s1332 = smul.f32 %s1329, %s1331
        %s1333 = ssub.f32 0.0, %s1332
        %v1334 = vmul.f32 %v740, %v740
        %v1335 = vmul.f32 %v741, %v741
        %v1336 = vsel %vm692, %v1334, 0.0
        %v1337 = vsel %vm692, %v1335, 0.0
        %v1338 = vadd.f32 %v1336, %v1337
        %1339 = vadd.xlane.f32.xlu0 %v1338
        %v1340 = vpop.xlane.xlu0 %1339
        %v1341 = vrot.slane %v1340, 4
        %v1342 = vadd.f32 %v1340, %v1341
        %v1343 = vrot.slane %v1342, 2
        %v1344 = vadd.f32 %v1342, %v1343
        %v1345 = vrot.slane %v1344, 1
        %v1346 = vadd.f32 %v1344, %v1345
        %s1347 = vtos %v1346
        %v1348 = vrcp.pop 256.0
        %s1349 = vtos %v1348
        %s1350 = smul.f32 %s1347, %s1349
        %v1351 = vld [vmem:[%s502] sm:$0xff]
        %v1352 = vld [vmem:[%s502 + $0x8] sm:$0xff]
        %v1353 = vsub.f32 %v740, %v1351
        %v1354 = vsub.f32 %v741, %v1352
        %v1355 = vmul.f32 %v1353, %v1353
        %v1356 = vmul.f32 %v1354, %v1354
        %v1357 = vsel %vm692, %v1355, 0.0
        %v1358 = vsel %vm692, %v1356, 0.0
        %v1359 = vadd.f32 %v1357, %v1358
        %1360 = vadd.xlane.f32.xlu0 %v1359
        %v1361 = vpop.xlane.xlu0 %1360
        %v1362 = vrot.slane %v1361, 4
        %v1363 = vadd.f32 %v1361, %v1362
        %v1364 = vrot.slane %v1363, 2
        %v1365 = vadd.f32 %v1363, %v1364
        %v1366 = vrot.slane %v1365, 1
        %v1367 = vadd.f32 %v1365, %v1366
        %s1368 = vtos %v1367
        %v1369 = vmul.f32 %v726, %v726
        %v1370 = vmul.f32 %v727, %v727
        %v1371 = vsel %vm692, %v1369, 0.0
        %v1372 = vsel %vm692, %v1370, 0.0
        %v1373 = vadd.f32 %v1371, %v1372
        %1374 = vadd.xlane.f32.xlu0 %v1373
        %v1375 = vpop.xlane.xlu0 %1374
        %v1376 = vrot.slane %v1375, 4
        %v1377 = vadd.f32 %v1375, %v1376
        %v1378 = vrot.slane %v1377, 2
        %v1379 = vadd.f32 %v1377, %v1378
        %v1380 = vrot.slane %v1379, 1
        %v1381 = vadd.f32 %v1379, %v1380
        %s1382 = vtos %v1381
        %v1383 = vlaneseq
        %v1384 = vand.u32 %v1383, 127
        %vm1385 = vcmp.eq.s32.totalorder %v1384, 0
        %vm1386 = vcmp.eq.s32.totalorder %v1384, 1
        %vm1387 = vcmp.eq.s32.totalorder %v1384, 2
        %vm1388 = vcmp.eq.s32.totalorder %v1384, 3
        %vm1389 = vcmp.eq.s32.totalorder %v1384, 4
        %v1390 = vstv %s1382
        %v1391 = vsel %vm1389, %v1390, 0.0
        %v1392 = vstv %s1368
        %v1393 = vsel %vm1388, %v1392, %v1391
        %v1394 = vstv %s1350
        %v1395 = vsel %vm1387, %v1394, %v1393
        %v1396 = vstv %s1333
        %v1397 = vsel %vm1386, %v1396, %v1395
        %v1398 = vstv %s1309
        %v1399 = vsel %vm1385, %v1398, %v1397
        %vm1400 = vcmask 57344
        %1401 = vst.msk [vmem:[%s518] sm:$0x1] %vm1400, %v1399
        %s1402 = sand.u32 %s252, 1
        %s1403 = scalar_lea.sflag [#allocation4], %s1402
        %s1404 = sand.u32 %s252, 1
        %s1405 = smul.addr %s1404, 16
        %s1406 = scalar_lea.vmem [#allocation3], %s1405
        %s1407 = sand.u32 %s278, 1
        %s1408 = scalar_lea.sflag [#allocation6], %s1407
        %s1409 = sand.u32 %s278, 1
        %s1410 = smul.addr %s1409, 16
        %s1411 = scalar_lea.vmem [#allocation5], %s1410
        %p1412 = scmp.lt.s32.totalorder %s30, 1
        %s1413 = scalar_select %p1412, %s30, 1
        %s1414 = scalar_lea.vmem %s11, %s1413
        %p1415 = scmp.lt.s32.totalorder %s30, 1
        %s1416 = scalar_select %p1415, %s30, 1
        %s1417 = scalar_lea.vmem %s12, %s1416
        // Predicated region
        $region57: #{iggcn_forward.5} parent=55 // pred_check
          %p1418 = pneg %p262
        $region58: #{iggcn_forward.5} parent=55 // pred_check_branch
          %1420 = sbr.rel (%p1418) target = $region60
        $region59: #{iggcn_forward.5} parent=55 // pred_region
          %s1422 = ssub.s32 256, 256
          %1423 = vsyncadd %s1403, %s1422
          %s1424 = smul.addr %s30, 2
          %s1425 = smul.addr %s1424, 128
          %s1426 = scalar_lea.hbm %s9, %s1425
          %s1427 = sshll.u32 %s1406, 4
          %s1428 = int_to_ptr.vmem [resolvable:$true] %s1427
          %1433 = dma.vmem_to_hbm [thread:$0]  %s1428, 256, %s1426, %s1403, 128, 128, 8
        $region60: #{iggcn_forward.5} parent=55 // pred_fallthru
          _
        // Predicated region
        $region61: #{iggcn_forward.5} parent=55 // pred_check
          %p1434 = pneg %p288
        $region62: #{iggcn_forward.5} parent=55 // pred_check_branch
          %1436 = sbr.rel (%p1434) target = $region64
        $region63: #{iggcn_forward.5} parent=55 // pred_region
          %s1438 = ssub.s32 256, 256
          %1439 = vsyncadd %s1408, %s1438
          %s1440 = smul.addr %s30, 2
          %s1441 = smul.addr %s1440, 128
          %s1442 = scalar_lea.hbm %s10, %s1441
          %s1443 = sshll.u32 %s1411, 4
          %s1444 = int_to_ptr.vmem [resolvable:$true] %s1443
          %1449 = dma.vmem_to_hbm [thread:$0]  %s1444, 256, %s1442, %s1408, 128, 128, 8
        $region64: #{iggcn_forward.5} parent=55 // pred_fallthru
          _
        // Predicated region
        $region65: #{iggcn_forward.5} parent=55 // pred_check
          %p1450 = pneg %p314
        $region66: #{iggcn_forward.5} parent=55 // pred_check_branch
          %1452 = sbr.rel (%p1450) target = $region68
        $region67: #{iggcn_forward.5} parent=55 // pred_region
          _
        $region68: #{iggcn_forward.5} parent=55 // pred_fallthru
          _
        // Predicated region
        $region69: #{iggcn_forward.5} parent=55 // pred_check
          %p1453 = pneg %p340
        $region70: #{iggcn_forward.5} parent=55 // pred_check_branch
          %1455 = sbr.rel (%p1453) target = $region72
        $region71: #{iggcn_forward.5} parent=55 // pred_region
          _
        $region72: #{iggcn_forward.5} parent=55 // pred_fallthru
          _
      $region56: #{iggcn_forward.5} parent=5 // pred_fallthru
        _
      %p1456 = scmp.le.s32.totalorder 2, %s25
      // Predicated region
      $region73: #{iggcn_forward.5} parent=5 // pred_check
        %p1457 = pneg %p1456
      $region74: #{iggcn_forward.5} parent=5 // pred_check_branch
        %1459 = sbr.rel (%p1457) target = $region76
      $region75: #{iggcn_forward.5} parent=5 // pred_region
        %s1460 = ssub.s32 %s25, 2
        // Predicated region
        $region77: #{iggcn_forward.5} parent=75 // pred_check
          %p1461 = pneg %p268
        $region78: #{iggcn_forward.5} parent=75 // pred_check_branch
          %1463 = sbr.rel (%p1461) target = $region80
        $region79: #{iggcn_forward.5} parent=75 // pred_region
          %s1464 = sand.u32 %s253, 1
          %s1465 = scalar_lea.sflag [#allocation4], %s1464
          %s1466 = sand.u32 %s253, 1
          %s1467 = smul.addr %s1466, 16
          %s1468 = scalar_lea.vmem [#allocation3], %s1467
          %1469 = dma.done %s1465, 256
        $region80: #{iggcn_forward.5} parent=75 // pred_fallthru
          _
        // Predicated region
        $region81: #{iggcn_forward.5} parent=75 // pred_check
          %p1470 = pneg %p294
        $region82: #{iggcn_forward.5} parent=75 // pred_check_branch
          %1472 = sbr.rel (%p1470) target = $region84
        $region83: #{iggcn_forward.5} parent=75 // pred_region
          %s1473 = sand.u32 %s279, 1
          %s1474 = scalar_lea.sflag [#allocation6], %s1473
          %s1475 = sand.u32 %s279, 1
          %s1476 = smul.addr %s1475, 16
          %s1477 = scalar_lea.vmem [#allocation5], %s1476
          %1478 = dma.done %s1474, 256
        $region84: #{iggcn_forward.5} parent=75 // pred_fallthru
          _
        // Predicated region
        $region85: #{iggcn_forward.5} parent=75 // pred_check
          %p1479 = pneg %p320
        $region86: #{iggcn_forward.5} parent=75 // pred_check_branch
          %1481 = sbr.rel (%p1479) target = $region88
        $region87: #{iggcn_forward.5} parent=75 // pred_region
          %p1482 = scmp.lt.s32.totalorder %s31, 1
          %s1483 = scalar_select %p1482, %s31, 1
          %s1484 = scalar_lea.vmem %s11, %s1483
        $region88: #{iggcn_forward.5} parent=75 // pred_fallthru
          _
        // Predicated region
        $region89: #{iggcn_forward.5} parent=75 // pred_check
          %p1485 = pneg %p346
        $region90: #{iggcn_forward.5} parent=75 // pred_check_branch
          %1487 = sbr.rel (%p1485) target = $region92
        $region91: #{iggcn_forward.5} parent=75 // pred_region
          %p1488 = scmp.lt.s32.totalorder %s31, 1
          %s1489 = scalar_select %p1488, %s31, 1
          %s1490 = scalar_lea.vmem %s12, %s1489
        $region92: #{iggcn_forward.5} parent=75 // pred_fallthru
          _
      $region76: #{iggcn_forward.5} parent=5 // pred_fallthru
        _
    $region6: #{iggcn_forward.5} parent=1 // loop_footer
      %s29 = sadd.s32 1, %s25
    $region7: #{iggcn_forward.5} parent=1 // loop_footer_branch
      %24 = sbr.rel target = $region3
    $region8: #{iggcn_forward.5} parent=1 // loop_exit
      _
    %1491 = vsyncpa [#allocation4], 1
    %s1492 = scalar_lea.sflag [#allocation4], 1
    %1493 = vsyncpa %s1492, 1
    %1494 = vsyncpa [#allocation6], 1
    %s1495 = scalar_lea.sflag [#allocation6], 1
    %1496 = vsyncpa %s1495, 1

// kernel: iggcn_forward.3
$region0: #{iggcn_forward.3}
  #allocation0 [shape = 'u32[]', space=smem, size = 0x4, offset = 0x4, fixed_abs, tag = 'smem constant byte address 0x4 - core index']
  #allocation1 [shape = 'u32[144,128]{1,0:T(1,128)}', space=vmem, size = 0x12000, scoped, tag = 'internal scratch']
  #allocation2 [shape = 'f32[16,128]{1,0:T(8,128)}', space=vmem, size = 0x2000, scoped, tag = 'scratch operand']
  %s0 = inlined_call_operand.vmem [shape: f32[2,16,32], index: 0, kind: input, shape index: {}, may-alias: {0,1}]
  %s1 = inlined_call_operand.vmem [shape: f32[2,16,32], index: 1, kind: input, shape index: {}, may-alias: {0,1}]
  %s2 = inlined_call_operand.vmem [shape: f32[2,16,16], index: 2, kind: input, shape index: {}]
  %s3 = inlined_call_operand.vmem [shape: f32[4,32], index: 3, kind: input, shape index: {}]
  %s4 = inlined_call_operand.vmem [shape: bf16[3,32,32], index: 4, kind: input, shape index: {}]
  %s5 = inlined_call_operand.vmem [shape: bf16[3,32,32], index: 5, kind: input, shape index: {}]
  %s6 = inlined_call_operand.vmem [shape: f32[3,1,32], index: 6, kind: input, shape index: {}]
  %s7 = inlined_call_operand.vmem [shape: f32[2,16,16], index: 7, kind: output, shape index: {0}]
  %s8 = inlined_call_operand.vmem [shape: f32[2,16,16], index: 8, kind: output, shape index: {1}]
  %s9 = inlined_call_operand.vmem [shape: f32[2,16,32], index: 9, kind: output, shape index: {2}]
  %s10 = inlined_call_operand.vmem [shape: f32[2,1,32], index: 10, kind: output, shape index: {3}]
  %s11 = inlined_call_operand.vmem [shape: f32[2,1,8], index: 11, kind: output, shape index: {4}]
  %12 = xla_tuple %s7, %s8, %s9, %s10, %s11
  %s13 = sld [smem:[#allocation0]]
  $region93: #{iggcn_forward.3} parent=0
    _
  %s15 = ssub.s32 1, %s13
  %s16 = scalar_select 0, %s15, %s13
  loop: start=0, step=1, limit=4
  $region2: #{iggcn_forward.3} parent=0 // loop_pre_header
    _
  $region3: #{iggcn_forward.3} parent=0 // loop_header
    %s18 = sphi 0, %s22
    %p19 = scmp.ge.s32.totalorder %s18, 4
    %s28 = sphi 0, %s30
    %s31 = sphi 0, %s28
    %s32 = sphi 0, %s31
    %s48 = sphi 0, %s32
    %s54 = sphi 0, %s56
    %s57 = sphi 0, %s54
    %s58 = sphi 0, %s57
    %s74 = sphi 0, %s58
    %s80 = sphi 0, %s82
    %s83 = sphi 0, %s80
    %s84 = sphi 0, %s83
    %s100 = sphi 0, %s84
    %s104 = sphi 0, %s104
    %s106 = sphi 0, %s104
    %s107 = sphi 0, %s106
    %s121 = sphi 0, %s107
    %s125 = sphi 0, %s125
    %s127 = sphi 0, %s125
    %s128 = sphi 0, %s127
    %s142 = sphi 0, %s128
    %s146 = sphi 0, %s146
    %s148 = sphi 0, %s146
    %s149 = sphi 0, %s148
    %s163 = sphi 0, %s149
    %s167 = sphi 0, %s167
    %s169 = sphi 0, %s167
    %s170 = sphi 0, %s169
    %s184 = sphi 0, %s170
    %s190 = sphi 0, %s192
    %s193 = sphi 0, %s190
    %s194 = sphi 0, %s193
    %s210 = sphi 0, %s194
    %s216 = sphi 0, %s218
    %s219 = sphi 0, %s216
    %s220 = sphi 0, %s219
    %s236 = sphi 0, %s220
    %s242 = sphi 0, %s244
    %s245 = sphi 0, %s242
    %s246 = sphi 0, %s245
    %s262 = sphi 0, %s246
    %s268 = sphi 0, %s270
    %s271 = sphi 0, %s268
    %s272 = sphi 0, %s271
    %s288 = sphi 0, %s272
    %s294 = sphi 0, %s296
    %s297 = sphi 0, %s294
    %s298 = sphi 0, %s297
    %s314 = sphi 0, %s298
  $region4: #{iggcn_forward.3} parent=0 // loop_header_branch
    %21 = sbr.rel (%p19) target = $region8
  $region5: #{iggcn_forward.3} parent=0 // loop_body
    %s23 = ssub.s32 %s18, 1
    %s24 = ssub.s32 %s18, 2
    %s25 = sadd.s32 %s18, 1
    %s26 = ssub.s32 %s18, %s25
    %p27 = scmp.eq.s32.totalorder %s26, 0
    %s29 = sadd.s32 %s28, 1
    %s30 = scalar_select %p27, %s28, %s29
    %p33 = pneg %p27
    %p34 = scmp.eq.s32.totalorder %s18, 1
    %p35 = por %p33, %p34
    %p36 = scmp.ne.s32.totalorder %s28, %s31
    %p37 = scmp.eq.s32.totalorder %s18, 0
    %p38 = por %p36, %p37
    %p39 = scmp.ne.s32.totalorder %s28, %s31
    %p40 = scmp.eq.s32.totalorder %s23, 1
    %p41 = por %p39, %p40
    %p42 = scmp.ne.s32.totalorder %s31, %s32
    %p43 = scmp.eq.s32.totalorder %s23, 0
    %p44 = por %p42, %p43
    %p45 = scmp.ne.s32.totalorder %s31, %s32
    %p46 = scmp.eq.s32.totalorder %s24, 1
    %p47 = por %p45, %p46
    %p49 = scmp.ne.s32.totalorder %s32, %s48
    %p50 = scmp.eq.s32.totalorder %s24, 0
    %p51 = por %p49, %p50
    %s52 = ssub.s32 %s18, %s25
    %p53 = scmp.eq.s32.totalorder %s52, 0
    %s55 = sadd.s32 %s54, 1
    %s56 = scalar_select %p53, %s54, %s55
    %p59 = pneg %p53
    %p60 = scmp.eq.s32.totalorder %s18, 1
    %p61 = por %p59, %p60
    %p62 = scmp.ne.s32.totalorder %s54, %s57
    %p63 = scmp.eq.s32.totalorder %s18, 0
    %p64 = por %p62, %p63
    %p65 = scmp.ne.s32.totalorder %s54, %s57
    %p66 = scmp.eq.s32.totalorder %s23, 1
    %p67 = por %p65, %p66
    %p68 = scmp.ne.s32.totalorder %s57, %s58
    %p69 = scmp.eq.s32.totalorder %s23, 0
    %p70 = por %p68, %p69
    %p71 = scmp.ne.s32.totalorder %s57, %s58
    %p72 = scmp.eq.s32.totalorder %s24, 1
    %p73 = por %p71, %p72
    %p75 = scmp.ne.s32.totalorder %s58, %s74
    %p76 = scmp.eq.s32.totalorder %s24, 0
    %p77 = por %p75, %p76
    %s78 = ssub.s32 %s18, %s25
    %p79 = scmp.eq.s32.totalorder %s78, 0
    %s81 = sadd.s32 %s80, 1
    %s82 = scalar_select %p79, %s80, %s81
    %p85 = pneg %p79
    %p86 = scmp.eq.s32.totalorder %s18, 1
    %p87 = por %p85, %p86
    %p88 = scmp.ne.s32.totalorder %s80, %s83
    %p89 = scmp.eq.s32.totalorder %s18, 0
    %p90 = por %p88, %p89
    %p91 = scmp.ne.s32.totalorder %s80, %s83
    %p92 = scmp.eq.s32.totalorder %s23, 1
    %p93 = por %p91, %p92
    %p94 = scmp.ne.s32.totalorder %s83, %s84
    %p95 = scmp.eq.s32.totalorder %s23, 0
    %p96 = por %p94, %p95
    %p97 = scmp.ne.s32.totalorder %s83, %s84
    %p98 = scmp.eq.s32.totalorder %s24, 1
    %p99 = por %p97, %p98
    %p101 = scmp.ne.s32.totalorder %s84, %s100
    %p102 = scmp.eq.s32.totalorder %s24, 0
    %p103 = por %p101, %p102
    %s105 = sadd.s32 %s104, 1
    %p108 = scmp.eq.s32.totalorder %s18, 1
    %p109 = scmp.ne.s32.totalorder %s104, %s106
    %p110 = scmp.eq.s32.totalorder %s18, 0
    %p111 = por %p109, %p110
    %p112 = scmp.ne.s32.totalorder %s104, %s106
    %p113 = scmp.eq.s32.totalorder %s23, 1
    %p114 = por %p112, %p113
    %p115 = scmp.ne.s32.totalorder %s106, %s107
    %p116 = scmp.eq.s32.totalorder %s23, 0
    %p117 = por %p115, %p116
    %p118 = scmp.ne.s32.totalorder %s106, %s107
    %p119 = scmp.eq.s32.totalorder %s24, 1
    %p120 = por %p118, %p119
    %p122 = scmp.ne.s32.totalorder %s107, %s121
    %p123 = scmp.eq.s32.totalorder %s24, 0
    %p124 = por %p122, %p123
    %s126 = sadd.s32 %s125, 1
    %p129 = scmp.eq.s32.totalorder %s18, 1
    %p130 = scmp.ne.s32.totalorder %s125, %s127
    %p131 = scmp.eq.s32.totalorder %s18, 0
    %p132 = por %p130, %p131
    %p133 = scmp.ne.s32.totalorder %s125, %s127
    %p134 = scmp.eq.s32.totalorder %s23, 1
    %p135 = por %p133, %p134
    %p136 = scmp.ne.s32.totalorder %s127, %s128
    %p137 = scmp.eq.s32.totalorder %s23, 0
    %p138 = por %p136, %p137
    %p139 = scmp.ne.s32.totalorder %s127, %s128
    %p140 = scmp.eq.s32.totalorder %s24, 1
    %p141 = por %p139, %p140
    %p143 = scmp.ne.s32.totalorder %s128, %s142
    %p144 = scmp.eq.s32.totalorder %s24, 0
    %p145 = por %p143, %p144
    %s147 = sadd.s32 %s146, 1
    %p150 = scmp.eq.s32.totalorder %s18, 1
    %p151 = scmp.ne.s32.totalorder %s146, %s148
    %p152 = scmp.eq.s32.totalorder %s18, 0
    %p153 = por %p151, %p152
    %p154 = scmp.ne.s32.totalorder %s146, %s148
    %p155 = scmp.eq.s32.totalorder %s23, 1
    %p156 = por %p154, %p155
    %p157 = scmp.ne.s32.totalorder %s148, %s149
    %p158 = scmp.eq.s32.totalorder %s23, 0
    %p159 = por %p157, %p158
    %p160 = scmp.ne.s32.totalorder %s148, %s149
    %p161 = scmp.eq.s32.totalorder %s24, 1
    %p162 = por %p160, %p161
    %p164 = scmp.ne.s32.totalorder %s149, %s163
    %p165 = scmp.eq.s32.totalorder %s24, 0
    %p166 = por %p164, %p165
    %s168 = sadd.s32 %s167, 1
    %p171 = scmp.eq.s32.totalorder %s18, 1
    %p172 = scmp.ne.s32.totalorder %s167, %s169
    %p173 = scmp.eq.s32.totalorder %s18, 0
    %p174 = por %p172, %p173
    %p175 = scmp.ne.s32.totalorder %s167, %s169
    %p176 = scmp.eq.s32.totalorder %s23, 1
    %p177 = por %p175, %p176
    %p178 = scmp.ne.s32.totalorder %s169, %s170
    %p179 = scmp.eq.s32.totalorder %s23, 0
    %p180 = por %p178, %p179
    %p181 = scmp.ne.s32.totalorder %s169, %s170
    %p182 = scmp.eq.s32.totalorder %s24, 1
    %p183 = por %p181, %p182
    %p185 = scmp.ne.s32.totalorder %s170, %s184
    %p186 = scmp.eq.s32.totalorder %s24, 0
    %p187 = por %p185, %p186
    %s188 = ssub.s32 %s18, %s25
    %p189 = scmp.eq.s32.totalorder %s188, 0
    %s191 = sadd.s32 %s190, 1
    %s192 = scalar_select %p189, %s190, %s191
    %p195 = pneg %p189
    %p196 = scmp.eq.s32.totalorder %s18, 1
    %p197 = por %p195, %p196
    %p198 = scmp.ne.s32.totalorder %s190, %s193
    %p199 = scmp.eq.s32.totalorder %s18, 0
    %p200 = por %p198, %p199
    %p201 = scmp.ne.s32.totalorder %s190, %s193
    %p202 = scmp.eq.s32.totalorder %s23, 1
    %p203 = por %p201, %p202
    %p204 = scmp.ne.s32.totalorder %s193, %s194
    %p205 = scmp.eq.s32.totalorder %s23, 0
    %p206 = por %p204, %p205
    %p207 = scmp.ne.s32.totalorder %s193, %s194
    %p208 = scmp.eq.s32.totalorder %s24, 1
    %p209 = por %p207, %p208
    %p211 = scmp.ne.s32.totalorder %s194, %s210
    %p212 = scmp.eq.s32.totalorder %s24, 0
    %p213 = por %p211, %p212
    %s214 = ssub.s32 %s18, %s25
    %p215 = scmp.eq.s32.totalorder %s214, 0
    %s217 = sadd.s32 %s216, 1
    %s218 = scalar_select %p215, %s216, %s217
    %p221 = pneg %p215
    %p222 = scmp.eq.s32.totalorder %s18, 1
    %p223 = por %p221, %p222
    %p224 = scmp.ne.s32.totalorder %s216, %s219
    %p225 = scmp.eq.s32.totalorder %s18, 0
    %p226 = por %p224, %p225
    %p227 = scmp.ne.s32.totalorder %s216, %s219
    %p228 = scmp.eq.s32.totalorder %s23, 1
    %p229 = por %p227, %p228
    %p230 = scmp.ne.s32.totalorder %s219, %s220
    %p231 = scmp.eq.s32.totalorder %s23, 0
    %p232 = por %p230, %p231
    %p233 = scmp.ne.s32.totalorder %s219, %s220
    %p234 = scmp.eq.s32.totalorder %s24, 1
    %p235 = por %p233, %p234
    %p237 = scmp.ne.s32.totalorder %s220, %s236
    %p238 = scmp.eq.s32.totalorder %s24, 0
    %p239 = por %p237, %p238
    %s240 = ssub.s32 %s18, %s25
    %p241 = scmp.eq.s32.totalorder %s240, 0
    %s243 = sadd.s32 %s242, 1
    %s244 = scalar_select %p241, %s242, %s243
    %p247 = pneg %p241
    %p248 = scmp.eq.s32.totalorder %s18, 1
    %p249 = por %p247, %p248
    %p250 = scmp.ne.s32.totalorder %s242, %s245
    %p251 = scmp.eq.s32.totalorder %s18, 0
    %p252 = por %p250, %p251
    %p253 = scmp.ne.s32.totalorder %s242, %s245
    %p254 = scmp.eq.s32.totalorder %s23, 1
    %p255 = por %p253, %p254
    %p256 = scmp.ne.s32.totalorder %s245, %s246
    %p257 = scmp.eq.s32.totalorder %s23, 0
    %p258 = por %p256, %p257
    %p259 = scmp.ne.s32.totalorder %s245, %s246
    %p260 = scmp.eq.s32.totalorder %s24, 1
    %p261 = por %p259, %p260
    %p263 = scmp.ne.s32.totalorder %s246, %s262
    %p264 = scmp.eq.s32.totalorder %s24, 0
    %p265 = por %p263, %p264
    %s266 = ssub.s32 %s18, %s25
    %p267 = scmp.eq.s32.totalorder %s266, 0
    %s269 = sadd.s32 %s268, 1
    %s270 = scalar_select %p267, %s268, %s269
    %p273 = pneg %p267
    %p274 = scmp.eq.s32.totalorder %s18, 1
    %p275 = por %p273, %p274
    %p276 = scmp.ne.s32.totalorder %s268, %s271
    %p277 = scmp.eq.s32.totalorder %s18, 0
    %p278 = por %p276, %p277
    %p279 = scmp.ne.s32.totalorder %s268, %s271
    %p280 = scmp.eq.s32.totalorder %s23, 1
    %p281 = por %p279, %p280
    %p282 = scmp.ne.s32.totalorder %s271, %s272
    %p283 = scmp.eq.s32.totalorder %s23, 0
    %p284 = por %p282, %p283
    %p285 = scmp.ne.s32.totalorder %s271, %s272
    %p286 = scmp.eq.s32.totalorder %s24, 1
    %p287 = por %p285, %p286
    %p289 = scmp.ne.s32.totalorder %s272, %s288
    %p290 = scmp.eq.s32.totalorder %s24, 0
    %p291 = por %p289, %p290
    %s292 = ssub.s32 %s18, %s25
    %p293 = scmp.eq.s32.totalorder %s292, 0
    %s295 = sadd.s32 %s294, 1
    %s296 = scalar_select %p293, %s294, %s295
    %p299 = pneg %p293
    %p300 = scmp.eq.s32.totalorder %s18, 1
    %p301 = por %p299, %p300
    %p302 = scmp.ne.s32.totalorder %s294, %s297
    %p303 = scmp.eq.s32.totalorder %s18, 0
    %p304 = por %p302, %p303
    %p305 = scmp.ne.s32.totalorder %s294, %s297
    %p306 = scmp.eq.s32.totalorder %s23, 1
    %p307 = por %p305, %p306
    %p308 = scmp.ne.s32.totalorder %s297, %s298
    %p309 = scmp.eq.s32.totalorder %s23, 0
    %p310 = por %p308, %p309
    %p311 = scmp.ne.s32.totalorder %s297, %s298
    %p312 = scmp.eq.s32.totalorder %s24, 1
    %p313 = por %p311, %p312
    %p315 = scmp.ne.s32.totalorder %s298, %s314
    %p316 = scmp.eq.s32.totalorder %s24, 0
    %p317 = por %p315, %p316
    %p318 = scmp.le.s32.totalorder 1, %s18
    %p319 = scmp.lt.s32.totalorder %s18, 3
    %p320 = pnand %p318, %p319
    %p321 = pneg %p320
    // Predicated region
    $region9: #{iggcn_forward.3} parent=5 // pred_check
      _
    $region10: #{iggcn_forward.3} parent=5 // pred_check_branch
      %323 = sbr.rel (%p320) target = $region12
    $region11: #{iggcn_forward.3} parent=5 // pred_region
      %s324 = ssub.s32 %s18, 1
      // Predicated region
      $region13: #{iggcn_forward.3} parent=11 // pred_check
        %p325 = pneg %p117
      $region14: #{iggcn_forward.3} parent=11 // pred_check_branch
        %327 = sbr.rel (%p325) target = $region16
      $region15: #{iggcn_forward.3} parent=11 // pred_region
        _
      $region16: #{iggcn_forward.3} parent=11 // pred_fallthru
        _
      // Predicated region
      $region17: #{iggcn_forward.3} parent=11 // pred_check
        %p328 = pneg %p138
      $region18: #{iggcn_forward.3} parent=11 // pred_check_branch
        %330 = sbr.rel (%p328) target = $region20
      $region19: #{iggcn_forward.3} parent=11 // pred_region
        _
      $region20: #{iggcn_forward.3} parent=11 // pred_fallthru
        _
      // Predicated region
      $region21: #{iggcn_forward.3} parent=11 // pred_check
        %p331 = pneg %p159
      $region22: #{iggcn_forward.3} parent=11 // pred_check_branch
        %333 = sbr.rel (%p331) target = $region24
      $region23: #{iggcn_forward.3} parent=11 // pred_region
        _
      $region24: #{iggcn_forward.3} parent=11 // pred_fallthru
        _
      // Predicated region
      $region25: #{iggcn_forward.3} parent=11 // pred_check
        %p334 = pneg %p180
      $region26: #{iggcn_forward.3} parent=11 // pred_check_branch
        %336 = sbr.rel (%p334) target = $region28
      $region27: #{iggcn_forward.3} parent=11 // pred_region
        _
      $region28: #{iggcn_forward.3} parent=11 // pred_fallthru
        _
    $region12: #{iggcn_forward.3} parent=5 // pred_fallthru
      _
    %p337 = scmp.lt.s32.totalorder %s18, 2
    // Predicated region
    $region29: #{iggcn_forward.3} parent=5 // pred_check
      %p338 = pneg %p337
    $region30: #{iggcn_forward.3} parent=5 // pred_check_branch
      %340 = sbr.rel (%p338) target = $region32
    $region31: #{iggcn_forward.3} parent=5 // pred_region
      // Predicated region
      $region33: #{iggcn_forward.3} parent=31 // pred_check
        %p341 = pneg %p38
      $region34: #{iggcn_forward.3} parent=31 // pred_check_branch
        %343 = sbr.rel (%p341) target = $region36
      $region35: #{iggcn_forward.3} parent=31 // pred_region
        %p344 = scmp.lt.s32.totalorder %s18, 1
        %s345 = scalar_select %p344, %s18, 1
        %s346 = smul.addr %s345, 2
        %s347 = smul.addr %s346, 8
        %s348 = scalar_lea.vmem %s0, %s347
      $region36: #{iggcn_forward.3} parent=31 // pred_fallthru
        _
      // Predicated region
      $region37: #{iggcn_forward.3} parent=31 // pred_check
        %p349 = pneg %p64
      $region38: #{iggcn_forward.3} parent=31 // pred_check_branch
        %351 = sbr.rel (%p349) target = $region40
      $region39: #{iggcn_forward.3} parent=31 // pred_region
        %p352 = scmp.lt.s32.totalorder %s18, 1
        %s353 = scalar_select %p352, %s18, 1
        %s354 = smul.addr %s353, 2
        %s355 = smul.addr %s354, 8
        %s356 = scalar_lea.vmem %s1, %s355
      $region40: #{iggcn_forward.3} parent=31 // pred_fallthru
        _
      // Predicated region
      $region41: #{iggcn_forward.3} parent=31 // pred_check
        %p357 = pneg %p90
      $region42: #{iggcn_forward.3} parent=31 // pred_check_branch
        %359 = sbr.rel (%p357) target = $region44
      $region43: #{iggcn_forward.3} parent=31 // pred_region
        %p360 = scmp.lt.s32.totalorder %s18, 1
        %s361 = scalar_select %p360, %s18, 1
        %s362 = smul.addr %s361, 2
        %s363 = smul.addr %s362, 8
        %s364 = scalar_lea.vmem %s2, %s363
      $region44: #{iggcn_forward.3} parent=31 // pred_fallthru
        _
    $region32: #{iggcn_forward.3} parent=5 // pred_fallthru
      _
    %p365 = scmp.le.s32.totalorder 1, %s18
    %p366 = scmp.lt.s32.totalorder %s18, 3
    %p367 = pnand %p365, %p366
    %p368 = pneg %p367
    // Predicated region
    $region45: #{iggcn_forward.3} parent=5 // pred_check
      _
    $region46: #{iggcn_forward.3} parent=5 // pred_check_branch
      %370 = sbr.rel (%p367) target = $region48
    $region47: #{iggcn_forward.3} parent=5 // pred_region
      %s371 = ssub.s32 %s18, 1
      %p372 = scmp.lt.s32.totalorder %s23, 1
      %s373 = scalar_select %p372, %s23, 1
      %s374 = smul.addr %s373, 2
      %s375 = smul.addr %s374, 8
      %s376 = scalar_lea.vmem %s0, %s375
      %p377 = pneg %p44
      %p378 = pneg %p41
      %p379 = scmp.lt.s32.totalorder %s23, 1
      %s380 = scalar_select %p379, %s23, 1
      %s381 = smul.addr %s380, 2
      %s382 = smul.addr %s381, 8
      %s383 = scalar_lea.vmem %s1, %s382
      %p384 = pneg %p70
      %p385 = pneg %p67
      %p386 = scmp.lt.s32.totalorder %s23, 1
      %s387 = scalar_select %p386, %s23, 1
      %s388 = smul.addr %s387, 2
      %s389 = smul.addr %s388, 8
      %s390 = scalar_lea.vmem %s2, %s389
      %p391 = pneg %p96
      %p392 = pneg %p93
      %p393 = pneg %p117
      %p394 = pneg %p114
      %p395 = pneg %p138
      %p396 = pneg %p135
      %p397 = pneg %p159
      %p398 = pneg %p156
      %p399 = pneg %p180
      %p400 = pneg %p177
      %p401 = pneg %p206
      %p402 = pneg %p203
      %p403 = scmp.lt.s32.totalorder %s23, 1
      %s404 = scalar_select %p403, %s23, 1
      %s405 = smul.addr %s404, 2
      %s406 = smul.addr %s405, 8
      %s407 = scalar_lea.vmem %s7, %s406
      %p408 = pneg %p232
      %p409 = pneg %p229
      %p410 = scmp.lt.s32.totalorder %s23, 1
      %s411 = scalar_select %p410, %s23, 1
      %s412 = smul.addr %s411, 2
      %s413 = smul.addr %s412, 8
      %s414 = scalar_lea.vmem %s8, %s413
      %p415 = pneg %p258
      %p416 = pneg %p255
      %p417 = scmp.lt.s32.totalorder %s23, 1
      %s418 = scalar_select %p417, %s23, 1
      %s419 = smul.addr %s418, 2
      %s420 = smul.addr %s419, 8
      %s421 = scalar_lea.vmem %s9, %s420
      %p422 = pneg %p284
      %p423 = pneg %p281
      %p424 = scmp.lt.s32.totalorder %s23, 1
      %s425 = scalar_select %p424, %s23, 1
      %s426 = scalar_lea.vmem %s10, %s425
      %p427 = pneg %p310
      %p428 = pneg %p307
      %p429 = scmp.lt.s32.totalorder %s23, 1
      %s430 = scalar_select %p429, %s23, 1
      %s431 = scalar_lea.vmem %s11, %s430
      %p432 = scmp.lt.s32.totalorder %s23, 1
      %s433 = scalar_select %p432, %s23, 1
      %s434 = smul.addr %s433, 2
      %s435 = smul.addr %s434, 8
      %s436 = scalar_lea.vmem %s0, %s435
      %p437 = scmp.lt.s32.totalorder %s23, 1
      %s438 = scalar_select %p437, %s23, 1
      %s439 = smul.addr %s438, 2
      %s440 = smul.addr %s439, 8
      %s441 = scalar_lea.vmem %s1, %s440
      %p442 = scmp.lt.s32.totalorder %s23, 1
      %s443 = scalar_select %p442, %s23, 1
      %s444 = smul.addr %s443, 2
      %s445 = smul.addr %s444, 8
      %s446 = scalar_lea.vmem %s2, %s445
      %p447 = scmp.lt.s32.totalorder %s23, 1
      %s448 = scalar_select %p447, %s23, 1
      %s449 = smul.addr %s448, 2
      %s450 = smul.addr %s449, 8
      %s451 = scalar_lea.vmem %s7, %s450
      %p452 = scmp.lt.s32.totalorder %s23, 1
      %s453 = scalar_select %p452, %s23, 1
      %s454 = smul.addr %s453, 2
      %s455 = smul.addr %s454, 8
      %s456 = scalar_lea.vmem %s8, %s455
      %p457 = scmp.lt.s32.totalorder %s23, 1
      %s458 = scalar_select %p457, %s23, 1
      %s459 = smul.addr %s458, 2
      %s460 = smul.addr %s459, 8
      %s461 = scalar_lea.vmem %s9, %s460
      %p462 = scmp.lt.s32.totalorder %s23, 1
      %s463 = scalar_select %p462, %s23, 1
      %s464 = scalar_lea.vmem %s10, %s463
      %p465 = scmp.lt.s32.totalorder %s23, 1
      %s466 = scalar_select %p465, %s23, 1
      %s467 = scalar_lea.vmem %s11, %s466
      %v469 = vld [vmem:[%s436] sm:$0xff]
      %v470 = vld [vmem:[%s436 + $0x8] sm:$0xff]
      %v471 = vld [vmem:[%s441] sm:$0xff]
      %v472 = vld [vmem:[%s441 + $0x8] sm:$0xff]
      %v473 = vld [vmem:[%s3] sm:$0x1]
      %v474 = vlaneseq
      %v475 = vshrl.u32 %v474, 7
      %v476 = vsub.s32 0, %v475
      %v477 = vrot.slane %v473, %v476
      %v478 = vmul.f32 %v469, %v477
      %v479 = vmul.f32 %v470, %v477
      %v480 = vmul.f32 %v478, %v478
      %v481 = vmul.f32 %v479, %v479
      %vm482 = vcmask 261120
      %v483 = vsel %vm482, %v480, 0.0
      %484 = vadd.xlane.f32.xlu0 %v483
      %v485 = vpop.xlane.xlu0 %484
      %v486 = vsel %vm482, %v481, 0.0
      %487 = vadd.xlane.f32.xlu0 %v486
      %v488 = vpop.xlane.xlu0 %487
      %v489 = vadd.f32 %v485, 1e-16
      %v490 = vadd.f32 %v488, 1e-16
      %v491 = vrsqrt.pop %v489
      %v492 = vrsqrt.pop %v490
      %v493 = vmul.f32 %v478, %v491
      %v494 = vmul.f32 %v479, %v492
      %495 = vst.msk [vmem:[#allocation2] sm:$0xff] %vm482, %v493
      %496 = vst.msk [vmem:[#allocation2 + $0x8] sm:$0xff] %vm482, %v494
      %v497 = vld [vmem:[%s3 + $0x1] sm:$0x1]
      %v498 = vlaneseq
      %v499 = vshrl.u32 %v498, 7
      %v500 = vsub.s32 0, %v499
      %v501 = vrot.slane %v497, %v500
      %v502 = vmul.f32 %v469, %v501
      %v503 = vmul.f32 %v470, %v501
      %v504 = vmul.f32 %v502, %v502
      %v505 = vmul.f32 %v503, %v503
      %v506 = vsel %vm482, %v504, 0.0
      %507 = vadd.xlane.f32.xlu0 %v506
      %v508 = vpop.xlane.xlu0 %507
      %v509 = vsel %vm482, %v505, 0.0
      %510 = vadd.xlane.f32.xlu0 %v509
      %v511 = vpop.xlane.xlu0 %510
      %v512 = vadd.f32 %v508, 1e-16
      %v513 = vadd.f32 %v511, 1e-16
      %v514 = vrsqrt.pop %v512
      %v515 = vrsqrt.pop %v513
      %v516 = vmul.f32 %v502, %v514
      %v517 = vmul.f32 %v503, %v515
      %520 = vrot.lane.b32.xlu0 %v516, 32
      %v521 = vpop.permute.xlu0 %520
      %522 = vrot.lane.b32.xlu0 %v517, 32
      %v523 = vpop.permute.xlu0 %522
      %vm526 = vcmask 523520
      %527 = vst.msk [vmem:[#allocation2] sm:$0xff] %vm526, %v521
      %528 = vst.msk [vmem:[#allocation2 + $0x8] sm:$0xff] %vm526, %v523
      %v529 = vld [vmem:[%s3 + $0x2] sm:$0x1]
      %v530 = vlaneseq
      %v531 = vshrl.u32 %v530, 7
      %v532 = vsub.s32 0, %v531
      %v533 = vrot.slane %v529, %v532
      %v534 = vmul.f32 %v469, %v533
      %v535 = vmul.f32 %v470, %v533
      %v536 = vmul.f32 %v534, %v534
      %v537 = vmul.f32 %v535, %v535
      %v538 = vsel %vm482, %v536, 0.0
      %539 = vadd.xlane.f32.xlu0 %v538
      %v540 = vpop.xlane.xlu0 %539
      %v541 = vsel %vm482, %v537, 0.0
      %542 = vadd.xlane.f32.xlu0 %v541
      %v543 = vpop.xlane.xlu0 %542
      %v544 = vadd.f32 %v540, 1e-16
      %v545 = vadd.f32 %v543, 1e-16
      %v546 = vrsqrt.pop %v544
      %v547 = vrsqrt.pop %v545
      %v548 = vmul.f32 %v534, %v546
      %v549 = vmul.f32 %v535, %v547
      %552 = vrot.lane.b32.xlu0 %v548, 64
      %v553 = vpop.permute.xlu0 %552
      %554 = vrot.lane.b32.xlu0 %v549, 64
      %v555 = vpop.permute.xlu0 %554
      %vm558 = vcmask 785920
      %559 = vst.msk [vmem:[#allocation2] sm:$0xff] %vm558, %v553
      %560 = vst.msk [vmem:[#allocation2 + $0x8] sm:$0xff] %vm558, %v555
      %v561 = vld [vmem:[%s3 + $0x3] sm:$0x1]
      %v562 = vlaneseq
      %v563 = vshrl.u32 %v562, 7
      %v564 = vsub.s32 0, %v563
      %v565 = vrot.slane %v561, %v564
      %v566 = vmul.f32 %v469, %v565
      %v567 = vmul.f32 %v470, %v565
      %v568 = vmul.f32 %v566, %v566
      %v569 = vmul.f32 %v567, %v567
      %v570 = vsel %vm482, %v568, 0.0
      %571 = vadd.xlane.f32.xlu0 %v570
      %v572 = vpop.xlane.xlu0 %571
      %v573 = vsel %vm482, %v569, 0.0
      %574 = vadd.xlane.f32.xlu0 %v573
      %v575 = vpop.xlane.xlu0 %574
      %v576 = vadd.f32 %v572, 1e-16
      %v577 = vadd.f32 %v575, 1e-16
      %v578 = vrsqrt.pop %v576
      %v579 = vrsqrt.pop %v577
      %v580 = vmul.f32 %v566, %v578
      %v581 = vmul.f32 %v567, %v579
      %584 = vrot.lane.b32.xlu0 %v580, 96
      %v585 = vpop.permute.xlu0 %584
      %586 = vrot.lane.b32.xlu0 %v581, 96
      %v587 = vpop.permute.xlu0 %586
      %vm590 = vcmask 1048320
      %591 = vst.msk [vmem:[#allocation2] sm:$0xff] %vm590, %v585
      %592 = vst.msk [vmem:[#allocation2 + $0x8] sm:$0xff] %vm590, %v587
      %v593 = vld [vmem:[#allocation2] sm:$0xff]
      %v594 = vld [vmem:[#allocation2 + $0x8] sm:$0xff]
      %v595 = vpack.c.bf16 %v594, %v593
      %596 = vmatprep.subr.bf16.mxu0 0
      %597 = vmatpush1.bf16.xpose.msra.mxu0 %v595
      %598 = vmatprep.subr.bf16.mxu0 0
      %599 = vmatpush1.bf16.xpose.msra.mxu0 0
      %600 = vmatprep.subr.bf16.mxu0 0
      %601 = vmatpush1.bf16.xpose.msra.mxu0 0
      %602 = vmatprep.subr.bf16.mxu0 0
      %603 = vmatpush1.bf16.xpose.msra.mxu0 0
      %604 = vmatprep.subr.bf16.mxu0 0
      %605 = vmatpush1.bf16.xpose.msra.mxu0 0
      %606 = vmatprep.subr.bf16.mxu0 0
      %607 = vmatpush1.bf16.xpose.msra.mxu0 0
      %608 = vmatprep.subr.bf16.mxu0 0
      %609 = vmatpush1.bf16.xpose.msra.mxu0 0
      %610 = vmatprep.subr.bf16.mxu0 0
      %611 = vmatpush1.bf16.xpose.msra.mxu0 0
      %612 = vmatprep.subr.bf16.mxu0 0
      %613 = vmatpush1.bf16.xpose.msra.mxu0 0
      %614 = vmatprep.subr.bf16.mxu0 0
      %615 = vmatpush1.bf16.xpose.msra.mxu0 0
      %616 = vmatprep.subr.bf16.mxu0 0
      %617 = vmatpush1.bf16.xpose.msra.mxu0 0
      %618 = vmatprep.subr.bf16.mxu0 0
      %619 = vmatpush1.bf16.xpose.msra.mxu0 0
      %620 = vmatprep.subr.bf16.mxu0 0
      %621 = vmatpush1.bf16.xpose.msra.mxu0 0
      %622 = vmatprep.subr.bf16.mxu0 0
      %623 = vmatpush1.bf16.xpose.msra.mxu0 0
      %624 = vmatprep.subr.bf16.mxu0 0
      %625 = vmatpush1.bf16.xpose.msra.mxu0 0
      %626 = vmatprep.subr.bf16.mxu0 0
      %627 = vmatpush1.bf16.xpose.msra.mxu0 0
      %628 = vmatprep.mubr.bf16.mxu0 0
      %629 = vmatmul.mubr.bf16.gmra.mrb[0].mxu0 %v595
      %v630 = vpop.f32.mrb[0].mxu0
      %v631 = vadd.f32 0.0, %v630
      %v632 = vpop.f32.mrb[0].mxu0
      %v633 = vpop.f32.mrb[0].mxu0
      %v634 = vadd.f32 0.0, %v633
      %v635 = vpop.f32.mrb[0].mxu0
      %636 = vdwg.mxu0
      %v637 = vmul.f32 %v631, 0.25
      %v638 = vmul.f32 %v634, 0.25
      %v639 = vmax.f32 %v637, 0.0
      %v640 = vmax.f32 %v638, 0.0
      %vm641 = vcmask 130048
      %v642 = vsel %vm641, %v639, inf
      %v643 = vsel %vm641, %v640, inf
      %v644 = vmin.f32 %v642, %v643
      %645 = vmin.xlane.f32.xlu0 %v644
      %v646 = vpop.xlane.xlu0 %645
      %v647 = vrot.slane %v646, 4
      %v648 = vmin.f32 %v646, %v647
      %v649 = vrot.slane %v648, 2
      %v650 = vmin.f32 %v648, %v649
      %v651 = vrot.slane %v650, 1
      %v652 = vmin.f32 %v650, %v651
      %s653 = vtos %v652
      %v654 = vsel %vm641, %v639, -inf
      %v655 = vsel %vm641, %v640, -inf
      %v656 = vmax.f32 %v654, %v655
      %657 = vmax.xlane.f32.xlu0 %v656
      %v658 = vpop.xlane.xlu0 %657
      %v659 = vrot.slane %v658, 4
      %v660 = vmax.f32 %v658, %v659
      %v661 = vrot.slane %v660, 2
      %v662 = vmax.f32 %v660, %v661
      %v663 = vrot.slane %v662, 1
      %v664 = vmax.f32 %v662, %v663
      %s665 = vtos %v664
      %v666 = vstv %s653
      %v667 = vsub.f32 %v639, %v666
      %v668 = vsub.f32 %v640, %v666
      %s669 = ssub.f32 %s665, %s653
      %s670 = sadd.f32 %s669, 1e-08
      %v671 = vstv %s670
      %v672 = vrcp.pop %v671
      %v673 = vmul.f32 %v667, %v672
      %v674 = vmul.f32 %v668, %v672
      %675 = vst.msk [vmem:[%s456] sm:$0xff] %vm641, %v673
      %676 = vst.msk [vmem:[%s456 + $0x8] sm:$0xff] %vm641, %v674
      %677 = vst.msk [vmem:[%s451] sm:$0xff] %vm641, %v639
      %678 = vst.msk [vmem:[%s451 + $0x8] sm:$0xff] %vm641, %v640
      %v679 = vpack.c.bf16 %v640, %v639
      %v680 = vpack.c.bf16 %v470, %v469
      %v682 = vsel %vm641, %v679, 0
      %684 = vmatprep.subr.bf16.mxu0 0
      %685 = vmatpush1.bf16.msra.mxu0 %v680
      %686 = vmatprep.subr.bf16.mxu0 0
      %687 = vmatpush1.bf16.msra.mxu0 0
      %688 = vmatprep.subr.bf16.mxu0 0
      %689 = vmatpush1.bf16.msra.mxu0 0
      %690 = vmatprep.subr.bf16.mxu0 0
      %691 = vmatpush1.bf16.msra.mxu0 0
      %692 = vmatprep.subr.bf16.mxu0 0
      %693 = vmatpush1.bf16.msra.mxu0 0
      %694 = vmatprep.subr.bf16.mxu0 0
      %695 = vmatpush1.bf16.msra.mxu0 0
      %696 = vmatprep.subr.bf16.mxu0 0
      %697 = vmatpush1.bf16.msra.mxu0 0
      %698 = vmatprep.subr.bf16.mxu0 0
      %699 = vmatpush1.bf16.msra.mxu0 0
      %700 = vmatprep.subr.bf16.mxu0 0
      %701 = vmatpush1.bf16.msra.mxu0 0
      %702 = vmatprep.subr.bf16.mxu0 0
      %703 = vmatpush1.bf16.msra.mxu0 0
      %704 = vmatprep.subr.bf16.mxu0 0
      %705 = vmatpush1.bf16.msra.mxu0 0
      %706 = vmatprep.subr.bf16.mxu0 0
      %707 = vmatpush1.bf16.msra.mxu0 0
      %708 = vmatprep.subr.bf16.mxu0 0
      %709 = vmatpush1.bf16.msra.mxu0 0
      %710 = vmatprep.subr.bf16.mxu0 0
      %711 = vmatpush1.bf16.msra.mxu0 0
      %712 = vmatprep.subr.bf16.mxu0 0
      %713 = vmatpush1.bf16.msra.mxu0 0
      %714 = vmatprep.subr.bf16.mxu0 0
      %715 = vmatpush1.bf16.msra.mxu0 0
      %716 = vmatprep.mubr.bf16.mxu0 0
      %717 = vmatmul.mubr.bf16.gmra.mrb[0].mxu0 %v682
      %v718 = vpop.f32.mrb[0].mxu0
      %v719 = vadd.f32 0.0, %v718
      %v720 = vpop.f32.mrb[0].mxu0
      %v721 = vpop.f32.mrb[0].mxu0
      %v722 = vadd.f32 0.0, %v721
      %v723 = vpop.f32.mrb[0].mxu0
      %724 = vdwg.mxu0
      %v725 = vpack.c.bf16 %v722, %v719
      %v726 = vld [vmem:[%s4] sm:$0xf]
      %v727 = vld [vmem:[%s4 + $0x4] sm:$0xf]
      %v728 = vld [vmem:[%s4 + $0x8] sm:$0xf]
      %v729 = vld [vmem:[%s4 + $0xc] sm:$0xf]
      %v730 = vld [vmem:[%s4 + $0x10] sm:$0xf]
      %v731 = vld [vmem:[%s4 + $0x14] sm:$0xf]
      %v732 = vld [vmem:[%s4 + $0x18] sm:$0xf]
      %v733 = vld [vmem:[%s4 + $0x1c] sm:$0xf]
      %v734 = vld [vmem:[%s4 + $0x20] sm:$0xf]
      %v735 = vld [vmem:[%s4 + $0x24] sm:$0xf]
      %v736 = vld [vmem:[%s4 + $0x28] sm:$0xf]
      %v737 = vld [vmem:[%s4 + $0x2c] sm:$0xf]
      %v738 = vld [vmem:[%s5] sm:$0xf]
      %v739 = vld [vmem:[%s5 + $0x4] sm:$0xf]
      %v740 = vld [vmem:[%s5 + $0x8] sm:$0xf]
      %v741 = vld [vmem:[%s5 + $0xc] sm:$0xf]
      %v742 = vld [vmem:[%s5 + $0x10] sm:$0xf]
      %v743 = vld [vmem:[%s5 + $0x14] sm:$0xf]
      %v744 = vld [vmem:[%s5 + $0x18] sm:$0xf]
      %v745 = vld [vmem:[%s5 + $0x1c] sm:$0xf]
      %v746 = vld [vmem:[%s5 + $0x20] sm:$0xf]
      %v747 = vld [vmem:[%s5 + $0x24] sm:$0xf]
      %v748 = vld [vmem:[%s5 + $0x28] sm:$0xf]
      %v749 = vld [vmem:[%s5 + $0x2c] sm:$0xf]
      %v750 = vld [vmem:[%s6] sm:$0x1]
      %v751 = vld [vmem:[%s6 + $0x1] sm:$0x1]
      %v752 = vld [vmem:[%s6 + $0x2] sm:$0x1]
      %v754 = vlaneseq
      %v755 = vshrl.u32 %v754, 7
      %v756 = vsub.s32 0, %v755
      %v757 = vrot.slane %v750, %v756
      %v763 = vunpack.c.l.b16 %v726
      %v764 = vunpack.c.l.b16 %v727
      %v765 = vunpack.c.l.b16 %v728
      %v766 = vunpack.c.l.b16 %v729
      %v767 = vpack.c.b16 %v764, %v763
      %v768 = vpack.c.b16 %v766, %v765
      %v772 = vsel %vm482, %v725, 0
      %774 = vmatprep.subr.bf16.mxu0 0
      %775 = vmatpush1.bf16.msra.mxu0 %v767
      %776 = vmatprep.subr.bf16.mxu0 0
      %777 = vmatpush1.bf16.msra.mxu0 %v768
      %778 = vmatprep.subr.bf16.mxu0 0
      %779 = vmatpush1.bf16.msra.mxu0 0
      %780 = vmatprep.subr.bf16.mxu0 0
      %781 = vmatpush1.bf16.msra.mxu0 0
      %782 = vmatprep.subr.bf16.mxu0 0
      %783 = vmatpush1.bf16.msra.mxu0 0
      %784 = vmatprep.subr.bf16.mxu0 0
      %785 = vmatpush1.bf16.msra.mxu0 0
      %786 = vmatprep.subr.bf16.mxu0 0
      %787 = vmatpush1.bf16.msra.mxu0 0
      %788 = vmatprep.subr.bf16.mxu0 0
      %789 = vmatpush1.bf16.msra.mxu0 0
      %790 = vmatprep.subr.bf16.mxu0 0
      %791 = vmatpush1.bf16.msra.mxu0 0
      %792 = vmatprep.subr.bf16.mxu0 0
      %793 = vmatpush1.bf16.msra.mxu0 0
      %794 = vmatprep.subr.bf16.mxu0 0
      %795 = vmatpush1.bf16.msra.mxu0 0
      %796 = vmatprep.subr.bf16.mxu0 0
      %797 = vmatpush1.bf16.msra.mxu0 0
      %798 = vmatprep.subr.bf16.mxu0 0
      %799 = vmatpush1.bf16.msra.mxu0 0
      %800 = vmatprep.subr.bf16.mxu0 0
      %801 = vmatpush1.bf16.msra.mxu0 0
      %802 = vmatprep.subr.bf16.mxu0 0
      %803 = vmatpush1.bf16.msra.mxu0 0
      %804 = vmatprep.subr.bf16.mxu0 0
      %805 = vmatpush1.bf16.msra.mxu0 0
      %806 = vmatprep.mubr.bf16.mxu0 0
      %807 = vmatmul.mubr.bf16.gmra.mrb[0].mxu0 %v772
      %v808 = vpop.f32.mrb[0].mxu0
      %v809 = vadd.f32 %v757, %v808
      %v810 = vpop.f32.mrb[0].mxu0
      %v811 = vpop.f32.mrb[0].mxu0
      %v812 = vadd.f32 %v757, %v811
      %v813 = vpop.f32.mrb[0].mxu0
      %814 = vdwg.mxu0
      %v819 = vunpack.c.l.b16 %v738
      %v820 = vunpack.c.l.b16 %v739
      %v821 = vunpack.c.l.b16 %v740
      %v822 = vunpack.c.l.b16 %v741
      %v823 = vpack.c.b16 %v820, %v819
      %v824 = vpack.c.b16 %v822, %v821
      %v828 = vsel %vm482, %v680, 0
      %830 = vmatprep.subr.bf16.mxu0 0
      %831 = vmatpush1.bf16.msra.mxu0 %v823
      %832 = vmatprep.subr.bf16.mxu0 0
      %833 = vmatpush1.bf16.msra.mxu0 %v824
      %834 = vmatprep.subr.bf16.mxu0 0
      %835 = vmatpush1.bf16.msra.mxu0 0
      %836 = vmatprep.subr.bf16.mxu0 0
      %837 = vmatpush1.bf16.msra.mxu0 0
      %838 = vmatprep.subr.bf16.mxu0 0
      %839 = vmatpush1.bf16.msra.mxu0 0
      %840 = vmatprep.subr.bf16.mxu0 0
      %841 = vmatpush1.bf16.msra.mxu0 0
      %842 = vmatprep.subr.bf16.mxu0 0
      %843 = vmatpush1.bf16.msra.mxu0 0
      %844 = vmatprep.subr.bf16.mxu0 0
      %845 = vmatpush1.bf16.msra.mxu0 0
      %846 = vmatprep.subr.bf16.mxu0 0
      %847 = vmatpush1.bf16.msra.mxu0 0
      %848 = vmatprep.subr.bf16.mxu0 0
      %849 = vmatpush1.bf16.msra.mxu0 0
      %850 = vmatprep.subr.bf16.mxu0 0
      %851 = vmatpush1.bf16.msra.mxu0 0
      %852 = vmatprep.subr.bf16.mxu0 0
      %853 = vmatpush1.bf16.msra.mxu0 0
      %854 = vmatprep.subr.bf16.mxu0 0
      %855 = vmatpush1.bf16.msra.mxu0 0
      %856 = vmatprep.subr.bf16.mxu0 0
      %857 = vmatpush1.bf16.msra.mxu0 0
      %858 = vmatprep.subr.bf16.mxu0 0
      %859 = vmatpush1.bf16.msra.mxu0 0
      %860 = vmatprep.subr.bf16.mxu0 0
      %861 = vmatpush1.bf16.msra.mxu0 0
      %862 = vmatprep.mubr.bf16.mxu0 0
      %863 = vmatmul.mubr.bf16.gmra.mrb[0].mxu0 %v828
      %v864 = vpop.f32.mrb[0].mxu0
      %v865 = vadd.f32 0.0, %v864
      %v866 = vpop.f32.mrb[0].mxu0
      %v867 = vpop.f32.mrb[0].mxu0
      %v868 = vadd.f32 0.0, %v867
      %v869 = vpop.f32.mrb[0].mxu0
      %870 = vdwg.mxu0
      %v871 = vadd.f32 %v809, %v865
      %v872 = vadd.f32 %v812, %v868
      %v873 = vxor.u32 %v871, 2147483648
      %v874 = vxor.u32 %v872, 2147483648
      %v875 = vmul.f32 %v873, 1.442695
      %v876 = vpow.pop %v875
      %v877 = vmul.f32 %v874, 1.442695
      %v878 = vpow.pop %v877
      %v879 = vadd.f32 %v876, 1.0
      %v880 = vadd.f32 %v878, 1.0
      %v881 = vrcp.pop %v879
      %v882 = vmul.f32 1.0, %v881
      %v883 = vrcp.pop %v880
      %v884 = vmul.f32 1.0, %v883
      %v886 = vlaneseq
      %v887 = vshrl.u32 %v886, 7
      %v888 = vsub.s32 0, %v887
      %v889 = vrot.slane %v751, %v888
      %v895 = vunpack.c.l.b16 %v730
      %v896 = vunpack.c.l.b16 %v731
      %v897 = vunpack.c.l.b16 %v732
      %v898 = vunpack.c.l.b16 %v733
      %v899 = vpack.c.b16 %v896, %v895
      %v900 = vpack.c.b16 %v898, %v897
      %903 = vmatprep.subr.bf16.mxu0 0
      %904 = vmatpush1.bf16.msra.mxu0 %v899
      %905 = vmatprep.subr.bf16.mxu0 0
      %906 = vmatpush1.bf16.msra.mxu0 %v900
      %907 = vmatprep.subr.bf16.mxu0 0
      %908 = vmatpush1.bf16.msra.mxu0 0
      %909 = vmatprep.subr.bf16.mxu0 0
      %910 = vmatpush1.bf16.msra.mxu0 0
      %911 = vmatprep.subr.bf16.mxu0 0
      %912 = vmatpush1.bf16.msra.mxu0 0
      %913 = vmatprep.subr.bf16.mxu0 0
      %914 = vmatpush1.bf16.msra.mxu0 0
      %915 = vmatprep.subr.bf16.mxu0 0
      %916 = vmatpush1.bf16.msra.mxu0 0
      %917 = vmatprep.subr.bf16.mxu0 0
      %918 = vmatpush1.bf16.msra.mxu0 0
      %919 = vmatprep.subr.bf16.mxu0 0
      %920 = vmatpush1.bf16.msra.mxu0 0
      %921 = vmatprep.subr.bf16.mxu0 0
      %922 = vmatpush1.bf16.msra.mxu0 0
      %923 = vmatprep.subr.bf16.mxu0 0
      %924 = vmatpush1.bf16.msra.mxu0 0
      %925 = vmatprep.subr.bf16.mxu0 0
      %926 = vmatpush1.bf16.msra.mxu0 0
      %927 = vmatprep.subr.bf16.mxu0 0
      %928 = vmatpush1.bf16.msra.mxu0 0
      %929 = vmatprep.subr.bf16.mxu0 0
      %930 = vmatpush1.bf16.msra.mxu0 0
      %931 = vmatprep.subr.bf16.mxu0 0
      %932 = vmatpush1.bf16.msra.mxu0 0
      %933 = vmatprep.subr.bf16.mxu0 0
      %934 = vmatpush1.bf16.msra.mxu0 0
      %935 = vmatprep.mubr.bf16.mxu0 0
      %936 = vmatmul.mubr.bf16.gmra.mrb[0].mxu0 %v772
      %v937 = vpop.f32.mrb[0].mxu0
      %v938 = vadd.f32 %v889, %v937
      %v939 = vpop.f32.mrb[0].mxu0
      %v940 = vpop.f32.mrb[0].mxu0
      %v941 = vadd.f32 %v889, %v940
      %v942 = vpop.f32.mrb[0].mxu0
      %943 = vdwg.mxu0
      %v948 = vunpack.c.l.b16 %v742
      %v949 = vunpack.c.l.b16 %v743
      %v950 = vunpack.c.l.b16 %v744
      %v951 = vunpack.c.l.b16 %v745
      %v952 = vpack.c.b16 %v949, %v948
      %v953 = vpack.c.b16 %v951, %v950
      %956 = vmatprep.subr.bf16.mxu0 0
      %957 = vmatpush1.bf16.msra.mxu0 %v952
      %958 = vmatprep.subr.bf16.mxu0 0
      %959 = vmatpush1.bf16.msra.mxu0 %v953
      %960 = vmatprep.subr.bf16.mxu0 0
      %961 = vmatpush1.bf16.msra.mxu0 0
      %962 = vmatprep.subr.bf16.mxu0 0
      %963 = vmatpush1.bf16.msra.mxu0 0
      %964 = vmatprep.subr.bf16.mxu0 0
      %965 = vmatpush1.bf16.msra.mxu0 0
      %966 = vmatprep.subr.bf16.mxu0 0
      %967 = vmatpush1.bf16.msra.mxu0 0
      %968 = vmatprep.subr.bf16.mxu0 0
      %969 = vmatpush1.bf16.msra.mxu0 0
      %970 = vmatprep.subr.bf16.mxu0 0
      %971 = vmatpush1.bf16.msra.mxu0 0
      %972 = vmatprep.subr.bf16.mxu0 0
      %973 = vmatpush1.bf16.msra.mxu0 0
      %974 = vmatprep.subr.bf16.mxu0 0
      %975 = vmatpush1.bf16.msra.mxu0 0
      %976 = vmatprep.subr.bf16.mxu0 0
      %977 = vmatpush1.bf16.msra.mxu0 0
      %978 = vmatprep.subr.bf16.mxu0 0
      %979 = vmatpush1.bf16.msra.mxu0 0
      %980 = vmatprep.subr.bf16.mxu0 0
      %981 = vmatpush1.bf16.msra.mxu0 0
      %982 = vmatprep.subr.bf16.mxu0 0
      %983 = vmatpush1.bf16.msra.mxu0 0
      %984 = vmatprep.subr.bf16.mxu0 0
      %985 = vmatpush1.bf16.msra.mxu0 0
      %986 = vmatprep.subr.bf16.mxu0 0
      %987 = vmatpush1.bf16.msra.mxu0 0
      %988 = vmatprep.mubr.bf16.mxu0 0
      %989 = vmatmul.mubr.bf16.gmra.mrb[0].mxu0 %v828
      %v990 = vpop.f32.mrb[0].mxu0
      %v991 = vadd.f32 0.0, %v990
      %v992 = vpop.f32.mrb[0].mxu0
      %v993 = vpop.f32.mrb[0].mxu0
      %v994 = vadd.f32 0.0, %v993
      %v995 = vpop.f32.mrb[0].mxu0
      %996 = vdwg.mxu0
      %v997 = vadd.f32 %v938, %v991
      %v998 = vadd.f32 %v941, %v994
      %v999 = vxor.u32 %v997, 2147483648
      %v1000 = vxor.u32 %v998, 2147483648
      %v1001 = vmul.f32 %v999, 1.442695
      %v1002 = vpow.pop %v1001
      %v1003 = vmul.f32 %v1000, 1.442695
      %v1004 = vpow.pop %v1003
      %v1005 = vadd.f32 %v1002, 1.0
      %v1006 = vadd.f32 %v1004, 1.0
      %v1007 = vrcp.pop %v1005
      %v1008 = vmul.f32 1.0, %v1007
      %v1009 = vrcp.pop %v1006
      %v1010 = vmul.f32 1.0, %v1009
      %v1012 = vlaneseq
      %v1013 = vshrl.u32 %v1012, 7
      %v1014 = vsub.s32 0, %v1013
      %v1015 = vrot.slane %v752, %v1014
      %v1021 = vunpack.c.l.b16 %v734
      %v1022 = vunpack.c.l.b16 %v735
      %v1023 = vunpack.c.l.b16 %v736
      %v1024 = vunpack.c.l.b16 %v737
      %v1025 = vpack.c.b16 %v1022, %v1021
      %v1026 = vpack.c.b16 %v1024, %v1023
      %1029 = vmatprep.subr.bf16.mxu0 0
      %1030 = vmatpush1.bf16.msra.mxu0 %v1025
      %1031 = vmatprep.subr.bf16.mxu0 0
      %1032 = vmatpush1.bf16.msra.mxu0 %v1026
      %1033 = vmatprep.subr.bf16.mxu0 0
      %1034 = vmatpush1.bf16.msra.mxu0 0
      %1035 = vmatprep.subr.bf16.mxu0 0
      %1036 = vmatpush1.bf16.msra.mxu0 0
      %1037 = vmatprep.subr.bf16.mxu0 0
      %1038 = vmatpush1.bf16.msra.mxu0 0
      %1039 = vmatprep.subr.bf16.mxu0 0
      %1040 = vmatpush1.bf16.msra.mxu0 0
      %1041 = vmatprep.subr.bf16.mxu0 0
      %1042 = vmatpush1.bf16.msra.mxu0 0
      %1043 = vmatprep.subr.bf16.mxu0 0
      %1044 = vmatpush1.bf16.msra.mxu0 0
      %1045 = vmatprep.subr.bf16.mxu0 0
      %1046 = vmatpush1.bf16.msra.mxu0 0
      %1047 = vmatprep.subr.bf16.mxu0 0
      %1048 = vmatpush1.bf16.msra.mxu0 0
      %1049 = vmatprep.subr.bf16.mxu0 0
      %1050 = vmatpush1.bf16.msra.mxu0 0
      %1051 = vmatprep.subr.bf16.mxu0 0
      %1052 = vmatpush1.bf16.msra.mxu0 0
      %1053 = vmatprep.subr.bf16.mxu0 0
      %1054 = vmatpush1.bf16.msra.mxu0 0
      %1055 = vmatprep.subr.bf16.mxu0 0
      %1056 = vmatpush1.bf16.msra.mxu0 0
      %1057 = vmatprep.subr.bf16.mxu0 0
      %1058 = vmatpush1.bf16.msra.mxu0 0
      %1059 = vmatprep.subr.bf16.mxu0 0
      %1060 = vmatpush1.bf16.msra.mxu0 0
      %1061 = vmatprep.mubr.bf16.mxu0 0
      %1062 = vmatmul.mubr.bf16.gmra.mrb[0].mxu0 %v772
      %v1063 = vpop.f32.mrb[0].mxu0
      %v1064 = vadd.f32 %v1015, %v1063
      %v1065 = vpop.f32.mrb[0].mxu0
      %v1066 = vpop.f32.mrb[0].mxu0
      %v1067 = vadd.f32 %v1015, %v1066
      %v1068 = vpop.f32.mrb[0].mxu0
      %1069 = vdwg.mxu0
      %v1070 = vmul.f32 %v1008, %v469
      %v1071 = vmul.f32 %v1010, %v470
      %v1072 = vpack.c.bf16 %v1071, %v1070
      %v1077 = vunpack.c.l.b16 %v746
      %v1078 = vunpack.c.l.b16 %v747
      %v1079 = vunpack.c.l.b16 %v748
      %v1080 = vunpack.c.l.b16 %v749
      %v1081 = vpack.c.b16 %v1078, %v1077
      %v1082 = vpack.c.b16 %v1080, %v1079
      %v1086 = vsel %vm482, %v1072, 0
      %1088 = vmatprep.subr.bf16.mxu0 0
      %1089 = vmatpush1.bf16.msra.mxu0 %v1081
      %1090 = vmatprep.subr.bf16.mxu0 0
      %1091 = vmatpush1.bf16.msra.mxu0 %v1082
      %1092 = vmatprep.subr.bf16.mxu0 0
      %1093 = vmatpush1.bf16.msra.mxu0 0
      %1094 = vmatprep.subr.bf16.mxu0 0
      %1095 = vmatpush1.bf16.msra.mxu0 0
      %1096 = vmatprep.subr.bf16.mxu0 0
      %1097 = vmatpush1.bf16.msra.mxu0 0
      %1098 = vmatprep.subr.bf16.mxu0 0
      %1099 = vmatpush1.bf16.msra.mxu0 0
      %1100 = vmatprep.subr.bf16.mxu0 0
      %1101 = vmatpush1.bf16.msra.mxu0 0
      %1102 = vmatprep.subr.bf16.mxu0 0
      %1103 = vmatpush1.bf16.msra.mxu0 0
      %1104 = vmatprep.subr.bf16.mxu0 0
      %1105 = vmatpush1.bf16.msra.mxu0 0
      %1106 = vmatprep.subr.bf16.mxu0 0
      %1107 = vmatpush1.bf16.msra.mxu0 0
      %1108 = vmatprep.subr.bf16.mxu0 0
      %1109 = vmatpush1.bf16.msra.mxu0 0
      %1110 = vmatprep.subr.bf16.mxu0 0
      %1111 = vmatpush1.bf16.msra.mxu0 0
      %1112 = vmatprep.subr.bf16.mxu0 0
      %1113 = vmatpush1.bf16.msra.mxu0 0
      %1114 = vmatprep.subr.bf16.mxu0 0
      %1115 = vmatpush1.bf16.msra.mxu0 0
      %1116 = vmatprep.subr.bf16.mxu0 0
      %1117 = vmatpush1.bf16.msra.mxu0 0
      %1118 = vmatprep.subr.bf16.mxu0 0
      %1119 = vmatpush1.bf16.msra.mxu0 0
      %1120 = vmatprep.mubr.bf16.mxu0 0
      %1121 = vmatmul.mubr.bf16.gmra.mrb[0].mxu0 %v1086
      %v1122 = vpop.f32.mrb[0].mxu0
      %v1123 = vadd.f32 0.0, %v1122
      %v1124 = vpop.f32.mrb[0].mxu0
      %v1125 = vpop.f32.mrb[0].mxu0
      %v1126 = vadd.f32 0.0, %v1125
      %v1127 = vpop.f32.mrb[0].mxu0
      %1128 = vdwg.mxu0
      %v1129 = vadd.f32 %v1064, %v1123
      %v1130 = vadd.f32 %v1067, %v1126
      %v1131 = vtanh.pop %v1129
      %v1132 = vtanh.pop %v1130
      %v1133 = vsub.f32 1.0, %v882
      %v1134 = vsub.f32 1.0, %v884
      %v1135 = vmul.f32 %v1133, %v469
      %v1136 = vmul.f32 %v1134, %v470
      %v1137 = vmul.f32 %v882, %v1131
      %v1138 = vmul.f32 %v884, %v1132
      %v1139 = vadd.f32 %v1135, %v1137
      %v1140 = vadd.f32 %v1136, %v1138
      %1141 = vst.msk [vmem:[%s461] sm:$0xff] %vm482, %v1139
      %1142 = vst.msk [vmem:[%s461 + $0x8] sm:$0xff] %vm482, %v1140
      %v1143 = vsel %vm482, %v1139, 0.0
      %v1144 = vsel %vm482, %v1140, 0.0
      %v1145 = vadd.f32 %v1143, %v1144
      %v1146 = vrot.slane %v1145, 4
      %v1147 = vadd.f32 %v1145, %v1146
      %v1148 = vrot.slane %v1147, 2
      %v1149 = vadd.f32 %v1147, %v1148
      %v1150 = vrot.slane %v1149, 1
      %v1151 = vadd.f32 %v1149, %v1150
      %v1152 = vrcp.pop 16.0
      %v1153 = vmul.f32 %v1151, %v1152
      %vm1154 = vcmask 253952
      %1155 = vst.msk [vmem:[%s464] sm:$0x1] %vm1154, %v1153
      %v1156 = vsel %vm641, %v639, 0.0
      %1157 = vadd.xlane.f32.xlu0 %v1156
      %v1158 = vpop.xlane.xlu0 %1157
      %v1159 = vsel %vm641, %v640, 0.0
      %1160 = vadd.xlane.f32.xlu0 %v1159
      %v1161 = vpop.xlane.xlu0 %1160
      %v1162 = vpack.c.bf16 %v472, %v471
      %1163 = vmatprep.subr.bf16.mxu0 0
      %1164 = vmatpush1.bf16.msra.mxu0 %v1162
      %1165 = vmatprep.subr.bf16.mxu0 0
      %1166 = vmatpush1.bf16.msra.mxu0 0
      %1167 = vmatprep.subr.bf16.mxu0 0
      %1168 = vmatpush1.bf16.msra.mxu0 0
      %1169 = vmatprep.subr.bf16.mxu0 0
      %1170 = vmatpush1.bf16.msra.mxu0 0
      %1171 = vmatprep.subr.bf16.mxu0 0
      %1172 = vmatpush1.bf16.msra.mxu0 0
      %1173 = vmatprep.subr.bf16.mxu0 0
      %1174 = vmatpush1.bf16.msra.mxu0 0
      %1175 = vmatprep.subr.bf16.mxu0 0
      %1176 = vmatpush1.bf16.msra.mxu0 0
      %1177 = vmatprep.subr.bf16.mxu0 0
      %1178 = vmatpush1.bf16.msra.mxu0 0
      %1179 = vmatprep.subr.bf16.mxu0 0
      %1180 = vmatpush1.bf16.msra.mxu0 0
      %1181 = vmatprep.subr.bf16.mxu0 0
      %1182 = vmatpush1.bf16.msra.mxu0 0
      %1183 = vmatprep.subr.bf16.mxu0 0
      %1184 = vmatpush1.bf16.msra.mxu0 0
      %1185 = vmatprep.subr.bf16.mxu0 0
      %1186 = vmatpush1.bf16.msra.mxu0 0
      %1187 = vmatprep.subr.bf16.mxu0 0
      %1188 = vmatpush1.bf16.msra.mxu0 0
      %1189 = vmatprep.subr.bf16.mxu0 0
      %1190 = vmatpush1.bf16.msra.mxu0 0
      %1191 = vmatprep.subr.bf16.mxu0 0
      %1192 = vmatpush1.bf16.msra.mxu0 0
      %1193 = vmatprep.subr.bf16.mxu0 0
      %1194 = vmatpush1.bf16.msra.mxu0 0
      %1195 = vmatprep.mubr.bf16.mxu0 0
      %1196 = vmatmul.mubr.bf16.gmra.mrb[0].mxu0 %v682
      %v1197 = vpop.f32.mrb[0].mxu0
      %v1198 = vadd.f32 0.0, %v1197
      %v1199 = vpop.f32.mrb[0].mxu0
      %v1200 = vpop.f32.mrb[0].mxu0
      %v1201 = vadd.f32 0.0, %v1200
      %v1202 = vpop.f32.mrb[0].mxu0
      %1203 = vdwg.mxu0
      %v1204 = vmul.f32 %v471, %v471
      %v1205 = vmul.f32 %v472, %v472
      %v1206 = vsel %vm482, %v1204, 0.0
      %1207 = vadd.xlane.f32.xlu0 %v1206
      %v1208 = vpop.xlane.xlu0 %1207
      %v1209 = vsel %vm482, %v1205, 0.0
      %1210 = vadd.xlane.f32.xlu0 %v1209
      %v1211 = vpop.xlane.xlu0 %1210
      %v1212 = vmul.f32 %v1158, %v1208
      %v1213 = vmul.f32 %v1161, %v1211
      %vm1214 = vcmask 7168
      %v1215 = vsel %vm1214, %v1212, 0.0
      %v1216 = vsel %vm1214, %v1213, 0.0
      %v1217 = vadd.f32 %v1215, %v1216
      %1218 = vadd.xlane.f32.xlu0 %v1217
      %v1219 = vpop.xlane.xlu0 %1218
      %v1220 = vrot.slane %v1219, 4
      %v1221 = vadd.f32 %v1219, %v1220
      %v1222 = vrot.slane %v1221, 2
      %v1223 = vadd.f32 %v1221, %v1222
      %v1224 = vrot.slane %v1223, 1
      %v1225 = vadd.f32 %v1223, %v1224
      %s1226 = vtos %v1225
      %v1227 = vmul.f32 %v1198, %v471
      %v1228 = vmul.f32 %v1201, %v472
      %v1229 = vsel %vm482, %v1227, 0.0
      %v1230 = vsel %vm482, %v1228, 0.0
      %v1231 = vadd.f32 %v1229, %v1230
      %1232 = vadd.xlane.f32.xlu0 %v1231
      %v1233 = vpop.xlane.xlu0 %1232
      %v1234 = vrot.slane %v1233, 4
      %v1235 = vadd.f32 %v1233, %v1234
      %v1236 = vrot.slane %v1235, 2
      %v1237 = vadd.f32 %v1235, %v1236
      %v1238 = vrot.slane %v1237, 1
      %v1239 = vadd.f32 %v1237, %v1238
      %s1240 = vtos %v1239
      %s1241 = ssub.f32 %s1226, %s1240
      %v1242 = vrcp.pop 256.0
      %s1243 = vtos %v1242
      %s1244 = smul.f32 %s1241, %s1243
      %v1245 = vmax.f32 %v1158, 0.0
      %v1246 = vmax.f32 %v1161, 0.0
      %v1247 = vadd.f32 %v1245, 1e-08
      %v1248 = vadd.f32 %v1246, 1e-08
      %v1249 = vlog2.pop %v1247
      %v1250 = vmul.f32 %v1249, 0.6931472
      %v1251 = vlog2.pop %v1248
      %v1252 = vmul.f32 %v1251, 0.6931472
      %v1253 = vsel %vm1214, %v1250, 0.0
      %v1254 = vsel %vm1214, %v1252, 0.0
      %v1255 = vadd.f32 %v1253, %v1254
      %1256 = vadd.xlane.f32.xlu0 %v1255
      %v1257 = vpop.xlane.xlu0 %1256
      %v1258 = vrot.slane %v1257, 4
      %v1259 = vadd.f32 %v1257, %v1258
      %v1260 = vrot.slane %v1259, 2
      %v1261 = vadd.f32 %v1259, %v1260
      %v1262 = vrot.slane %v1261, 1
      %v1263 = vadd.f32 %v1261, %v1262
      %s1264 = vtos %v1263
      %v1265 = vrcp.pop 16.0
      %s1266 = vtos %v1265
      %s1267 = smul.f32 %s1264, %s1266
      %s1268 = ssub.f32 0.0, %s1267
      %v1269 = vmul.f32 %v639, %v639
      %v1270 = vmul.f32 %v640, %v640
      %v1271 = vsel %vm641, %v1269, 0.0
      %v1272 = vsel %vm641, %v1270, 0.0
      %v1273 = vadd.f32 %v1271, %v1272
      %1274 = vadd.xlane.f32.xlu0 %v1273
      %v1275 = vpop.xlane.xlu0 %1274
      %v1276 = vrot.slane %v1275, 4
      %v1277 = vadd.f32 %v1275, %v1276
      %v1278 = vrot.slane %v1277, 2
      %v1279 = vadd.f32 %v1277, %v1278
      %v1280 = vrot.slane %v1279, 1
      %v1281 = vadd.f32 %v1279, %v1280
      %s1282 = vtos %v1281
      %v1283 = vrcp.pop 256.0
      %s1284 = vtos %v1283
      %s1285 = smul.f32 %s1282, %s1284
      %v1286 = vld [vmem:[%s446] sm:$0xff]
      %v1287 = vld [vmem:[%s446 + $0x8] sm:$0xff]
      %v1288 = vsub.f32 %v639, %v1286
      %v1289 = vsub.f32 %v640, %v1287
      %v1290 = vmul.f32 %v1288, %v1288
      %v1291 = vmul.f32 %v1289, %v1289
      %v1292 = vsel %vm641, %v1290, 0.0
      %v1293 = vsel %vm641, %v1291, 0.0
      %v1294 = vadd.f32 %v1292, %v1293
      %1295 = vadd.xlane.f32.xlu0 %v1294
      %v1296 = vpop.xlane.xlu0 %1295
      %v1297 = vrot.slane %v1296, 4
      %v1298 = vadd.f32 %v1296, %v1297
      %v1299 = vrot.slane %v1298, 2
      %v1300 = vadd.f32 %v1298, %v1299
      %v1301 = vrot.slane %v1300, 1
      %v1302 = vadd.f32 %v1300, %v1301
      %s1303 = vtos %v1302
      %v1304 = vmul.f32 %v673, %v673
      %v1305 = vmul.f32 %v674, %v674
      %v1306 = vsel %vm641, %v1304, 0.0
      %v1307 = vsel %vm641, %v1305, 0.0
      %v1308 = vadd.f32 %v1306, %v1307
      %1309 = vadd.xlane.f32.xlu0 %v1308
      %v1310 = vpop.xlane.xlu0 %1309
      %v1311 = vrot.slane %v1310, 4
      %v1312 = vadd.f32 %v1310, %v1311
      %v1313 = vrot.slane %v1312, 2
      %v1314 = vadd.f32 %v1312, %v1313
      %v1315 = vrot.slane %v1314, 1
      %v1316 = vadd.f32 %v1314, %v1315
      %s1317 = vtos %v1316
      %v1318 = vlaneseq
      %v1319 = vand.u32 %v1318, 127
      %vm1320 = vcmp.eq.s32.totalorder %v1319, 0
      %vm1321 = vcmp.eq.s32.totalorder %v1319, 1
      %vm1322 = vcmp.eq.s32.totalorder %v1319, 2
      %vm1323 = vcmp.eq.s32.totalorder %v1319, 3
      %vm1324 = vcmp.eq.s32.totalorder %v1319, 4
      %v1325 = vstv %s1317
      %v1326 = vsel %vm1324, %v1325, 0.0
      %v1327 = vstv %s1303
      %v1328 = vsel %vm1323, %v1327, %v1326
      %v1329 = vstv %s1285
      %v1330 = vsel %vm1322, %v1329, %v1328
      %v1331 = vstv %s1268
      %v1332 = vsel %vm1321, %v1331, %v1330
      %v1333 = vstv %s1244
      %v1334 = vsel %vm1320, %v1333, %v1332
      %vm1335 = vcmask 57344
      %1336 = vst.msk [vmem:[%s467] sm:$0x1] %vm1335, %v1334
      %p1337 = scmp.lt.s32.totalorder %s23, 1
      %s1338 = scalar_select %p1337, %s23, 1
      %s1339 = smul.addr %s1338, 2
      %s1340 = smul.addr %s1339, 8
      %s1341 = scalar_lea.vmem %s7, %s1340
      %p1342 = scmp.lt.s32.totalorder %s23, 1
      %s1343 = scalar_select %p1342, %s23, 1
      %s1344 = smul.addr %s1343, 2
      %s1345 = smul.addr %s1344, 8
      %s1346 = scalar_lea.vmem %s8, %s1345
      %p1347 = scmp.lt.s32.totalorder %s23, 1
      %s1348 = scalar_select %p1347, %s23, 1
      %s1349 = smul.addr %s1348, 2
      %s1350 = smul.addr %s1349, 8
      %s1351 = scalar_lea.vmem %s9, %s1350
      %p1352 = scmp.lt.s32.totalorder %s23, 1
      %s1353 = scalar_select %p1352, %s23, 1
      %s1354 = scalar_lea.vmem %s10, %s1353
      %p1355 = scmp.lt.s32.totalorder %s23, 1
      %s1356 = scalar_select %p1355, %s23, 1
      %s1357 = scalar_lea.vmem %s11, %s1356
      // Predicated region
      $region49: #{iggcn_forward.3} parent=47 // pred_check
        %p1358 = pneg %p203
      $region50: #{iggcn_forward.3} parent=47 // pred_check_branch
        %1360 = sbr.rel (%p1358) target = $region52
      $region51: #{iggcn_forward.3} parent=47 // pred_region
        _
      $region52: #{iggcn_forward.3} parent=47 // pred_fallthru
        _
      // Predicated region
      $region53: #{iggcn_forward.3} parent=47 // pred_check
        %p1361 = pneg %p229
      $region54: #{iggcn_forward.3} parent=47 // pred_check_branch
        %1363 = sbr.rel (%p1361) target = $region56
      $region55: #{iggcn_forward.3} parent=47 // pred_region
        _
      $region56: #{iggcn_forward.3} parent=47 // pred_fallthru
        _
      // Predicated region
      $region57: #{iggcn_forward.3} parent=47 // pred_check
        %p1364 = pneg %p255
      $region58: #{iggcn_forward.3} parent=47 // pred_check_branch
        %1366 = sbr.rel (%p1364) target = $region60
      $region59: #{iggcn_forward.3} parent=47 // pred_region
        _
      $region60: #{iggcn_forward.3} parent=47 // pred_fallthru
        _
      // Predicated region
      $region61: #{iggcn_forward.3} parent=47 // pred_check
        %p1367 = pneg %p281
      $region62: #{iggcn_forward.3} parent=47 // pred_check_branch
        %1369 = sbr.rel (%p1367) target = $region64
      $region63: #{iggcn_forward.3} parent=47 // pred_region
        _
      $region64: #{iggcn_forward.3} parent=47 // pred_fallthru
        _
      // Predicated region
      $region65: #{iggcn_forward.3} parent=47 // pred_check
        %p1370 = pneg %p307
      $region66: #{iggcn_forward.3} parent=47 // pred_check_branch
        %1372 = sbr.rel (%p1370) target = $region68
      $region67: #{iggcn_forward.3} parent=47 // pred_region
        _
      $region68: #{iggcn_forward.3} parent=47 // pred_fallthru
        _
    $region48: #{iggcn_forward.3} parent=5 // pred_fallthru
      _
    %p1373 = scmp.le.s32.totalorder 2, %s18
    // Predicated region
    $region69: #{iggcn_forward.3} parent=5 // pred_check
      %p1374 = pneg %p1373
    $region70: #{iggcn_forward.3} parent=5 // pred_check_branch
      %1376 = sbr.rel (%p1374) target = $region72
    $region71: #{iggcn_forward.3} parent=5 // pred_region
      %s1377 = ssub.s32 %s18, 2
      // Predicated region
      $region73: #{iggcn_forward.3} parent=71 // pred_check
        %p1378 = pneg %p209
      $region74: #{iggcn_forward.3} parent=71 // pred_check_branch
        %1380 = sbr.rel (%p1378) target = $region76
      $region75: #{iggcn_forward.3} parent=71 // pred_region
        %p1381 = scmp.lt.s32.totalorder %s24, 1
        %s1382 = scalar_select %p1381, %s24, 1
        %s1383 = smul.addr %s1382, 2
        %s1384 = smul.addr %s1383, 8
        %s1385 = scalar_lea.vmem %s7, %s1384
      $region76: #{iggcn_forward.3} parent=71 // pred_fallthru
        _
      // Predicated region
      $region77: #{iggcn_forward.3} parent=71 // pred_check
        %p1386 = pneg %p235
      $region78: #{iggcn_forward.3} parent=71 // pred_check_branch
        %1388 = sbr.rel (%p1386) target = $region80
      $region79: #{iggcn_forward.3} parent=71 // pred_region
        %p1389 = scmp.lt.s32.totalorder %s24, 1
        %s1390 = scalar_select %p1389, %s24, 1
        %s1391 = smul.addr %s1390, 2
        %s1392 = smul.addr %s1391, 8
        %s1393 = scalar_lea.vmem %s8, %s1392
      $region80: #{iggcn_forward.3} parent=71 // pred_fallthru
        _
      // Predicated region
      $region81: #{iggcn_forward.3} parent=71 // pred_check
        %p1394 = pneg %p261
      $region82: #{iggcn_forward.3} parent=71 // pred_check_branch
        %1396 = sbr.rel (%p1394) target = $region84
      $region83: #{iggcn_forward.3} parent=71 // pred_region
        %p1397 = scmp.lt.s32.totalorder %s24, 1
        %s1398 = scalar_select %p1397, %s24, 1
        %s1399 = smul.addr %s1398, 2
        %s1400 = smul.addr %s1399, 8
        %s1401 = scalar_lea.vmem %s9, %s1400
      $region84: #{iggcn_forward.3} parent=71 // pred_fallthru
        _
      // Predicated region
      $region85: #{iggcn_forward.3} parent=71 // pred_check
        %p1402 = pneg %p287
      $region86: #{iggcn_forward.3} parent=71 // pred_check_branch
        %1404 = sbr.rel (%p1402) target = $region88
      $region87: #{iggcn_forward.3} parent=71 // pred_region
        %p1405 = scmp.lt.s32.totalorder %s24, 1
        %s1406 = scalar_select %p1405, %s24, 1
        %s1407 = scalar_lea.vmem %s10, %s1406
      $region88: #{iggcn_forward.3} parent=71 // pred_fallthru
        _
      // Predicated region
      $region89: #{iggcn_forward.3} parent=71 // pred_check
        %p1408 = pneg %p313
      $region90: #{iggcn_forward.3} parent=71 // pred_check_branch
        %1410 = sbr.rel (%p1408) target = $region92
      $region91: #{iggcn_forward.3} parent=71 // pred_region
        %p1411 = scmp.lt.s32.totalorder %s24, 1
        %s1412 = scalar_select %p1411, %s24, 1
        %s1413 = scalar_lea.vmem %s11, %s1412
      $region92: #{iggcn_forward.3} parent=71 // pred_fallthru
        _
    $region72: #{iggcn_forward.3} parent=5 // pred_fallthru
      _
  $region6: #{iggcn_forward.3} parent=0 // loop_footer
    %s22 = sadd.s32 1, %s18
  $region7: #{iggcn_forward.3} parent=0 // loop_footer_branch
    %17 = sbr.rel target = $region3
  $region8: #{iggcn_forward.3} parent=0 // loop_exit
    _

</llo_original>
